<compile_context>
chip_gen: v6e
topology: v6e:2x2x1
jax: 0.10.0
libtpu: 0.0.40
codegen_flags: <defaults>
</compile_context>

<pallas_src>
from math import log

import numpy as np
import jax
import jax.numpy as jnp
from jax import lax
from jax.experimental import pallas as pl
from jax.experimental.pallas import tpu as pltpu

# Synthetic (small) model_config, shapes consistent with the PyTorch module.
MODEL_CONFIG = dict(
    measure_dim=4,
    embedd_dim=16,
    hidden_dim=32,
    num_layers=2,
    ffn_dim=32,
    num_labels=3,
    drop_prob=0.1,  # unused at inference
)
PRIOR_PROB = 0.1  # fills linear2.bias with -log((1-p)/p), as in the module


# ----------------------------------------------------------------------------- helpers
def _full_spec(shape):
    """Whole-array BlockSpec for a grid=(1,) pallas_call (full dims -> no (8,128) constraint)."""
    n = len(shape)
    return pl.BlockSpec(shape, lambda i, _n=n: (0,) * _n)


def _joint_perm(H):
    # Columns of concat([fwd(i,f,g,o), bwd(i,f,g,o)]) (each gate block H wide, PyTorch
    # order i,f,g,o) reordered to the joint layout [(i_f,i_b),(f_f,f_b),(o_f,o_b),(g_f,g_b)]
    # i.e. gate order [i, f, o | g] so sigmoid is contiguous over 0:6H and tanh over 6H:8H.
    order = (0, 1, 3, 2)  # i, f, o, g in PyTorch's (i, f, g, o) indexing
    return np.concatenate(
        [np.arange(H) + d * 4 * H + k * H for k in order for d in range(2)]
    )


# ----------------------------------------------------------------------------- fused kernel
def make_fused_kernel(num_layers):
    L = num_layers

    def kernel(*refs):
        x_ref = refs[0]                                    # (S*BP, M) time-major padded rows
        layer_refs = [refs[1 + 3 * l: 4 + 3 * l] for l in range(L)]   # (Wcat, bcat, Wrec)
        h0_ref, c0_ref = refs[1 + 3 * L], refs[2 + 3 * L]  # (L, BP, 2H) joint [fwd|bwd]
        hw1_ref, hb1_ref, hw2_ref, hb2_ref = refs[3 + 3 * L: 7 + 3 * L]
        o_ref = refs[7 + 3 * L]                            # (BP, C)
        g_scr, seq_scr = refs[8 + 3 * L], refs[9 + 3 * L]  # (S,BP,8H), (S,BP,2H) VMEM

        S, BP, G = g_scr.shape                             # G = 8H
        H = G // 8
        two_h = 2 * H

        # Hoisted constant lane masks (fwd half of each joint block / of the 2H features).
        gate_fwd = (lax.broadcasted_iota(jnp.int32, (BP, G), 1) % two_h) < H
        feat_fwd = lax.broadcasted_iota(jnp.int32, (BP, two_h), 1) < H

        def run_layer(inp_flat, w_ref, b_ref, r_ref, l, is_last):
            # [hoist] input->hidden projection for every timestep of both directions,
            # with (b_ih + b_hh) folded in; one matmul per layer, outside the recurrence.
            proj = (
                jnp.dot(inp_flat, w_ref[...], preferred_element_type=jnp.float32)
                + b_ref[...]
            ).reshape(S, BP, G)
            # [R2] pre-blend: fwd gate columns use input at time t, bwd columns at S-1-t.
            # Off the serial chain; per-step body then needs only an aligned load + add.
            for t in range(S):
                g_scr[t] = jnp.where(gate_fwd, proj[t], proj[S - 1 - t])

            rec_w = r_ref[...]      # (2H, 8H) block-diagonal fwd/bwd recurrent weights
            h = h0_ref[l]           # joint state (BP, 2H) = [h_fwd | h_bwd]
            c = c0_ref[l]
            # [R1/R8] fully unrolled joint recurrence, all accesses sublane-aligned tiles.
            for t in range(S):
                rec = jnp.dot(h, rec_w, preferred_element_type=jnp.float32)  # 1 MXU dot/step
                g = g_scr[t] + rec
                sg = jax.nn.sigmoid(g[:, 0:3 * two_h])        # [R4] i | f | o (contiguous)
                gg = jnp.tanh(g[:, 3 * two_h:4 * two_h])      # joint g gate (BP, 2H)
                c = sg[:, two_h:2 * two_h] * c + sg[:, 0:two_h] * gg
                h = sg[:, 2 * two_h:3 * two_h] * jnp.tanh(c)
                seq_scr[t] = h                                # [R5] one full-width store/step

            # [R5] joint-step order -> physical-time order: reverse the bwd feature half
            # in time via an in-place pairwise swap, once per layer, off the serial chain.
            if not is_last:
                for p in range(S // 2):
                    q = S - 1 - p
                    a = seq_scr[p]
                    b = seq_scr[q]
                    seq_scr[p] = jnp.where(feat_fwd, a, b)
                    seq_scr[q] = jnp.where(feat_fwd, b, a)
                # (if S were odd, the middle step is already in physical order)

        run_layer(x_ref[...], *layer_refs[0], 0, L == 1)
        for l in range(1, L):
            run_layer(seq_scr[...].reshape(S * BP, two_h), *layer_refs[l], l, l == L - 1)

        # Head on the last physical timestep: [h_f(S-1) | h_b(S-1)] =
        # fwd half of joint step S-1, bwd half of joint step 0 (last layer skipped the swap).
        last = jnp.where(feat_fwd, seq_scr[S - 1], seq_scr[0])
        t1 = jnp.dot(last, hw1_ref[...], preferred_element_type=jnp.float32) + hb1_ref[...]
        t1 = jnp.maximum(t1, 0.0)
        o_ref[...] = (
            jnp.dot(t1, hw2_ref[...], preferred_element_type=jnp.float32) + hb2_ref[...]
        )

    return kernel


# ----------------------------------------------------------------------------- wrapper
def _prep_params(params, h0, c0):
    """Offline weight preprocessing (pure algebra, tiny): embedding fold, dir-concat,
    block-diag recurrent weights, and joint [i,f,o|g] gate-column permutation."""
    cfg = MODEL_CONFIG
    H, L = cfg["hidden_dim"], cfg["num_layers"]
    perm = _joint_perm(H)

    emb_wT = params["emb_w"].T          # (M, E)
    emb_b = params["emb_b"]             # (E,)

    layer_mats = []
    for l in range(L):
        lp = params["lstm"][l]
        if l == 0:
            # fold Conv1d(k=1) embedding into the layer-0 input projection
            wf = emb_wT @ lp["wih_f"].T
            wb = emb_wT @ lp["wih_b"].T
            bf = emb_b @ lp["wih_f"].T + lp["bih_f"] + lp["bhh_f"]
            bb = emb_b @ lp["wih_b"].T + lp["bih_b"] + lp["bhh_b"]
        else:
            wf, wb = lp["wih_f"].T, lp["wih_b"].T
            bf = lp["bih_f"] + lp["bhh_f"]
            bb = lp["bih_b"] + lp["bhh_b"]
        wcat = jnp.concatenate([wf, wb], axis=1)[:, perm]          # (Din, 8H) joint cols
        bcat = jnp.concatenate([bf, bb])[perm][None, :]            # (1, 8H)
        z = jnp.zeros((H, 4 * H), jnp.float32)
        rec = jnp.concatenate(
            [jnp.concatenate([lp["whh_f"].T, z], axis=1),
             jnp.concatenate([z, lp["whh_b"].T], axis=1)],
            axis=0,
        )[:, perm]                                                  # (2H, 8H) block-diag
        layer_mats += [wcat, bcat, rec]

    h0j = jnp.concatenate([h0[0::2], h0[1::2]], axis=-1)            # (L, B, 2H)
    c0j = jnp.concatenate([c0[0::2], c0[1::2]], axis=-1)

    head = [params["w1"].T, params["b1"][None, :],
            params["w2"].T, params["b2"][None, :]]
    return layer_mats, h0j, c0j, head


@jax.jit
def conv_lstm_linear_forward(x, params, h0, c0):
    """x: (B, S, measure_dim) f32; h0/c0: (num_layers*2, B, H)."""
    cfg = MODEL_CONFIG
    B, S, M = x.shape
    H, L, C = cfg["hidden_dim"], cfg["num_layers"], cfg["num_labels"]
    BP = ((B + 7) // 8) * 8     # [R1] pad the per-timestep row block to a sublane granule
    pad = BP - B

    layer_mats, h0j, c0j, head = _prep_params(params, h0, c0)

    # time-major, row-padded input; padded rows are zeros and never touch rows 0..B-1
    # (all per-row math is independent of other rows).
    x_t = jnp.pad(x.transpose(1, 0, 2), ((0, 0), (0, pad), (0, 0))).reshape(S * BP, M)
    h0p = jnp.pad(h0j, ((0, 0), (0, pad), (0, 0)))
    c0p = jnp.pad(c0j, ((0, 0), (0, pad), (0, 0)))

    args = [x_t] + layer_mats + [h0p, c0p] + head
    out = pl.pallas_call(
        make_fused_kernel(L),
        out_shape=jax.ShapeDtypeStruct((BP, C), jnp.float32),
        grid=(1,),
        in_specs=[_full_spec(a.shape) for a in args],
        out_specs=_full_spec((BP, C)),
        scratch_shapes=[
            pltpu.VMEM((S, BP, 8 * H), jnp.float32),   # pre-blended per-layer gate inputs
            pltpu.VMEM((S, BP, 2 * H), jnp.float32),   # joint h history / layer output seq
        ],
        compiler_params=pltpu.CompilerParams(dimension_semantics=("arbitrary",)),
    )(*args)
    return out[:B]


# ----------------------------------------------------------------------------- params
def init_params(key):
    cfg = MODEL_CONFIG
    M, E, H, L, F, C = (
        cfg["measure_dim"], cfg["embedd_dim"], cfg["hidden_dim"],
        cfg["num_layers"], cfg["ffn_dim"], cfg["num_labels"],
    )

    keys = iter(jax.random.split(key, 64))

    def uni(shape, k):
        return jax.random.uniform(next(keys), shape, jnp.float32, -k, k)

    p = {}
    k = 1.0 / float(jnp.sqrt(jnp.float32(M)))
    p["emb_w"] = uni((E, M), k)          # Conv1d weight (E, M, 1) with k=1 squeezed
    p["emb_b"] = uni((E,), k)

    p["lstm"] = []
    kk = 1.0 / float(jnp.sqrt(jnp.float32(H)))
    for l in range(L):
        din = E if l == 0 else 2 * H
        layer = {}
        for suf in ("f", "b"):
            layer["wih_" + suf] = uni((4 * H, din), kk)
            layer["whh_" + suf] = uni((4 * H, H), kk)
            layer["bih_" + suf] = uni((4 * H,), kk)
            layer["bhh_" + suf] = uni((4 * H,), kk)
        p["lstm"].append(layer)

    k1 = 1.0 / float(jnp.sqrt(jnp.float32(2 * H)))
    p["w1"] = uni((F, 2 * H), k1)
    p["b1"] = uni((F,), k1)
    k2 = 1.0 / float(jnp.sqrt(jnp.float32(F)))
    p["w2"] = uni((C, F), k2)
    p["b2"] = jnp.full((C,), -log((1.0 - PRIOR_PROB) / PRIOR_PROB), jnp.float32)
    return p


# ----------------------------------------------------------------------------- pure-JAX reference
def _ref_forward(x, params, h0, c0):
    cfg = MODEL_CONFIG
    H, L = cfg["hidden_dim"], cfg["num_layers"]
    seq = jnp.einsum("bsm,em->bse", x, params["emb_w"]) + params["emb_b"]

    def run_dir(xs, wih, whh, b, h_0, c_0):
        def step(carry, xt):
            h, c = carry
            g = xt @ wih.T + h @ whh.T + b
            i, f, gg, o = jnp.split(g, 4, axis=-1)
            c = jax.nn.sigmoid(f) * c + jax.nn.sigmoid(i) * jnp.tanh(gg)
            h = jax.nn.sigmoid(o) * jnp.tanh(c)
            return (h, c), h

        _, hs = lax.scan(step, (h_0, c_0), xs)
        return hs  # (S, B, H)

    for l in range(L):
        lp = params["lstm"][l]
        xs = seq.transpose(1, 0, 2)
        hf = run_dir(xs, lp["wih_f"], lp["whh_f"], lp["bih_f"] + lp["bhh_f"],
                     h0[2 * l], c0[2 * l])
        hb = run_dir(xs[::-1], lp["wih_b"], lp["whh_b"], lp["bih_b"] + lp["bhh_b"],
                     h0[2 * l + 1], c0[2 * l + 1])[::-1]
        seq = jnp.concatenate([hf, hb], axis=-1).transpose(1, 0, 2)

    last = seq[:, -1, :]
    h1 = jnp.maximum(last @ params["w1"].T + params["b1"], 0.0)
    return h1 @ params["w2"].T + params["b2"]


# ----------------------------------------------------------------------------- main
if __name__ == "__main__":
    cfg = MODEL_CONFIG
    B, S = 2, 8

    key = jax.random.PRNGKey(0)
    kp, kx, kh, kc = jax.random.split(key, 4)

    params = init_params(kp)
    x = jax.random.normal(kx, (B, S, cfg["measure_dim"]), jnp.float32)
    # torch.randn-style initial hidden/cell, made deterministic:
    h0 = jax.random.normal(kh, (cfg["num_layers"] * 2, B, cfg["hidden_dim"]), jnp.float32)
    c0 = jax.random.normal(kc, (cfg["num_layers"] * 2, B, cfg["hidden_dim"]), jnp.float32)

    out = conv_lstm_linear_forward(x, params, h0, c0)
    out = jax.block_until_ready(out)

    ref = _ref_forward(x, params, h0, c0)
    assert out.shape == (B, cfg["num_labels"]), out.shape
    assert jnp.allclose(out, ref, atol=2e-3, rtol=2e-3), (out, ref)

    print("KERNEL_OK")
</pallas_src>

<mosaic_0001>
module attributes {stable_mosaic.version = 11 : i64} {
  func.func @kernel(%arg0: i32, %arg1: memref<64x4xf32, #tpu.memory_space<vmem>>, %arg2: memref<4x256xf32, #tpu.memory_space<vmem>>, %arg3: memref<1x256xf32, #tpu.memory_space<vmem>>, %arg4: memref<64x256xf32, #tpu.memory_space<vmem>>, %arg5: memref<64x256xf32, #tpu.memory_space<vmem>>, %arg6: memref<1x256xf32, #tpu.memory_space<vmem>>, %arg7: memref<64x256xf32, #tpu.memory_space<vmem>>, %arg8: memref<2x8x64xf32, #tpu.memory_space<vmem>>, %arg9: memref<2x8x64xf32, #tpu.memory_space<vmem>>, %arg10: memref<64x32xf32, #tpu.memory_space<vmem>>, %arg11: memref<1x32xf32, #tpu.memory_space<vmem>>, %arg12: memref<32x3xf32, #tpu.memory_space<vmem>>, %arg13: memref<1x3xf32, #tpu.memory_space<vmem>>, %arg14: memref<8x3xf32, #tpu.memory_space<vmem>>, %arg15: memref<8x8x256xf32, #tpu.memory_space<vmem>>, %arg16: memref<8x8x64xf32, #tpu.memory_space<vmem>>) attributes {dimension_semantics = [#tpu.dimension_semantics<arbitrary>], iteration_bounds = array<i64: 1>, scalar_prefetch = 0 : i64, scratch_operands = 2 : i64, tpu.core_type = #tpu.core_type<tc>, window_params = [{pipeline_mode = #tpu.pipeline_mode<synchronous>, transform_indices = @transform_0, window_bounds = array<i64: 64, 4>}, {pipeline_mode = #tpu.pipeline_mode<synchronous>, transform_indices = @transform_1, window_bounds = array<i64: 4, 256>}, {pipeline_mode = #tpu.pipeline_mode<synchronous>, transform_indices = @transform_2, window_bounds = array<i64: 1, 256>}, {pipeline_mode = #tpu.pipeline_mode<synchronous>, transform_indices = @transform_3, window_bounds = array<i64: 64, 256>}, {pipeline_mode = #tpu.pipeline_mode<synchronous>, transform_indices = @transform_4, window_bounds = array<i64: 64, 256>}, {pipeline_mode = #tpu.pipeline_mode<synchronous>, transform_indices = @transform_5, window_bounds = array<i64: 1, 256>}, {pipeline_mode = #tpu.pipeline_mode<synchronous>, transform_indices = @transform_6, window_bounds = array<i64: 64, 256>}, {pipeline_mode = #tpu.pipeline_mode<synchronous>, transform_indices = @transform_7, window_bounds = array<i64: 2, 8, 64>}, {pipeline_mode = #tpu.pipeline_mode<synchronous>, transform_indices = @transform_8, window_bounds = array<i64: 2, 8, 64>}, {pipeline_mode = #tpu.pipeline_mode<synchronous>, transform_indices = @transform_9, window_bounds = array<i64: 64, 32>}, {pipeline_mode = #tpu.pipeline_mode<synchronous>, transform_indices = @transform_10, window_bounds = array<i64: 1, 32>}, {pipeline_mode = #tpu.pipeline_mode<synchronous>, transform_indices = @transform_11, window_bounds = array<i64: 32, 3>}, {pipeline_mode = #tpu.pipeline_mode<synchronous>, transform_indices = @transform_12, window_bounds = array<i64: 1, 3>}, {pipeline_mode = #tpu.pipeline_mode<synchronous>, transform_indices = @transform_13, window_bounds = array<i64: 8, 3>}]} {
    %0 = tpu.iota {dimensions = array<i32: 1>} : vector<8x256xi32>
    %c64_i32 = arith.constant 64 : i32
    %c0_i32 = arith.constant 0 : i32
    %1 = arith.cmpi eq, %c64_i32, %c0_i32 : i32
    %c1_i32 = arith.constant 1 : i32
    %2 = arith.select %1, %c1_i32, %c64_i32 : i32
    %3 = vector.broadcast %2 : i32 to vector<8x256xi32>
    %4 = arith.remsi %0, %3 : vector<8x256xi32>
    %c0_i32_0 = arith.constant 0 : i32
    %5 = vector.broadcast %c0_i32_0 : i32 to vector<8x256xi32>
    %6 = arith.cmpi ne, %4, %5 : vector<8x256xi32>
    %c0_i32_1 = arith.constant 0 : i32
    %7 = vector.broadcast %c0_i32_1 : i32 to vector<8x256xi32>
    %8 = arith.cmpi slt, %4, %7 : vector<8x256xi32>
    %c0_i32_2 = arith.constant 0 : i32
    %9 = arith.cmpi slt, %2, %c0_i32_2 : i32
    %10 = vector.broadcast %9 : i1 to vector<8x256xi1>
    %11 = vector.broadcast %10 : vector<8x256xi1> to vector<8x256xi1>
    %12 = arith.xori %8, %11 : vector<8x256xi1>
    %13 = arith.andi %12, %6 : vector<8x256xi1>
    %14 = vector.broadcast %2 : i32 to vector<8x256xi32>
    %15 = arith.addi %4, %14 : vector<8x256xi32>
    %16 = arith.select %13, %15, %4 : vector<8x256xi1>, vector<8x256xi32>
    %c32_i32 = arith.constant 32 : i32
    %17 = vector.broadcast %c32_i32 : i32 to vector<8x256xi32>
    %18 = arith.cmpi slt, %16, %17 : vector<8x256xi32>
    %19 = tpu.iota {dimensions = array<i32: 1>} : vector<8x64xi32>
    %c32_i32_3 = arith.constant 32 : i32
    %20 = vector.broadcast %c32_i32_3 : i32 to vector<8x64xi32>
    %21 = arith.cmpi slt, %19, %20 : vector<8x64xi32>
    %c0 = arith.constant 0 : index
    %c0_4 = arith.constant 0 : index
    %22 = vector.load %arg1[%c0, %c0_4] : memref<64x4xf32, #tpu.memory_space<vmem>>, vector<64x4xf32>
    %c0_5 = arith.constant 0 : index
    %c0_6 = arith.constant 0 : index
    %23 = vector.load %arg2[%c0_5, %c0_6] : memref<4x256xf32, #tpu.memory_space<vmem>>, vector<4x256xf32>
    %cst = arith.constant dense<0.000000e+00> : vector<64x256xf32>
    %24 = tpu.matmul %22, %23, %cst {dimension_numbers = #tpu.dot_dimension_numbers<[1], [0], [0], [1], [0, 0, 1, 1], [], []>} : vector<64x4xf32>, vector<4x256xf32>, vector<64x256xf32> -> vector<64x256xf32>
    %c0_7 = arith.constant 0 : index
    %c0_8 = arith.constant 0 : index
    %25 = vector.load %arg3[%c0_7, %c0_8] : memref<1x256xf32, #tpu.memory_space<vmem>>, vector<1x256xf32>
    %26 = vector.broadcast %25 : vector<1x256xf32> to vector<64x256xf32>
    %27 = arith.addf %24, %26 : vector<64x256xf32>
    %28 = vector.shape_cast %27 : vector<64x256xf32> to vector<8x8x256xf32>
    %29 = vector.extract_strided_slice %28 {offsets = [0, 0, 0], sizes = [1, 8, 256], strides = [1, 1, 1]} : vector<8x8x256xf32> to vector<1x8x256xf32>
    %30 = vector.shape_cast %29 : vector<1x8x256xf32> to vector<8x256xf32>
    %31 = vector.extract_strided_slice %28 {offsets = [7, 0, 0], sizes = [1, 8, 256], strides = [1, 1, 1]} : vector<8x8x256xf32> to vector<1x8x256xf32>
    %32 = vector.shape_cast %31 : vector<1x8x256xf32> to vector<8x256xf32>
    %33 = arith.select %18, %30, %32 : vector<8x256xi1>, vector<8x256xf32>
    %c0_9 = arith.constant 0 : index
    %c0_10 = arith.constant 0 : index
    %c0_11 = arith.constant 0 : index
    %34 = vector.load %arg15[%c0_9, %c0_10, %c0_11] : memref<8x8x256xf32, #tpu.memory_space<vmem>>, vector<1x8x256xf32>
    %35 = vector.shape_cast %34 : vector<1x8x256xf32> to vector<8x256xf32>
    %36 = vector.shape_cast %33 : vector<8x256xf32> to vector<1x8x256xf32>
    tpu.vector_store %arg15[%c0_9, %c0_10, %c0_11], %36 {strides = array<i32>} : memref<8x8x256xf32, #tpu.memory_space<vmem>>, vector<1x8x256xf32>,
    %37 = vector.extract_strided_slice %28 {offsets = [1, 0, 0], sizes = [1, 8, 256], strides = [1, 1, 1]} : vector<8x8x256xf32> to vector<1x8x256xf32>
    %38 = vector.shape_cast %37 : vector<1x8x256xf32> to vector<8x256xf32>
    %39 = vector.extract_strided_slice %28 {offsets = [6, 0, 0], sizes = [1, 8, 256], strides = [1, 1, 1]} : vector<8x8x256xf32> to vector<1x8x256xf32>
    %40 = vector.shape_cast %39 : vector<1x8x256xf32> to vector<8x256xf32>
    %41 = arith.select %18, %38, %40 : vector<8x256xi1>, vector<8x256xf32>
    %c1 = arith.constant 1 : index
    %c0_12 = arith.constant 0 : index
    %c0_13 = arith.constant 0 : index
    %42 = vector.load %arg15[%c1, %c0_12, %c0_13] : memref<8x8x256xf32, #tpu.memory_space<vmem>>, vector<1x8x256xf32>
    %43 = vector.shape_cast %42 : vector<1x8x256xf32> to vector<8x256xf32>
    %44 = vector.shape_cast %41 : vector<8x256xf32> to vector<1x8x256xf32>
    tpu.vector_store %arg15[%c1, %c0_12, %c0_13], %44 {strides = array<i32>} : memref<8x8x256xf32, #tpu.memory_space<vmem>>, vector<1x8x256xf32>,
    %45 = vector.extract_strided_slice %28 {offsets = [2, 0, 0], sizes = [1, 8, 256], strides = [1, 1, 1]} : vector<8x8x256xf32> to vector<1x8x256xf32>
    %46 = vector.shape_cast %45 : vector<1x8x256xf32> to vector<8x256xf32>
    %47 = vector.extract_strided_slice %28 {offsets = [5, 0, 0], sizes = [1, 8, 256], strides = [1, 1, 1]} : vector<8x8x256xf32> to vector<1x8x256xf32>
    %48 = vector.shape_cast %47 : vector<1x8x256xf32> to vector<8x256xf32>
    %49 = arith.select %18, %46, %48 : vector<8x256xi1>, vector<8x256xf32>
    %c2 = arith.constant 2 : index
    %c0_14 = arith.constant 0 : index
    %c0_15 = arith.constant 0 : index
    %50 = vector.load %arg15[%c2, %c0_14, %c0_15] : memref<8x8x256xf32, #tpu.memory_space<vmem>>, vector<1x8x256xf32>
    %51 = vector.shape_cast %50 : vector<1x8x256xf32> to vector<8x256xf32>
    %52 = vector.shape_cast %49 : vector<8x256xf32> to vector<1x8x256xf32>
    tpu.vector_store %arg15[%c2, %c0_14, %c0_15], %52 {strides = array<i32>} : memref<8x8x256xf32, #tpu.memory_space<vmem>>, vector<1x8x256xf32>,
    %53 = vector.extract_strided_slice %28 {offsets = [3, 0, 0], sizes = [1, 8, 256], strides = [1, 1, 1]} : vector<8x8x256xf32> to vector<1x8x256xf32>
    %54 = vector.shape_cast %53 : vector<1x8x256xf32> to vector<8x256xf32>
    %55 = vector.extract_strided_slice %28 {offsets = [4, 0, 0], sizes = [1, 8, 256], strides = [1, 1, 1]} : vector<8x8x256xf32> to vector<1x8x256xf32>
    %56 = vector.shape_cast %55 : vector<1x8x256xf32> to vector<8x256xf32>
    %57 = arith.select %18, %54, %56 : vector<8x256xi1>, vector<8x256xf32>
    %c3 = arith.constant 3 : index
    %c0_16 = arith.constant 0 : index
    %c0_17 = arith.constant 0 : index
    %58 = vector.load %arg15[%c3, %c0_16, %c0_17] : memref<8x8x256xf32, #tpu.memory_space<vmem>>, vector<1x8x256xf32>
    %59 = vector.shape_cast %58 : vector<1x8x256xf32> to vector<8x256xf32>
    %60 = vector.shape_cast %57 : vector<8x256xf32> to vector<1x8x256xf32>
    tpu.vector_store %arg15[%c3, %c0_16, %c0_17], %60 {strides = array<i32>} : memref<8x8x256xf32, #tpu.memory_space<vmem>>, vector<1x8x256xf32>,
    %61 = vector.extract_strided_slice %28 {offsets = [4, 0, 0], sizes = [1, 8, 256], strides = [1, 1, 1]} : vector<8x8x256xf32> to vector<1x8x256xf32>
    %62 = vector.shape_cast %61 : vector<1x8x256xf32> to vector<8x256xf32>
    %63 = vector.extract_strided_slice %28 {offsets = [3, 0, 0], sizes = [1, 8, 256], strides = [1, 1, 1]} : vector<8x8x256xf32> to vector<1x8x256xf32>
    %64 = vector.shape_cast %63 : vector<1x8x256xf32> to vector<8x256xf32>
    %65 = arith.select %18, %62, %64 : vector<8x256xi1>, vector<8x256xf32>
    %c4 = arith.constant 4 : index
    %c0_18 = arith.constant 0 : index
    %c0_19 = arith.constant 0 : index
    %66 = vector.load %arg15[%c4, %c0_18, %c0_19] : memref<8x8x256xf32, #tpu.memory_space<vmem>>, vector<1x8x256xf32>
    %67 = vector.shape_cast %66 : vector<1x8x256xf32> to vector<8x256xf32>
    %68 = vector.shape_cast %65 : vector<8x256xf32> to vector<1x8x256xf32>
    tpu.vector_store %arg15[%c4, %c0_18, %c0_19], %68 {strides = array<i32>} : memref<8x8x256xf32, #tpu.memory_space<vmem>>, vector<1x8x256xf32>,
    %69 = vector.extract_strided_slice %28 {offsets = [5, 0, 0], sizes = [1, 8, 256], strides = [1, 1, 1]} : vector<8x8x256xf32> to vector<1x8x256xf32>
    %70 = vector.shape_cast %69 : vector<1x8x256xf32> to vector<8x256xf32>
    %71 = vector.extract_strided_slice %28 {offsets = [2, 0, 0], sizes = [1, 8, 256], strides = [1, 1, 1]} : vector<8x8x256xf32> to vector<1x8x256xf32>
    %72 = vector.shape_cast %71 : vector<1x8x256xf32> to vector<8x256xf32>
    %73 = arith.select %18, %70, %72 : vector<8x256xi1>, vector<8x256xf32>
    %c5 = arith.constant 5 : index
    %c0_20 = arith.constant 0 : index
    %c0_21 = arith.constant 0 : index
    %74 = vector.load %arg15[%c5, %c0_20, %c0_21] : memref<8x8x256xf32, #tpu.memory_space<vmem>>, vector<1x8x256xf32>
    %75 = vector.shape_cast %74 : vector<1x8x256xf32> to vector<8x256xf32>
    %76 = vector.shape_cast %73 : vector<8x256xf32> to vector<1x8x256xf32>
    tpu.vector_store %arg15[%c5, %c0_20, %c0_21], %76 {strides = array<i32>} : memref<8x8x256xf32, #tpu.memory_space<vmem>>, vector<1x8x256xf32>,
    %77 = vector.extract_strided_slice %28 {offsets = [6, 0, 0], sizes = [1, 8, 256], strides = [1, 1, 1]} : vector<8x8x256xf32> to vector<1x8x256xf32>
    %78 = vector.shape_cast %77 : vector<1x8x256xf32> to vector<8x256xf32>
    %79 = vector.extract_strided_slice %28 {offsets = [1, 0, 0], sizes = [1, 8, 256], strides = [1, 1, 1]} : vector<8x8x256xf32> to vector<1x8x256xf32>
    %80 = vector.shape_cast %79 : vector<1x8x256xf32> to vector<8x256xf32>
    %81 = arith.select %18, %78, %80 : vector<8x256xi1>, vector<8x256xf32>
    %c6 = arith.constant 6 : index
    %c0_22 = arith.constant 0 : index
    %c0_23 = arith.constant 0 : index
    %82 = vector.load %arg15[%c6, %c0_22, %c0_23] : memref<8x8x256xf32, #tpu.memory_space<vmem>>, vector<1x8x256xf32>
    %83 = vector.shape_cast %82 : vector<1x8x256xf32> to vector<8x256xf32>
    %84 = vector.shape_cast %81 : vector<8x256xf32> to vector<1x8x256xf32>
    tpu.vector_store %arg15[%c6, %c0_22, %c0_23], %84 {strides = array<i32>} : memref<8x8x256xf32, #tpu.memory_space<vmem>>, vector<1x8x256xf32>,
    %85 = vector.extract_strided_slice %28 {offsets = [7, 0, 0], sizes = [1, 8, 256], strides = [1, 1, 1]} : vector<8x8x256xf32> to vector<1x8x256xf32>
    %86 = vector.shape_cast %85 : vector<1x8x256xf32> to vector<8x256xf32>
    %87 = vector.extract_strided_slice %28 {offsets = [0, 0, 0], sizes = [1, 8, 256], strides = [1, 1, 1]} : vector<8x8x256xf32> to vector<1x8x256xf32>
    %88 = vector.shape_cast %87 : vector<1x8x256xf32> to vector<8x256xf32>
    %89 = arith.select %18, %86, %88 : vector<8x256xi1>, vector<8x256xf32>
    %c7 = arith.constant 7 : index
    %c0_24 = arith.constant 0 : index
    %c0_25 = arith.constant 0 : index
    %90 = vector.load %arg15[%c7, %c0_24, %c0_25] : memref<8x8x256xf32, #tpu.memory_space<vmem>>, vector<1x8x256xf32>
    %91 = vector.shape_cast %90 : vector<1x8x256xf32> to vector<8x256xf32>
    %92 = vector.shape_cast %89 : vector<8x256xf32> to vector<1x8x256xf32>
    tpu.vector_store %arg15[%c7, %c0_24, %c0_25], %92 {strides = array<i32>} : memref<8x8x256xf32, #tpu.memory_space<vmem>>, vector<1x8x256xf32>,
    %c0_26 = arith.constant 0 : index
    %c0_27 = arith.constant 0 : index
    %93 = vector.load %arg4[%c0_26, %c0_27] : memref<64x256xf32, #tpu.memory_space<vmem>>, vector<64x256xf32>
    %c0_28 = arith.constant 0 : index
    %c0_29 = arith.constant 0 : index
    %c0_30 = arith.constant 0 : index
    %94 = vector.load %arg8[%c0_28, %c0_29, %c0_30] : memref<2x8x64xf32, #tpu.memory_space<vmem>>, vector<1x8x64xf32>
    %95 = vector.shape_cast %94 : vector<1x8x64xf32> to vector<8x64xf32>
    %c0_31 = arith.constant 0 : index
    %c0_32 = arith.constant 0 : index
    %c0_33 = arith.constant 0 : index
    %96 = vector.load %arg9[%c0_31, %c0_32, %c0_33] : memref<2x8x64xf32, #tpu.memory_space<vmem>>, vector<1x8x64xf32>
    %97 = vector.shape_cast %96 : vector<1x8x64xf32> to vector<8x64xf32>
    %cst_34 = arith.constant dense<0.000000e+00> : vector<8x256xf32>
    %98 = tpu.matmul %95, %93, %cst_34 {dimension_numbers = #tpu.dot_dimension_numbers<[1], [0], [0], [1], [0, 0, 1, 1], [], []>} : vector<8x64xf32>, vector<64x256xf32>, vector<8x256xf32> -> vector<8x256xf32>
    %c0_35 = arith.constant 0 : index
    %c0_36 = arith.constant 0 : index
    %c0_37 = arith.constant 0 : index
    %99 = vector.load %arg15[%c0_35, %c0_36, %c0_37] : memref<8x8x256xf32, #tpu.memory_space<vmem>>, vector<1x8x256xf32>
    %100 = vector.shape_cast %99 : vector<1x8x256xf32> to vector<8x256xf32>
    %101 = arith.addf %100, %98 : vector<8x256xf32>
    %102 = vector.extract_strided_slice %101 {offsets = [0, 0], sizes = [8, 192], strides = [1, 1]} : vector<8x256xf32> to vector<8x192xf32>
    %103 = arith.negf %102 : vector<8x192xf32>
    %104 = math.exp %103 : vector<8x192xf32>
    %cst_38 = arith.constant 1.000000e+00 : f32
    %105 = vector.broadcast %cst_38 : f32 to vector<8x192xf32>
    %106 = arith.addf %105, %104 : vector<8x192xf32>
    %107 = arith.divf %105, %106 : vector<8x192xf32>
    %108 = vector.extract_strided_slice %101 {offsets = [0, 192], sizes = [8, 64], strides = [1, 1]} : vector<8x256xf32> to vector<8x64xf32>
    %109 = math.tanh %108 : vector<8x64xf32>
    %110 = vector.extract_strided_slice %107 {offsets = [0, 64], sizes = [8, 64], strides = [1, 1]} : vector<8x192xf32> to vector<8x64xf32>
    %111 = arith.mulf %110, %97 : vector<8x64xf32>
    %112 = vector.extract_strided_slice %107 {offsets = [0, 0], sizes = [8, 64], strides = [1, 1]} : vector<8x192xf32> to vector<8x64xf32>
    %113 = arith.mulf %112, %109 : vector<8x64xf32>
    %114 = arith.addf %111, %113 : vector<8x64xf32>
    %115 = vector.extract_strided_slice %107 {offsets = [0, 128], sizes = [8, 64], strides = [1, 1]} : vector<8x192xf32> to vector<8x64xf32>
    %116 = math.tanh %114 : vector<8x64xf32>
    %117 = arith.mulf %115, %116 : vector<8x64xf32>
    %c0_39 = arith.constant 0 : index
    %c0_40 = arith.constant 0 : index
    %c0_41 = arith.constant 0 : index
    %118 = vector.load %arg16[%c0_39, %c0_40, %c0_41] : memref<8x8x64xf32, #tpu.memory_space<vmem>>, vector<1x8x64xf32>
    %119 = vector.shape_cast %118 : vector<1x8x64xf32> to vector<8x64xf32>
    %120 = vector.shape_cast %117 : vector<8x64xf32> to vector<1x8x64xf32>
    tpu.vector_store %arg16[%c0_39, %c0_40, %c0_41], %120 {strides = array<i32>} : memref<8x8x64xf32, #tpu.memory_space<vmem>>, vector<1x8x64xf32>,
    %cst_42 = arith.constant dense<0.000000e+00> : vector<8x256xf32>
    %121 = tpu.matmul %117, %93, %cst_42 {dimension_numbers = #tpu.dot_dimension_numbers<[1], [0], [0], [1], [0, 0, 1, 1], [], []>} : vector<8x64xf32>, vector<64x256xf32>, vector<8x256xf32> -> vector<8x256xf32>
    %c1_43 = arith.constant 1 : index
    %c0_44 = arith.constant 0 : index
    %c0_45 = arith.constant 0 : index
    %122 = vector.load %arg15[%c1_43, %c0_44, %c0_45] : memref<8x8x256xf32, #tpu.memory_space<vmem>>, vector<1x8x256xf32>
    %123 = vector.shape_cast %122 : vector<1x8x256xf32> to vector<8x256xf32>
    %124 = arith.addf %123, %121 : vector<8x256xf32>
    %125 = vector.extract_strided_slice %124 {offsets = [0, 0], sizes = [8, 192], strides = [1, 1]} : vector<8x256xf32> to vector<8x192xf32>
    %126 = arith.negf %125 : vector<8x192xf32>
    %127 = math.exp %126 : vector<8x192xf32>
    %cst_46 = arith.constant 1.000000e+00 : f32
    %128 = vector.broadcast %cst_46 : f32 to vector<8x192xf32>
    %129 = arith.addf %128, %127 : vector<8x192xf32>
    %130 = arith.divf %128, %129 : vector<8x192xf32>
    %131 = vector.extract_strided_slice %124 {offsets = [0, 192], sizes = [8, 64], strides = [1, 1]} : vector<8x256xf32> to vector<8x64xf32>
    %132 = math.tanh %131 : vector<8x64xf32>
    %133 = vector.extract_strided_slice %130 {offsets = [0, 64], sizes = [8, 64], strides = [1, 1]} : vector<8x192xf32> to vector<8x64xf32>
    %134 = arith.mulf %133, %114 : vector<8x64xf32>
    %135 = vector.extract_strided_slice %130 {offsets = [0, 0], sizes = [8, 64], strides = [1, 1]} : vector<8x192xf32> to vector<8x64xf32>
    %136 = arith.mulf %135, %132 : vector<8x64xf32>
    %137 = arith.addf %134, %136 : vector<8x64xf32>
    %138 = vector.extract_strided_slice %130 {offsets = [0, 128], sizes = [8, 64], strides = [1, 1]} : vector<8x192xf32> to vector<8x64xf32>
    %139 = math.tanh %137 : vector<8x64xf32>
    %140 = arith.mulf %138, %139 : vector<8x64xf32>
    %c1_47 = arith.constant 1 : index
    %c0_48 = arith.constant 0 : index
    %c0_49 = arith.constant 0 : index
    %141 = vector.load %arg16[%c1_47, %c0_48, %c0_49] : memref<8x8x64xf32, #tpu.memory_space<vmem>>, vector<1x8x64xf32>
    %142 = vector.shape_cast %141 : vector<1x8x64xf32> to vector<8x64xf32>
    %143 = vector.shape_cast %140 : vector<8x64xf32> to vector<1x8x64xf32>
    tpu.vector_store %arg16[%c1_47, %c0_48, %c0_49], %143 {strides = array<i32>} : memref<8x8x64xf32, #tpu.memory_space<vmem>>, vector<1x8x64xf32>,
    %cst_50 = arith.constant dense<0.000000e+00> : vector<8x256xf32>
    %144 = tpu.matmul %140, %93, %cst_50 {dimension_numbers = #tpu.dot_dimension_numbers<[1], [0], [0], [1], [0, 0, 1, 1], [], []>} : vector<8x64xf32>, vector<64x256xf32>, vector<8x256xf32> -> vector<8x256xf32>
    %c2_51 = arith.constant 2 : index
    %c0_52 = arith.constant 0 : index
    %c0_53 = arith.constant 0 : index
    %145 = vector.load %arg15[%c2_51, %c0_52, %c0_53] : memref<8x8x256xf32, #tpu.memory_space<vmem>>, vector<1x8x256xf32>
    %146 = vector.shape_cast %145 : vector<1x8x256xf32> to vector<8x256xf32>
    %147 = arith.addf %146, %144 : vector<8x256xf32>
    %148 = vector.extract_strided_slice %147 {offsets = [0, 0], sizes = [8, 192], strides = [1, 1]} : vector<8x256xf32> to vector<8x192xf32>
    %149 = arith.negf %148 : vector<8x192xf32>
    %150 = math.exp %149 : vector<8x192xf32>
    %cst_54 = arith.constant 1.000000e+00 : f32
    %151 = vector.broadcast %cst_54 : f32 to vector<8x192xf32>
    %152 = arith.addf %151, %150 : vector<8x192xf32>
    %153 = arith.divf %151, %152 : vector<8x192xf32>
    %154 = vector.extract_strided_slice %147 {offsets = [0, 192], sizes = [8, 64], strides = [1, 1]} : vector<8x256xf32> to vector<8x64xf32>
    %155 = math.tanh %154 : vector<8x64xf32>
    %156 = vector.extract_strided_slice %153 {offsets = [0, 64], sizes = [8, 64], strides = [1, 1]} : vector<8x192xf32> to vector<8x64xf32>
    %157 = arith.mulf %156, %137 : vector<8x64xf32>
    %158 = vector.extract_strided_slice %153 {offsets = [0, 0], sizes = [8, 64], strides = [1, 1]} : vector<8x192xf32> to vector<8x64xf32>
    %159 = arith.mulf %158, %155 : vector<8x64xf32>
    %160 = arith.addf %157, %159 : vector<8x64xf32>
    %161 = vector.extract_strided_slice %153 {offsets = [0, 128], sizes = [8, 64], strides = [1, 1]} : vector<8x192xf32> to vector<8x64xf32>
    %162 = math.tanh %160 : vector<8x64xf32>
    %163 = arith.mulf %161, %162 : vector<8x64xf32>
    %c2_55 = arith.constant 2 : index
    %c0_56 = arith.constant 0 : index
    %c0_57 = arith.constant 0 : index
    %164 = vector.load %arg16[%c2_55, %c0_56, %c0_57] : memref<8x8x64xf32, #tpu.memory_space<vmem>>, vector<1x8x64xf32>
    %165 = vector.shape_cast %164 : vector<1x8x64xf32> to vector<8x64xf32>
    %166 = vector.shape_cast %163 : vector<8x64xf32> to vector<1x8x64xf32>
    tpu.vector_store %arg16[%c2_55, %c0_56, %c0_57], %166 {strides = array<i32>} : memref<8x8x64xf32, #tpu.memory_space<vmem>>, vector<1x8x64xf32>,
    %cst_58 = arith.constant dense<0.000000e+00> : vector<8x256xf32>
    %167 = tpu.matmul %163, %93, %cst_58 {dimension_numbers = #tpu.dot_dimension_numbers<[1], [0], [0], [1], [0, 0, 1, 1], [], []>} : vector<8x64xf32>, vector<64x256xf32>, vector<8x256xf32> -> vector<8x256xf32>
    %c3_59 = arith.constant 3 : index
    %c0_60 = arith.constant 0 : index
    %c0_61 = arith.constant 0 : index
    %168 = vector.load %arg15[%c3_59, %c0_60, %c0_61] : memref<8x8x256xf32, #tpu.memory_space<vmem>>, vector<1x8x256xf32>
    %169 = vector.shape_cast %168 : vector<1x8x256xf32> to vector<8x256xf32>
    %170 = arith.addf %169, %167 : vector<8x256xf32>
    %171 = vector.extract_strided_slice %170 {offsets = [0, 0], sizes = [8, 192], strides = [1, 1]} : vector<8x256xf32> to vector<8x192xf32>
    %172 = arith.negf %171 : vector<8x192xf32>
    %173 = math.exp %172 : vector<8x192xf32>
    %cst_62 = arith.constant 1.000000e+00 : f32
    %174 = vector.broadcast %cst_62 : f32 to vector<8x192xf32>
    %175 = arith.addf %174, %173 : vector<8x192xf32>
    %176 = arith.divf %174, %175 : vector<8x192xf32>
    %177 = vector.extract_strided_slice %170 {offsets = [0, 192], sizes = [8, 64], strides = [1, 1]} : vector<8x256xf32> to vector<8x64xf32>
    %178 = math.tanh %177 : vector<8x64xf32>
    %179 = vector.extract_strided_slice %176 {offsets = [0, 64], sizes = [8, 64], strides = [1, 1]} : vector<8x192xf32> to vector<8x64xf32>
    %180 = arith.mulf %179, %160 : vector<8x64xf32>
    %181 = vector.extract_strided_slice %176 {offsets = [0, 0], sizes = [8, 64], strides = [1, 1]} : vector<8x192xf32> to vector<8x64xf32>
    %182 = arith.mulf %181, %178 : vector<8x64xf32>
    %183 = arith.addf %180, %182 : vector<8x64xf32>
    %184 = vector.extract_strided_slice %176 {offsets = [0, 128], sizes = [8, 64], strides = [1, 1]} : vector<8x192xf32> to vector<8x64xf32>
    %185 = math.tanh %183 : vector<8x64xf32>
    %186 = arith.mulf %184, %185 : vector<8x64xf32>
    %c3_63 = arith.constant 3 : index
    %c0_64 = arith.constant 0 : index
    %c0_65 = arith.constant 0 : index
    %187 = vector.load %arg16[%c3_63, %c0_64, %c0_65] : memref<8x8x64xf32, #tpu.memory_space<vmem>>, vector<1x8x64xf32>
    %188 = vector.shape_cast %187 : vector<1x8x64xf32> to vector<8x64xf32>
    %189 = vector.shape_cast %186 : vector<8x64xf32> to vector<1x8x64xf32>
    tpu.vector_store %arg16[%c3_63, %c0_64, %c0_65], %189 {strides = array<i32>} : memref<8x8x64xf32, #tpu.memory_space<vmem>>, vector<1x8x64xf32>,
    %cst_66 = arith.constant dense<0.000000e+00> : vector<8x256xf32>
    %190 = tpu.matmul %186, %93, %cst_66 {dimension_numbers = #tpu.dot_dimension_numbers<[1], [0], [0], [1], [0, 0, 1, 1], [], []>} : vector<8x64xf32>, vector<64x256xf32>, vector<8x256xf32> -> vector<8x256xf32>
    %c4_67 = arith.constant 4 : index
    %c0_68 = arith.constant 0 : index
    %c0_69 = arith.constant 0 : index
    %191 = vector.load %arg15[%c4_67, %c0_68, %c0_69] : memref<8x8x256xf32, #tpu.memory_space<vmem>>, vector<1x8x256xf32>
    %192 = vector.shape_cast %191 : vector<1x8x256xf32> to vector<8x256xf32>
    %193 = arith.addf %192, %190 : vector<8x256xf32>
    %194 = vector.extract_strided_slice %193 {offsets = [0, 0], sizes = [8, 192], strides = [1, 1]} : vector<8x256xf32> to vector<8x192xf32>
    %195 = arith.negf %194 : vector<8x192xf32>
    %196 = math.exp %195 : vector<8x192xf32>
    %cst_70 = arith.constant 1.000000e+00 : f32
    %197 = vector.broadcast %cst_70 : f32 to vector<8x192xf32>
    %198 = arith.addf %197, %196 : vector<8x192xf32>
    %199 = arith.divf %197, %198 : vector<8x192xf32>
    %200 = vector.extract_strided_slice %193 {offsets = [0, 192], sizes = [8, 64], strides = [1, 1]} : vector<8x256xf32> to vector<8x64xf32>
    %201 = math.tanh %200 : vector<8x64xf32>
    %202 = vector.extract_strided_slice %199 {offsets = [0, 64], sizes = [8, 64], strides = [1, 1]} : vector<8x192xf32> to vector<8x64xf32>
    %203 = arith.mulf %202, %183 : vector<8x64xf32>
    %204 = vector.extract_strided_slice %199 {offsets = [0, 0], sizes = [8, 64], strides = [1, 1]} : vector<8x192xf32> to vector<8x64xf32>
    %205 = arith.mulf %204, %201 : vector<8x64xf32>
    %206 = arith.addf %203, %205 : vector<8x64xf32>
    %207 = vector.extract_strided_slice %199 {offsets = [0, 128], sizes = [8, 64], strides = [1, 1]} : vector<8x192xf32> to vector<8x64xf32>
    %208 = math.tanh %206 : vector<8x64xf32>
    %209 = arith.mulf %207, %208 : vector<8x64xf32>
    %c4_71 = arith.constant 4 : index
    %c0_72 = arith.constant 0 : index
    %c0_73 = arith.constant 0 : index
    %210 = vector.load %arg16[%c4_71, %c0_72, %c0_73] : memref<8x8x64xf32, #tpu.memory_space<vmem>>, vector<1x8x64xf32>
    %211 = vector.shape_cast %210 : vector<1x8x64xf32> to vector<8x64xf32>
    %212 = vector.shape_cast %209 : vector<8x64xf32> to vector<1x8x64xf32>
    tpu.vector_store %arg16[%c4_71, %c0_72, %c0_73], %212 {strides = array<i32>} : memref<8x8x64xf32, #tpu.memory_space<vmem>>, vector<1x8x64xf32>,
    %cst_74 = arith.constant dense<0.000000e+00> : vector<8x256xf32>
    %213 = tpu.matmul %209, %93, %cst_74 {dimension_numbers = #tpu.dot_dimension_numbers<[1], [0], [0], [1], [0, 0, 1, 1], [], []>} : vector<8x64xf32>, vector<64x256xf32>, vector<8x256xf32> -> vector<8x256xf32>
    %c5_75 = arith.constant 5 : index
    %c0_76 = arith.constant 0 : index
    %c0_77 = arith.constant 0 : index
    %214 = vector.load %arg15[%c5_75, %c0_76, %c0_77] : memref<8x8x256xf32, #tpu.memory_space<vmem>>, vector<1x8x256xf32>
    %215 = vector.shape_cast %214 : vector<1x8x256xf32> to vector<8x256xf32>
    %216 = arith.addf %215, %213 : vector<8x256xf32>
    %217 = vector.extract_strided_slice %216 {offsets = [0, 0], sizes = [8, 192], strides = [1, 1]} : vector<8x256xf32> to vector<8x192xf32>
    %218 = arith.negf %217 : vector<8x192xf32>
    %219 = math.exp %218 : vector<8x192xf32>
    %cst_78 = arith.constant 1.000000e+00 : f32
    %220 = vector.broadcast %cst_78 : f32 to vector<8x192xf32>
    %221 = arith.addf %220, %219 : vector<8x192xf32>
    %222 = arith.divf %220, %221 : vector<8x192xf32>
    %223 = vector.extract_strided_slice %216 {offsets = [0, 192], sizes = [8, 64], strides = [1, 1]} : vector<8x256xf32> to vector<8x64xf32>
    %224 = math.tanh %223 : vector<8x64xf32>
    %225 = vector.extract_strided_slice %222 {offsets = [0, 64], sizes = [8, 64], strides = [1, 1]} : vector<8x192xf32> to vector<8x64xf32>
    %226 = arith.mulf %225, %206 : vector<8x64xf32>
    %227 = vector.extract_strided_slice %222 {offsets = [0, 0], sizes = [8, 64], strides = [1, 1]} : vector<8x192xf32> to vector<8x64xf32>
    %228 = arith.mulf %227, %224 : vector<8x64xf32>
    %229 = arith.addf %226, %228 : vector<8x64xf32>
    %230 = vector.extract_strided_slice %222 {offsets = [0, 128], sizes = [8, 64], strides = [1, 1]} : vector<8x192xf32> to vector<8x64xf32>
    %231 = math.tanh %229 : vector<8x64xf32>
    %232 = arith.mulf %230, %231 : vector<8x64xf32>
    %c5_79 = arith.constant 5 : index
    %c0_80 = arith.constant 0 : index
    %c0_81 = arith.constant 0 : index
    %233 = vector.load %arg16[%c5_79, %c0_80, %c0_81] : memref<8x8x64xf32, #tpu.memory_space<vmem>>, vector<1x8x64xf32>
    %234 = vector.shape_cast %233 : vector<1x8x64xf32> to vector<8x64xf32>
    %235 = vector.shape_cast %232 : vector<8x64xf32> to vector<1x8x64xf32>
    tpu.vector_store %arg16[%c5_79, %c0_80, %c0_81], %235 {strides = array<i32>} : memref<8x8x64xf32, #tpu.memory_space<vmem>>, vector<1x8x64xf32>,
    %cst_82 = arith.constant dense<0.000000e+00> : vector<8x256xf32>
    %236 = tpu.matmul %232, %93, %cst_82 {dimension_numbers = #tpu.dot_dimension_numbers<[1], [0], [0], [1], [0, 0, 1, 1], [], []>} : vector<8x64xf32>, vector<64x256xf32>, vector<8x256xf32> -> vector<8x256xf32>
    %c6_83 = arith.constant 6 : index
    %c0_84 = arith.constant 0 : index
    %c0_85 = arith.constant 0 : index
    %237 = vector.load %arg15[%c6_83, %c0_84, %c0_85] : memref<8x8x256xf32, #tpu.memory_space<vmem>>, vector<1x8x256xf32>
    %238 = vector.shape_cast %237 : vector<1x8x256xf32> to vector<8x256xf32>
    %239 = arith.addf %238, %236 : vector<8x256xf32>
    %240 = vector.extract_strided_slice %239 {offsets = [0, 0], sizes = [8, 192], strides = [1, 1]} : vector<8x256xf32> to vector<8x192xf32>
    %241 = arith.negf %240 : vector<8x192xf32>
    %242 = math.exp %241 : vector<8x192xf32>
    %cst_86 = arith.constant 1.000000e+00 : f32
    %243 = vector.broadcast %cst_86 : f32 to vector<8x192xf32>
    %244 = arith.addf %243, %242 : vector<8x192xf32>
    %245 = arith.divf %243, %244 : vector<8x192xf32>
    %246 = vector.extract_strided_slice %239 {offsets = [0, 192], sizes = [8, 64], strides = [1, 1]} : vector<8x256xf32> to vector<8x64xf32>
    %247 = math.tanh %246 : vector<8x64xf32>
    %248 = vector.extract_strided_slice %245 {offsets = [0, 64], sizes = [8, 64], strides = [1, 1]} : vector<8x192xf32> to vector<8x64xf32>
    %249 = arith.mulf %248, %229 : vector<8x64xf32>
    %250 = vector.extract_strided_slice %245 {offsets = [0, 0], sizes = [8, 64], strides = [1, 1]} : vector<8x192xf32> to vector<8x64xf32>
    %251 = arith.mulf %250, %247 : vector<8x64xf32>
    %252 = arith.addf %249, %251 : vector<8x64xf32>
    %253 = vector.extract_strided_slice %245 {offsets = [0, 128], sizes = [8, 64], strides = [1, 1]} : vector<8x192xf32> to vector<8x64xf32>
    %254 = math.tanh %252 : vector<8x64xf32>
    %255 = arith.mulf %253, %254 : vector<8x64xf32>
    %c6_87 = arith.constant 6 : index
    %c0_88 = arith.constant 0 : index
    %c0_89 = arith.constant 0 : index
    %256 = vector.load %arg16[%c6_87, %c0_88, %c0_89] : memref<8x8x64xf32, #tpu.memory_space<vmem>>, vector<1x8x64xf32>
    %257 = vector.shape_cast %256 : vector<1x8x64xf32> to vector<8x64xf32>
    %258 = vector.shape_cast %255 : vector<8x64xf32> to vector<1x8x64xf32>
    tpu.vector_store %arg16[%c6_87, %c0_88, %c0_89], %258 {strides = array<i32>} : memref<8x8x64xf32, #tpu.memory_space<vmem>>, vector<1x8x64xf32>,
    %cst_90 = arith.constant dense<0.000000e+00> : vector<8x256xf32>
    %259 = tpu.matmul %255, %93, %cst_90 {dimension_numbers = #tpu.dot_dimension_numbers<[1], [0], [0], [1], [0, 0, 1, 1], [], []>} : vector<8x64xf32>, vector<64x256xf32>, vector<8x256xf32> -> vector<8x256xf32>
    %c7_91 = arith.constant 7 : index
    %c0_92 = arith.constant 0 : index
    %c0_93 = arith.constant 0 : index
    %260 = vector.load %arg15[%c7_91, %c0_92, %c0_93] : memref<8x8x256xf32, #tpu.memory_space<vmem>>, vector<1x8x256xf32>
    %261 = vector.shape_cast %260 : vector<1x8x256xf32> to vector<8x256xf32>
    %262 = arith.addf %261, %259 : vector<8x256xf32>
    %263 = vector.extract_strided_slice %262 {offsets = [0, 0], sizes = [8, 192], strides = [1, 1]} : vector<8x256xf32> to vector<8x192xf32>
    %264 = arith.negf %263 : vector<8x192xf32>
    %265 = math.exp %264 : vector<8x192xf32>
    %cst_94 = arith.constant 1.000000e+00 : f32
    %266 = vector.broadcast %cst_94 : f32 to vector<8x192xf32>
    %267 = arith.addf %266, %265 : vector<8x192xf32>
    %268 = arith.divf %266, %267 : vector<8x192xf32>
    %269 = vector.extract_strided_slice %262 {offsets = [0, 192], sizes = [8, 64], strides = [1, 1]} : vector<8x256xf32> to vector<8x64xf32>
    %270 = math.tanh %269 : vector<8x64xf32>
    %271 = vector.extract_strided_slice %268 {offsets = [0, 64], sizes = [8, 64], strides = [1, 1]} : vector<8x192xf32> to vector<8x64xf32>
    %272 = arith.mulf %271, %252 : vector<8x64xf32>
    %273 = vector.extract_strided_slice %268 {offsets = [0, 0], sizes = [8, 64], strides = [1, 1]} : vector<8x192xf32> to vector<8x64xf32>
    %274 = arith.mulf %273, %270 : vector<8x64xf32>
    %275 = arith.addf %272, %274 : vector<8x64xf32>
    %276 = vector.extract_strided_slice %268 {offsets = [0, 128], sizes = [8, 64], strides = [1, 1]} : vector<8x192xf32> to vector<8x64xf32>
    %277 = math.tanh %275 : vector<8x64xf32>
    %278 = arith.mulf %276, %277 : vector<8x64xf32>
    %c7_95 = arith.constant 7 : index
    %c0_96 = arith.constant 0 : index
    %c0_97 = arith.constant 0 : index
    %279 = vector.load %arg16[%c7_95, %c0_96, %c0_97] : memref<8x8x64xf32, #tpu.memory_space<vmem>>, vector<1x8x64xf32>
    %280 = vector.shape_cast %279 : vector<1x8x64xf32> to vector<8x64xf32>
    %281 = vector.shape_cast %278 : vector<8x64xf32> to vector<1x8x64xf32>
    tpu.vector_store %arg16[%c7_95, %c0_96, %c0_97], %281 {strides = array<i32>} : memref<8x8x64xf32, #tpu.memory_space<vmem>>, vector<1x8x64xf32>,
    %c0_98 = arith.constant 0 : index
    %c0_99 = arith.constant 0 : index
    %c0_100 = arith.constant 0 : index
    %282 = vector.load %arg16[%c0_98, %c0_99, %c0_100] : memref<8x8x64xf32, #tpu.memory_space<vmem>>, vector<1x8x64xf32>
    %283 = vector.shape_cast %282 : vector<1x8x64xf32> to vector<8x64xf32>
    %c7_101 = arith.constant 7 : index
    %c0_102 = arith.constant 0 : index
    %c0_103 = arith.constant 0 : index
    %284 = vector.load %arg16[%c7_101, %c0_102, %c0_103] : memref<8x8x64xf32, #tpu.memory_space<vmem>>, vector<1x8x64xf32>
    %285 = vector.shape_cast %284 : vector<1x8x64xf32> to vector<8x64xf32>
    %286 = arith.select %21, %283, %285 : vector<8x64xi1>, vector<8x64xf32>
    %c0_104 = arith.constant 0 : index
    %c0_105 = arith.constant 0 : index
    %c0_106 = arith.constant 0 : index
    %287 = vector.load %arg16[%c0_104, %c0_105, %c0_106] : memref<8x8x64xf32, #tpu.memory_space<vmem>>, vector<1x8x64xf32>
    %288 = vector.shape_cast %287 : vector<1x8x64xf32> to vector<8x64xf32>
    %289 = vector.shape_cast %286 : vector<8x64xf32> to vector<1x8x64xf32>
    tpu.vector_store %arg16[%c0_104, %c0_105, %c0_106], %289 {strides = array<i32>} : memref<8x8x64xf32, #tpu.memory_space<vmem>>, vector<1x8x64xf32>,
    %290 = arith.select %21, %285, %283 : vector<8x64xi1>, vector<8x64xf32>
    %c7_107 = arith.constant 7 : index
    %c0_108 = arith.constant 0 : index
    %c0_109 = arith.constant 0 : index
    %291 = vector.load %arg16[%c7_107, %c0_108, %c0_109] : memref<8x8x64xf32, #tpu.memory_space<vmem>>, vector<1x8x64xf32>
    %292 = vector.shape_cast %291 : vector<1x8x64xf32> to vector<8x64xf32>
    %293 = vector.shape_cast %290 : vector<8x64xf32> to vector<1x8x64xf32>
    tpu.vector_store %arg16[%c7_107, %c0_108, %c0_109], %293 {strides = array<i32>} : memref<8x8x64xf32, #tpu.memory_space<vmem>>, vector<1x8x64xf32>,
    %c1_110 = arith.constant 1 : index
    %c0_111 = arith.constant 0 : index
    %c0_112 = arith.constant 0 : index
    %294 = vector.load %arg16[%c1_110, %c0_111, %c0_112] : memref<8x8x64xf32, #tpu.memory_space<vmem>>, vector<1x8x64xf32>
    %295 = vector.shape_cast %294 : vector<1x8x64xf32> to vector<8x64xf32>
    %c6_113 = arith.constant 6 : index
    %c0_114 = arith.constant 0 : index
    %c0_115 = arith.constant 0 : index
    %296 = vector.load %arg16[%c6_113, %c0_114, %c0_115] : memref<8x8x64xf32, #tpu.memory_space<vmem>>, vector<1x8x64xf32>
    %297 = vector.shape_cast %296 : vector<1x8x64xf32> to vector<8x64xf32>
    %298 = arith.select %21, %295, %297 : vector<8x64xi1>, vector<8x64xf32>
    %c1_116 = arith.constant 1 : index
    %c0_117 = arith.constant 0 : index
    %c0_118 = arith.constant 0 : index
    %299 = vector.load %arg16[%c1_116, %c0_117, %c0_118] : memref<8x8x64xf32, #tpu.memory_space<vmem>>, vector<1x8x64xf32>
    %300 = vector.shape_cast %299 : vector<1x8x64xf32> to vector<8x64xf32>
    %301 = vector.shape_cast %298 : vector<8x64xf32> to vector<1x8x64xf32>
    tpu.vector_store %arg16[%c1_116, %c0_117, %c0_118], %301 {strides = array<i32>} : memref<8x8x64xf32, #tpu.memory_space<vmem>>, vector<1x8x64xf32>,
    %302 = arith.select %21, %297, %295 : vector<8x64xi1>, vector<8x64xf32>
    %c6_119 = arith.constant 6 : index
    %c0_120 = arith.constant 0 : index
    %c0_121 = arith.constant 0 : index
    %303 = vector.load %arg16[%c6_119, %c0_120, %c0_121] : memref<8x8x64xf32, #tpu.memory_space<vmem>>, vector<1x8x64xf32>
    %304 = vector.shape_cast %303 : vector<1x8x64xf32> to vector<8x64xf32>
    %305 = vector.shape_cast %302 : vector<8x64xf32> to vector<1x8x64xf32>
    tpu.vector_store %arg16[%c6_119, %c0_120, %c0_121], %305 {strides = array<i32>} : memref<8x8x64xf32, #tpu.memory_space<vmem>>, vector<1x8x64xf32>,
    %c2_122 = arith.constant 2 : index
    %c0_123 = arith.constant 0 : index
    %c0_124 = arith.constant 0 : index
    %306 = vector.load %arg16[%c2_122, %c0_123, %c0_124] : memref<8x8x64xf32, #tpu.memory_space<vmem>>, vector<1x8x64xf32>
    %307 = vector.shape_cast %306 : vector<1x8x64xf32> to vector<8x64xf32>
    %c5_125 = arith.constant 5 : index
    %c0_126 = arith.constant 0 : index
    %c0_127 = arith.constant 0 : index
    %308 = vector.load %arg16[%c5_125, %c0_126, %c0_127] : memref<8x8x64xf32, #tpu.memory_space<vmem>>, vector<1x8x64xf32>
    %309 = vector.shape_cast %308 : vector<1x8x64xf32> to vector<8x64xf32>
    %310 = arith.select %21, %307, %309 : vector<8x64xi1>, vector<8x64xf32>
    %c2_128 = arith.constant 2 : index
    %c0_129 = arith.constant 0 : index
    %c0_130 = arith.constant 0 : index
    %311 = vector.load %arg16[%c2_128, %c0_129, %c0_130] : memref<8x8x64xf32, #tpu.memory_space<vmem>>, vector<1x8x64xf32>
    %312 = vector.shape_cast %311 : vector<1x8x64xf32> to vector<8x64xf32>
    %313 = vector.shape_cast %310 : vector<8x64xf32> to vector<1x8x64xf32>
    tpu.vector_store %arg16[%c2_128, %c0_129, %c0_130], %313 {strides = array<i32>} : memref<8x8x64xf32, #tpu.memory_space<vmem>>, vector<1x8x64xf32>,
    %314 = arith.select %21, %309, %307 : vector<8x64xi1>, vector<8x64xf32>
    %c5_131 = arith.constant 5 : index
    %c0_132 = arith.constant 0 : index
    %c0_133 = arith.constant 0 : index
    %315 = vector.load %arg16[%c5_131, %c0_132, %c0_133] : memref<8x8x64xf32, #tpu.memory_space<vmem>>, vector<1x8x64xf32>
    %316 = vector.shape_cast %315 : vector<1x8x64xf32> to vector<8x64xf32>
    %317 = vector.shape_cast %314 : vector<8x64xf32> to vector<1x8x64xf32>
    tpu.vector_store %arg16[%c5_131, %c0_132, %c0_133], %317 {strides = array<i32>} : memref<8x8x64xf32, #tpu.memory_space<vmem>>, vector<1x8x64xf32>,
    %c3_134 = arith.constant 3 : index
    %c0_135 = arith.constant 0 : index
    %c0_136 = arith.constant 0 : index
    %318 = vector.load %arg16[%c3_134, %c0_135, %c0_136] : memref<8x8x64xf32, #tpu.memory_space<vmem>>, vector<1x8x64xf32>
    %319 = vector.shape_cast %318 : vector<1x8x64xf32> to vector<8x64xf32>
    %c4_137 = arith.constant 4 : index
    %c0_138 = arith.constant 0 : index
    %c0_139 = arith.constant 0 : index
    %320 = vector.load %arg16[%c4_137, %c0_138, %c0_139] : memref<8x8x64xf32, #tpu.memory_space<vmem>>, vector<1x8x64xf32>
    %321 = vector.shape_cast %320 : vector<1x8x64xf32> to vector<8x64xf32>
    %322 = arith.select %21, %319, %321 : vector<8x64xi1>, vector<8x64xf32>
    %c3_140 = arith.constant 3 : index
    %c0_141 = arith.constant 0 : index
    %c0_142 = arith.constant 0 : index
    %323 = vector.load %arg16[%c3_140, %c0_141, %c0_142] : memref<8x8x64xf32, #tpu.memory_space<vmem>>, vector<1x8x64xf32>
    %324 = vector.shape_cast %323 : vector<1x8x64xf32> to vector<8x64xf32>
    %325 = vector.shape_cast %322 : vector<8x64xf32> to vector<1x8x64xf32>
    tpu.vector_store %arg16[%c3_140, %c0_141, %c0_142], %325 {strides = array<i32>} : memref<8x8x64xf32, #tpu.memory_space<vmem>>, vector<1x8x64xf32>,
    %326 = arith.select %21, %321, %319 : vector<8x64xi1>, vector<8x64xf32>
    %c4_143 = arith.constant 4 : index
    %c0_144 = arith.constant 0 : index
    %c0_145 = arith.constant 0 : index
    %327 = vector.load %arg16[%c4_143, %c0_144, %c0_145] : memref<8x8x64xf32, #tpu.memory_space<vmem>>, vector<1x8x64xf32>
    %328 = vector.shape_cast %327 : vector<1x8x64xf32> to vector<8x64xf32>
    %329 = vector.shape_cast %326 : vector<8x64xf32> to vector<1x8x64xf32>
    tpu.vector_store %arg16[%c4_143, %c0_144, %c0_145], %329 {strides = array<i32>} : memref<8x8x64xf32, #tpu.memory_space<vmem>>, vector<1x8x64xf32>,
    %c0_146 = arith.constant 0 : index
    %c0_147 = arith.constant 0 : index
    %c0_148 = arith.constant 0 : index
    %330 = vector.load %arg16[%c0_146, %c0_147, %c0_148] : memref<8x8x64xf32, #tpu.memory_space<vmem>>, vector<8x8x64xf32>
    %331 = vector.shape_cast %330 : vector<8x8x64xf32> to vector<64x64xf32>
    %c0_149 = arith.constant 0 : index
    %c0_150 = arith.constant 0 : index
    %332 = vector.load %arg5[%c0_149, %c0_150] : memref<64x256xf32, #tpu.memory_space<vmem>>, vector<64x256xf32>
    %cst_151 = arith.constant dense<0.000000e+00> : vector<64x256xf32>
    %333 = tpu.matmul %331, %332, %cst_151 {dimension_numbers = #tpu.dot_dimension_numbers<[1], [0], [0], [1], [0, 0, 1, 1], [], []>} : vector<64x64xf32>, vector<64x256xf32>, vector<64x256xf32> -> vector<64x256xf32>
    %c0_152 = arith.constant 0 : index
    %c0_153 = arith.constant 0 : index
    %334 = vector.load %arg6[%c0_152, %c0_153] : memref<1x256xf32, #tpu.memory_space<vmem>>, vector<1x256xf32>
    %335 = vector.broadcast %334 : vector<1x256xf32> to vector<64x256xf32>
    %336 = arith.addf %333, %335 : vector<64x256xf32>
    %337 = vector.shape_cast %336 : vector<64x256xf32> to vector<8x8x256xf32>
    %338 = vector.extract_strided_slice %337 {offsets = [0, 0, 0], sizes = [1, 8, 256], strides = [1, 1, 1]} : vector<8x8x256xf32> to vector<1x8x256xf32>
    %339 = vector.shape_cast %338 : vector<1x8x256xf32> to vector<8x256xf32>
    %340 = vector.extract_strided_slice %337 {offsets = [7, 0, 0], sizes = [1, 8, 256], strides = [1, 1, 1]} : vector<8x8x256xf32> to vector<1x8x256xf32>
    %341 = vector.shape_cast %340 : vector<1x8x256xf32> to vector<8x256xf32>
    %342 = arith.select %18, %339, %341 : vector<8x256xi1>, vector<8x256xf32>
    %c0_154 = arith.constant 0 : index
    %c0_155 = arith.constant 0 : index
    %c0_156 = arith.constant 0 : index
    %343 = vector.load %arg15[%c0_154, %c0_155, %c0_156] : memref<8x8x256xf32, #tpu.memory_space<vmem>>, vector<1x8x256xf32>
    %344 = vector.shape_cast %343 : vector<1x8x256xf32> to vector<8x256xf32>
    %345 = vector.shape_cast %342 : vector<8x256xf32> to vector<1x8x256xf32>
    tpu.vector_store %arg15[%c0_154, %c0_155, %c0_156], %345 {strides = array<i32>} : memref<8x8x256xf32, #tpu.memory_space<vmem>>, vector<1x8x256xf32>,
    %346 = vector.extract_strided_slice %337 {offsets = [1, 0, 0], sizes = [1, 8, 256], strides = [1, 1, 1]} : vector<8x8x256xf32> to vector<1x8x256xf32>
    %347 = vector.shape_cast %346 : vector<1x8x256xf32> to vector<8x256xf32>
    %348 = vector.extract_strided_slice %337 {offsets = [6, 0, 0], sizes = [1, 8, 256], strides = [1, 1, 1]} : vector<8x8x256xf32> to vector<1x8x256xf32>
    %349 = vector.shape_cast %348 : vector<1x8x256xf32> to vector<8x256xf32>
    %350 = arith.select %18, %347, %349 : vector<8x256xi1>, vector<8x256xf32>
    %c1_157 = arith.constant 1 : index
    %c0_158 = arith.constant 0 : index
    %c0_159 = arith.constant 0 : index
    %351 = vector.load %arg15[%c1_157, %c0_158, %c0_159] : memref<8x8x256xf32, #tpu.memory_space<vmem>>, vector<1x8x256xf32>
    %352 = vector.shape_cast %351 : vector<1x8x256xf32> to vector<8x256xf32>
    %353 = vector.shape_cast %350 : vector<8x256xf32> to vector<1x8x256xf32>
    tpu.vector_store %arg15[%c1_157, %c0_158, %c0_159], %353 {strides = array<i32>} : memref<8x8x256xf32, #tpu.memory_space<vmem>>, vector<1x8x256xf32>,
    %354 = vector.extract_strided_slice %337 {offsets = [2, 0, 0], sizes = [1, 8, 256], strides = [1, 1, 1]} : vector<8x8x256xf32> to vector<1x8x256xf32>
    %355 = vector.shape_cast %354 : vector<1x8x256xf32> to vector<8x256xf32>
    %356 = vector.extract_strided_slice %337 {offsets = [5, 0, 0], sizes = [1, 8, 256], strides = [1, 1, 1]} : vector<8x8x256xf32> to vector<1x8x256xf32>
    %357 = vector.shape_cast %356 : vector<1x8x256xf32> to vector<8x256xf32>
    %358 = arith.select %18, %355, %357 : vector<8x256xi1>, vector<8x256xf32>
    %c2_160 = arith.constant 2 : index
    %c0_161 = arith.constant 0 : index
    %c0_162 = arith.constant 0 : index
    %359 = vector.load %arg15[%c2_160, %c0_161, %c0_162] : memref<8x8x256xf32, #tpu.memory_space<vmem>>, vector<1x8x256xf32>
    %360 = vector.shape_cast %359 : vector<1x8x256xf32> to vector<8x256xf32>
    %361 = vector.shape_cast %358 : vector<8x256xf32> to vector<1x8x256xf32>
    tpu.vector_store %arg15[%c2_160, %c0_161, %c0_162], %361 {strides = array<i32>} : memref<8x8x256xf32, #tpu.memory_space<vmem>>, vector<1x8x256xf32>,
    %362 = vector.extract_strided_slice %337 {offsets = [3, 0, 0], sizes = [1, 8, 256], strides = [1, 1, 1]} : vector<8x8x256xf32> to vector<1x8x256xf32>
    %363 = vector.shape_cast %362 : vector<1x8x256xf32> to vector<8x256xf32>
    %364 = vector.extract_strided_slice %337 {offsets = [4, 0, 0], sizes = [1, 8, 256], strides = [1, 1, 1]} : vector<8x8x256xf32> to vector<1x8x256xf32>
    %365 = vector.shape_cast %364 : vector<1x8x256xf32> to vector<8x256xf32>
    %366 = arith.select %18, %363, %365 : vector<8x256xi1>, vector<8x256xf32>
    %c3_163 = arith.constant 3 : index
    %c0_164 = arith.constant 0 : index
    %c0_165 = arith.constant 0 : index
    %367 = vector.load %arg15[%c3_163, %c0_164, %c0_165] : memref<8x8x256xf32, #tpu.memory_space<vmem>>, vector<1x8x256xf32>
    %368 = vector.shape_cast %367 : vector<1x8x256xf32> to vector<8x256xf32>
    %369 = vector.shape_cast %366 : vector<8x256xf32> to vector<1x8x256xf32>
    tpu.vector_store %arg15[%c3_163, %c0_164, %c0_165], %369 {strides = array<i32>} : memref<8x8x256xf32, #tpu.memory_space<vmem>>, vector<1x8x256xf32>,
    %370 = vector.extract_strided_slice %337 {offsets = [4, 0, 0], sizes = [1, 8, 256], strides = [1, 1, 1]} : vector<8x8x256xf32> to vector<1x8x256xf32>
    %371 = vector.shape_cast %370 : vector<1x8x256xf32> to vector<8x256xf32>
    %372 = vector.extract_strided_slice %337 {offsets = [3, 0, 0], sizes = [1, 8, 256], strides = [1, 1, 1]} : vector<8x8x256xf32> to vector<1x8x256xf32>
    %373 = vector.shape_cast %372 : vector<1x8x256xf32> to vector<8x256xf32>
    %374 = arith.select %18, %371, %373 : vector<8x256xi1>, vector<8x256xf32>
    %c4_166 = arith.constant 4 : index
    %c0_167 = arith.constant 0 : index
    %c0_168 = arith.constant 0 : index
    %375 = vector.load %arg15[%c4_166, %c0_167, %c0_168] : memref<8x8x256xf32, #tpu.memory_space<vmem>>, vector<1x8x256xf32>
    %376 = vector.shape_cast %375 : vector<1x8x256xf32> to vector<8x256xf32>
    %377 = vector.shape_cast %374 : vector<8x256xf32> to vector<1x8x256xf32>
    tpu.vector_store %arg15[%c4_166, %c0_167, %c0_168], %377 {strides = array<i32>} : memref<8x8x256xf32, #tpu.memory_space<vmem>>, vector<1x8x256xf32>,
    %378 = vector.extract_strided_slice %337 {offsets = [5, 0, 0], sizes = [1, 8, 256], strides = [1, 1, 1]} : vector<8x8x256xf32> to vector<1x8x256xf32>
    %379 = vector.shape_cast %378 : vector<1x8x256xf32> to vector<8x256xf32>
    %380 = vector.extract_strided_slice %337 {offsets = [2, 0, 0], sizes = [1, 8, 256], strides = [1, 1, 1]} : vector<8x8x256xf32> to vector<1x8x256xf32>
    %381 = vector.shape_cast %380 : vector<1x8x256xf32> to vector<8x256xf32>
    %382 = arith.select %18, %379, %381 : vector<8x256xi1>, vector<8x256xf32>
    %c5_169 = arith.constant 5 : index
    %c0_170 = arith.constant 0 : index
    %c0_171 = arith.constant 0 : index
    %383 = vector.load %arg15[%c5_169, %c0_170, %c0_171] : memref<8x8x256xf32, #tpu.memory_space<vmem>>, vector<1x8x256xf32>
    %384 = vector.shape_cast %383 : vector<1x8x256xf32> to vector<8x256xf32>
    %385 = vector.shape_cast %382 : vector<8x256xf32> to vector<1x8x256xf32>
    tpu.vector_store %arg15[%c5_169, %c0_170, %c0_171], %385 {strides = array<i32>} : memref<8x8x256xf32, #tpu.memory_space<vmem>>, vector<1x8x256xf32>,
    %386 = vector.extract_strided_slice %337 {offsets = [6, 0, 0], sizes = [1, 8, 256], strides = [1, 1, 1]} : vector<8x8x256xf32> to vector<1x8x256xf32>
    %387 = vector.shape_cast %386 : vector<1x8x256xf32> to vector<8x256xf32>
    %388 = vector.extract_strided_slice %337 {offsets = [1, 0, 0], sizes = [1, 8, 256], strides = [1, 1, 1]} : vector<8x8x256xf32> to vector<1x8x256xf32>
    %389 = vector.shape_cast %388 : vector<1x8x256xf32> to vector<8x256xf32>
    %390 = arith.select %18, %387, %389 : vector<8x256xi1>, vector<8x256xf32>
    %c6_172 = arith.constant 6 : index
    %c0_173 = arith.constant 0 : index
    %c0_174 = arith.constant 0 : index
    %391 = vector.load %arg15[%c6_172, %c0_173, %c0_174] : memref<8x8x256xf32, #tpu.memory_space<vmem>>, vector<1x8x256xf32>
    %392 = vector.shape_cast %391 : vector<1x8x256xf32> to vector<8x256xf32>
    %393 = vector.shape_cast %390 : vector<8x256xf32> to vector<1x8x256xf32>
    tpu.vector_store %arg15[%c6_172, %c0_173, %c0_174], %393 {strides = array<i32>} : memref<8x8x256xf32, #tpu.memory_space<vmem>>, vector<1x8x256xf32>,
    %394 = vector.extract_strided_slice %337 {offsets = [7, 0, 0], sizes = [1, 8, 256], strides = [1, 1, 1]} : vector<8x8x256xf32> to vector<1x8x256xf32>
    %395 = vector.shape_cast %394 : vector<1x8x256xf32> to vector<8x256xf32>
    %396 = vector.extract_strided_slice %337 {offsets = [0, 0, 0], sizes = [1, 8, 256], strides = [1, 1, 1]} : vector<8x8x256xf32> to vector<1x8x256xf32>
    %397 = vector.shape_cast %396 : vector<1x8x256xf32> to vector<8x256xf32>
    %398 = arith.select %18, %395, %397 : vector<8x256xi1>, vector<8x256xf32>
    %c7_175 = arith.constant 7 : index
    %c0_176 = arith.constant 0 : index
    %c0_177 = arith.constant 0 : index
    %399 = vector.load %arg15[%c7_175, %c0_176, %c0_177] : memref<8x8x256xf32, #tpu.memory_space<vmem>>, vector<1x8x256xf32>
    %400 = vector.shape_cast %399 : vector<1x8x256xf32> to vector<8x256xf32>
    %401 = vector.shape_cast %398 : vector<8x256xf32> to vector<1x8x256xf32>
    tpu.vector_store %arg15[%c7_175, %c0_176, %c0_177], %401 {strides = array<i32>} : memref<8x8x256xf32, #tpu.memory_space<vmem>>, vector<1x8x256xf32>,
    %c0_178 = arith.constant 0 : index
    %c0_179 = arith.constant 0 : index
    %402 = vector.load %arg7[%c0_178, %c0_179] : memref<64x256xf32, #tpu.memory_space<vmem>>, vector<64x256xf32>
    %c1_180 = arith.constant 1 : index
    %c0_181 = arith.constant 0 : index
    %c0_182 = arith.constant 0 : index
    %403 = vector.load %arg8[%c1_180, %c0_181, %c0_182] : memref<2x8x64xf32, #tpu.memory_space<vmem>>, vector<1x8x64xf32>
    %404 = vector.shape_cast %403 : vector<1x8x64xf32> to vector<8x64xf32>
    %c1_183 = arith.constant 1 : index
    %c0_184 = arith.constant 0 : index
    %c0_185 = arith.constant 0 : index
    %405 = vector.load %arg9[%c1_183, %c0_184, %c0_185] : memref<2x8x64xf32, #tpu.memory_space<vmem>>, vector<1x8x64xf32>
    %406 = vector.shape_cast %405 : vector<1x8x64xf32> to vector<8x64xf32>
    %cst_186 = arith.constant dense<0.000000e+00> : vector<8x256xf32>
    %407 = tpu.matmul %404, %402, %cst_186 {dimension_numbers = #tpu.dot_dimension_numbers<[1], [0], [0], [1], [0, 0, 1, 1], [], []>} : vector<8x64xf32>, vector<64x256xf32>, vector<8x256xf32> -> vector<8x256xf32>
    %c0_187 = arith.constant 0 : index
    %c0_188 = arith.constant 0 : index
    %c0_189 = arith.constant 0 : index
    %408 = vector.load %arg15[%c0_187, %c0_188, %c0_189] : memref<8x8x256xf32, #tpu.memory_space<vmem>>, vector<1x8x256xf32>
    %409 = vector.shape_cast %408 : vector<1x8x256xf32> to vector<8x256xf32>
    %410 = arith.addf %409, %407 : vector<8x256xf32>
    %411 = vector.extract_strided_slice %410 {offsets = [0, 0], sizes = [8, 192], strides = [1, 1]} : vector<8x256xf32> to vector<8x192xf32>
    %412 = arith.negf %411 : vector<8x192xf32>
    %413 = math.exp %412 : vector<8x192xf32>
    %cst_190 = arith.constant 1.000000e+00 : f32
    %414 = vector.broadcast %cst_190 : f32 to vector<8x192xf32>
    %415 = arith.addf %414, %413 : vector<8x192xf32>
    %416 = arith.divf %414, %415 : vector<8x192xf32>
    %417 = vector.extract_strided_slice %410 {offsets = [0, 192], sizes = [8, 64], strides = [1, 1]} : vector<8x256xf32> to vector<8x64xf32>
    %418 = math.tanh %417 : vector<8x64xf32>
    %419 = vector.extract_strided_slice %416 {offsets = [0, 64], sizes = [8, 64], strides = [1, 1]} : vector<8x192xf32> to vector<8x64xf32>
    %420 = arith.mulf %419, %406 : vector<8x64xf32>
    %421 = vector.extract_strided_slice %416 {offsets = [0, 0], sizes = [8, 64], strides = [1, 1]} : vector<8x192xf32> to vector<8x64xf32>
    %422 = arith.mulf %421, %418 : vector<8x64xf32>
    %423 = arith.addf %420, %422 : vector<8x64xf32>
    %424 = vector.extract_strided_slice %416 {offsets = [0, 128], sizes = [8, 64], strides = [1, 1]} : vector<8x192xf32> to vector<8x64xf32>
    %425 = math.tanh %423 : vector<8x64xf32>
    %426 = arith.mulf %424, %425 : vector<8x64xf32>
    %c0_191 = arith.constant 0 : index
    %c0_192 = arith.constant 0 : index
    %c0_193 = arith.constant 0 : index
    %427 = vector.load %arg16[%c0_191, %c0_192, %c0_193] : memref<8x8x64xf32, #tpu.memory_space<vmem>>, vector<1x8x64xf32>
    %428 = vector.shape_cast %427 : vector<1x8x64xf32> to vector<8x64xf32>
    %429 = vector.shape_cast %426 : vector<8x64xf32> to vector<1x8x64xf32>
    tpu.vector_store %arg16[%c0_191, %c0_192, %c0_193], %429 {strides = array<i32>} : memref<8x8x64xf32, #tpu.memory_space<vmem>>, vector<1x8x64xf32>,
    %cst_194 = arith.constant dense<0.000000e+00> : vector<8x256xf32>
    %430 = tpu.matmul %426, %402, %cst_194 {dimension_numbers = #tpu.dot_dimension_numbers<[1], [0], [0], [1], [0, 0, 1, 1], [], []>} : vector<8x64xf32>, vector<64x256xf32>, vector<8x256xf32> -> vector<8x256xf32>
    %c1_195 = arith.constant 1 : index
    %c0_196 = arith.constant 0 : index
    %c0_197 = arith.constant 0 : index
    %431 = vector.load %arg15[%c1_195, %c0_196, %c0_197] : memref<8x8x256xf32, #tpu.memory_space<vmem>>, vector<1x8x256xf32>
    %432 = vector.shape_cast %431 : vector<1x8x256xf32> to vector<8x256xf32>
    %433 = arith.addf %432, %430 : vector<8x256xf32>
    %434 = vector.extract_strided_slice %433 {offsets = [0, 0], sizes = [8, 192], strides = [1, 1]} : vector<8x256xf32> to vector<8x192xf32>
    %435 = arith.negf %434 : vector<8x192xf32>
    %436 = math.exp %435 : vector<8x192xf32>
    %cst_198 = arith.constant 1.000000e+00 : f32
    %437 = vector.broadcast %cst_198 : f32 to vector<8x192xf32>
    %438 = arith.addf %437, %436 : vector<8x192xf32>
    %439 = arith.divf %437, %438 : vector<8x192xf32>
    %440 = vector.extract_strided_slice %433 {offsets = [0, 192], sizes = [8, 64], strides = [1, 1]} : vector<8x256xf32> to vector<8x64xf32>
    %441 = math.tanh %440 : vector<8x64xf32>
    %442 = vector.extract_strided_slice %439 {offsets = [0, 64], sizes = [8, 64], strides = [1, 1]} : vector<8x192xf32> to vector<8x64xf32>
    %443 = arith.mulf %442, %423 : vector<8x64xf32>
    %444 = vector.extract_strided_slice %439 {offsets = [0, 0], sizes = [8, 64], strides = [1, 1]} : vector<8x192xf32> to vector<8x64xf32>
    %445 = arith.mulf %444, %441 : vector<8x64xf32>
    %446 = arith.addf %443, %445 : vector<8x64xf32>
    %447 = vector.extract_strided_slice %439 {offsets = [0, 128], sizes = [8, 64], strides = [1, 1]} : vector<8x192xf32> to vector<8x64xf32>
    %448 = math.tanh %446 : vector<8x64xf32>
    %449 = arith.mulf %447, %448 : vector<8x64xf32>
    %c1_199 = arith.constant 1 : index
    %c0_200 = arith.constant 0 : index
    %c0_201 = arith.constant 0 : index
    %450 = vector.load %arg16[%c1_199, %c0_200, %c0_201] : memref<8x8x64xf32, #tpu.memory_space<vmem>>, vector<1x8x64xf32>
    %451 = vector.shape_cast %450 : vector<1x8x64xf32> to vector<8x64xf32>
    %452 = vector.shape_cast %449 : vector<8x64xf32> to vector<1x8x64xf32>
    tpu.vector_store %arg16[%c1_199, %c0_200, %c0_201], %452 {strides = array<i32>} : memref<8x8x64xf32, #tpu.memory_space<vmem>>, vector<1x8x64xf32>,
    %cst_202 = arith.constant dense<0.000000e+00> : vector<8x256xf32>
    %453 = tpu.matmul %449, %402, %cst_202 {dimension_numbers = #tpu.dot_dimension_numbers<[1], [0], [0], [1], [0, 0, 1, 1], [], []>} : vector<8x64xf32>, vector<64x256xf32>, vector<8x256xf32> -> vector<8x256xf32>
    %c2_203 = arith.constant 2 : index
    %c0_204 = arith.constant 0 : index
    %c0_205 = arith.constant 0 : index
    %454 = vector.load %arg15[%c2_203, %c0_204, %c0_205] : memref<8x8x256xf32, #tpu.memory_space<vmem>>, vector<1x8x256xf32>
    %455 = vector.shape_cast %454 : vector<1x8x256xf32> to vector<8x256xf32>
    %456 = arith.addf %455, %453 : vector<8x256xf32>
    %457 = vector.extract_strided_slice %456 {offsets = [0, 0], sizes = [8, 192], strides = [1, 1]} : vector<8x256xf32> to vector<8x192xf32>
    %458 = arith.negf %457 : vector<8x192xf32>
    %459 = math.exp %458 : vector<8x192xf32>
    %cst_206 = arith.constant 1.000000e+00 : f32
    %460 = vector.broadcast %cst_206 : f32 to vector<8x192xf32>
    %461 = arith.addf %460, %459 : vector<8x192xf32>
    %462 = arith.divf %460, %461 : vector<8x192xf32>
    %463 = vector.extract_strided_slice %456 {offsets = [0, 192], sizes = [8, 64], strides = [1, 1]} : vector<8x256xf32> to vector<8x64xf32>
    %464 = math.tanh %463 : vector<8x64xf32>
    %465 = vector.extract_strided_slice %462 {offsets = [0, 64], sizes = [8, 64], strides = [1, 1]} : vector<8x192xf32> to vector<8x64xf32>
    %466 = arith.mulf %465, %446 : vector<8x64xf32>
    %467 = vector.extract_strided_slice %462 {offsets = [0, 0], sizes = [8, 64], strides = [1, 1]} : vector<8x192xf32> to vector<8x64xf32>
    %468 = arith.mulf %467, %464 : vector<8x64xf32>
    %469 = arith.addf %466, %468 : vector<8x64xf32>
    %470 = vector.extract_strided_slice %462 {offsets = [0, 128], sizes = [8, 64], strides = [1, 1]} : vector<8x192xf32> to vector<8x64xf32>
    %471 = math.tanh %469 : vector<8x64xf32>
    %472 = arith.mulf %470, %471 : vector<8x64xf32>
    %c2_207 = arith.constant 2 : index
    %c0_208 = arith.constant 0 : index
    %c0_209 = arith.constant 0 : index
    %473 = vector.load %arg16[%c2_207, %c0_208, %c0_209] : memref<8x8x64xf32, #tpu.memory_space<vmem>>, vector<1x8x64xf32>
    %474 = vector.shape_cast %473 : vector<1x8x64xf32> to vector<8x64xf32>
    %475 = vector.shape_cast %472 : vector<8x64xf32> to vector<1x8x64xf32>
    tpu.vector_store %arg16[%c2_207, %c0_208, %c0_209], %475 {strides = array<i32>} : memref<8x8x64xf32, #tpu.memory_space<vmem>>, vector<1x8x64xf32>,
    %cst_210 = arith.constant dense<0.000000e+00> : vector<8x256xf32>
    %476 = tpu.matmul %472, %402, %cst_210 {dimension_numbers = #tpu.dot_dimension_numbers<[1], [0], [0], [1], [0, 0, 1, 1], [], []>} : vector<8x64xf32>, vector<64x256xf32>, vector<8x256xf32> -> vector<8x256xf32>
    %c3_211 = arith.constant 3 : index
    %c0_212 = arith.constant 0 : index
    %c0_213 = arith.constant 0 : index
    %477 = vector.load %arg15[%c3_211, %c0_212, %c0_213] : memref<8x8x256xf32, #tpu.memory_space<vmem>>, vector<1x8x256xf32>
    %478 = vector.shape_cast %477 : vector<1x8x256xf32> to vector<8x256xf32>
    %479 = arith.addf %478, %476 : vector<8x256xf32>
    %480 = vector.extract_strided_slice %479 {offsets = [0, 0], sizes = [8, 192], strides = [1, 1]} : vector<8x256xf32> to vector<8x192xf32>
    %481 = arith.negf %480 : vector<8x192xf32>
    %482 = math.exp %481 : vector<8x192xf32>
    %cst_214 = arith.constant 1.000000e+00 : f32
    %483 = vector.broadcast %cst_214 : f32 to vector<8x192xf32>
    %484 = arith.addf %483, %482 : vector<8x192xf32>
    %485 = arith.divf %483, %484 : vector<8x192xf32>
    %486 = vector.extract_strided_slice %479 {offsets = [0, 192], sizes = [8, 64], strides = [1, 1]} : vector<8x256xf32> to vector<8x64xf32>
    %487 = math.tanh %486 : vector<8x64xf32>
    %488 = vector.extract_strided_slice %485 {offsets = [0, 64], sizes = [8, 64], strides = [1, 1]} : vector<8x192xf32> to vector<8x64xf32>
    %489 = arith.mulf %488, %469 : vector<8x64xf32>
    %490 = vector.extract_strided_slice %485 {offsets = [0, 0], sizes = [8, 64], strides = [1, 1]} : vector<8x192xf32> to vector<8x64xf32>
    %491 = arith.mulf %490, %487 : vector<8x64xf32>
    %492 = arith.addf %489, %491 : vector<8x64xf32>
    %493 = vector.extract_strided_slice %485 {offsets = [0, 128], sizes = [8, 64], strides = [1, 1]} : vector<8x192xf32> to vector<8x64xf32>
    %494 = math.tanh %492 : vector<8x64xf32>
    %495 = arith.mulf %493, %494 : vector<8x64xf32>
    %c3_215 = arith.constant 3 : index
    %c0_216 = arith.constant 0 : index
    %c0_217 = arith.constant 0 : index
    %496 = vector.load %arg16[%c3_215, %c0_216, %c0_217] : memref<8x8x64xf32, #tpu.memory_space<vmem>>, vector<1x8x64xf32>
    %497 = vector.shape_cast %496 : vector<1x8x64xf32> to vector<8x64xf32>
    %498 = vector.shape_cast %495 : vector<8x64xf32> to vector<1x8x64xf32>
    tpu.vector_store %arg16[%c3_215, %c0_216, %c0_217], %498 {strides = array<i32>} : memref<8x8x64xf32, #tpu.memory_space<vmem>>, vector<1x8x64xf32>,
    %cst_218 = arith.constant dense<0.000000e+00> : vector<8x256xf32>
    %499 = tpu.matmul %495, %402, %cst_218 {dimension_numbers = #tpu.dot_dimension_numbers<[1], [0], [0], [1], [0, 0, 1, 1], [], []>} : vector<8x64xf32>, vector<64x256xf32>, vector<8x256xf32> -> vector<8x256xf32>
    %c4_219 = arith.constant 4 : index
    %c0_220 = arith.constant 0 : index
    %c0_221 = arith.constant 0 : index
    %500 = vector.load %arg15[%c4_219, %c0_220, %c0_221] : memref<8x8x256xf32, #tpu.memory_space<vmem>>, vector<1x8x256xf32>
    %501 = vector.shape_cast %500 : vector<1x8x256xf32> to vector<8x256xf32>
    %502 = arith.addf %501, %499 : vector<8x256xf32>
    %503 = vector.extract_strided_slice %502 {offsets = [0, 0], sizes = [8, 192], strides = [1, 1]} : vector<8x256xf32> to vector<8x192xf32>
    %504 = arith.negf %503 : vector<8x192xf32>
    %505 = math.exp %504 : vector<8x192xf32>
    %cst_222 = arith.constant 1.000000e+00 : f32
    %506 = vector.broadcast %cst_222 : f32 to vector<8x192xf32>
    %507 = arith.addf %506, %505 : vector<8x192xf32>
    %508 = arith.divf %506, %507 : vector<8x192xf32>
    %509 = vector.extract_strided_slice %502 {offsets = [0, 192], sizes = [8, 64], strides = [1, 1]} : vector<8x256xf32> to vector<8x64xf32>
    %510 = math.tanh %509 : vector<8x64xf32>
    %511 = vector.extract_strided_slice %508 {offsets = [0, 64], sizes = [8, 64], strides = [1, 1]} : vector<8x192xf32> to vector<8x64xf32>
    %512 = arith.mulf %511, %492 : vector<8x64xf32>
    %513 = vector.extract_strided_slice %508 {offsets = [0, 0], sizes = [8, 64], strides = [1, 1]} : vector<8x192xf32> to vector<8x64xf32>
    %514 = arith.mulf %513, %510 : vector<8x64xf32>
    %515 = arith.addf %512, %514 : vector<8x64xf32>
    %516 = vector.extract_strided_slice %508 {offsets = [0, 128], sizes = [8, 64], strides = [1, 1]} : vector<8x192xf32> to vector<8x64xf32>
    %517 = math.tanh %515 : vector<8x64xf32>
    %518 = arith.mulf %516, %517 : vector<8x64xf32>
    %c4_223 = arith.constant 4 : index
    %c0_224 = arith.constant 0 : index
    %c0_225 = arith.constant 0 : index
    %519 = vector.load %arg16[%c4_223, %c0_224, %c0_225] : memref<8x8x64xf32, #tpu.memory_space<vmem>>, vector<1x8x64xf32>
    %520 = vector.shape_cast %519 : vector<1x8x64xf32> to vector<8x64xf32>
    %521 = vector.shape_cast %518 : vector<8x64xf32> to vector<1x8x64xf32>
    tpu.vector_store %arg16[%c4_223, %c0_224, %c0_225], %521 {strides = array<i32>} : memref<8x8x64xf32, #tpu.memory_space<vmem>>, vector<1x8x64xf32>,
    %cst_226 = arith.constant dense<0.000000e+00> : vector<8x256xf32>
    %522 = tpu.matmul %518, %402, %cst_226 {dimension_numbers = #tpu.dot_dimension_numbers<[1], [0], [0], [1], [0, 0, 1, 1], [], []>} : vector<8x64xf32>, vector<64x256xf32>, vector<8x256xf32> -> vector<8x256xf32>
    %c5_227 = arith.constant 5 : index
    %c0_228 = arith.constant 0 : index
    %c0_229 = arith.constant 0 : index
    %523 = vector.load %arg15[%c5_227, %c0_228, %c0_229] : memref<8x8x256xf32, #tpu.memory_space<vmem>>, vector<1x8x256xf32>
    %524 = vector.shape_cast %523 : vector<1x8x256xf32> to vector<8x256xf32>
    %525 = arith.addf %524, %522 : vector<8x256xf32>
    %526 = vector.extract_strided_slice %525 {offsets = [0, 0], sizes = [8, 192], strides = [1, 1]} : vector<8x256xf32> to vector<8x192xf32>
    %527 = arith.negf %526 : vector<8x192xf32>
    %528 = math.exp %527 : vector<8x192xf32>
    %cst_230 = arith.constant 1.000000e+00 : f32
    %529 = vector.broadcast %cst_230 : f32 to vector<8x192xf32>
    %530 = arith.addf %529, %528 : vector<8x192xf32>
    %531 = arith.divf %529, %530 : vector<8x192xf32>
    %532 = vector.extract_strided_slice %525 {offsets = [0, 192], sizes = [8, 64], strides = [1, 1]} : vector<8x256xf32> to vector<8x64xf32>
    %533 = math.tanh %532 : vector<8x64xf32>
    %534 = vector.extract_strided_slice %531 {offsets = [0, 64], sizes = [8, 64], strides = [1, 1]} : vector<8x192xf32> to vector<8x64xf32>
    %535 = arith.mulf %534, %515 : vector<8x64xf32>
    %536 = vector.extract_strided_slice %531 {offsets = [0, 0], sizes = [8, 64], strides = [1, 1]} : vector<8x192xf32> to vector<8x64xf32>
    %537 = arith.mulf %536, %533 : vector<8x64xf32>
    %538 = arith.addf %535, %537 : vector<8x64xf32>
    %539 = vector.extract_strided_slice %531 {offsets = [0, 128], sizes = [8, 64], strides = [1, 1]} : vector<8x192xf32> to vector<8x64xf32>
    %540 = math.tanh %538 : vector<8x64xf32>
    %541 = arith.mulf %539, %540 : vector<8x64xf32>
    %c5_231 = arith.constant 5 : index
    %c0_232 = arith.constant 0 : index
    %c0_233 = arith.constant 0 : index
    %542 = vector.load %arg16[%c5_231, %c0_232, %c0_233] : memref<8x8x64xf32, #tpu.memory_space<vmem>>, vector<1x8x64xf32>
    %543 = vector.shape_cast %542 : vector<1x8x64xf32> to vector<8x64xf32>
    %544 = vector.shape_cast %541 : vector<8x64xf32> to vector<1x8x64xf32>
    tpu.vector_store %arg16[%c5_231, %c0_232, %c0_233], %544 {strides = array<i32>} : memref<8x8x64xf32, #tpu.memory_space<vmem>>, vector<1x8x64xf32>,
    %cst_234 = arith.constant dense<0.000000e+00> : vector<8x256xf32>
    %545 = tpu.matmul %541, %402, %cst_234 {dimension_numbers = #tpu.dot_dimension_numbers<[1], [0], [0], [1], [0, 0, 1, 1], [], []>} : vector<8x64xf32>, vector<64x256xf32>, vector<8x256xf32> -> vector<8x256xf32>
    %c6_235 = arith.constant 6 : index
    %c0_236 = arith.constant 0 : index
    %c0_237 = arith.constant 0 : index
    %546 = vector.load %arg15[%c6_235, %c0_236, %c0_237] : memref<8x8x256xf32, #tpu.memory_space<vmem>>, vector<1x8x256xf32>
    %547 = vector.shape_cast %546 : vector<1x8x256xf32> to vector<8x256xf32>
    %548 = arith.addf %547, %545 : vector<8x256xf32>
    %549 = vector.extract_strided_slice %548 {offsets = [0, 0], sizes = [8, 192], strides = [1, 1]} : vector<8x256xf32> to vector<8x192xf32>
    %550 = arith.negf %549 : vector<8x192xf32>
    %551 = math.exp %550 : vector<8x192xf32>
    %cst_238 = arith.constant 1.000000e+00 : f32
    %552 = vector.broadcast %cst_238 : f32 to vector<8x192xf32>
    %553 = arith.addf %552, %551 : vector<8x192xf32>
    %554 = arith.divf %552, %553 : vector<8x192xf32>
    %555 = vector.extract_strided_slice %548 {offsets = [0, 192], sizes = [8, 64], strides = [1, 1]} : vector<8x256xf32> to vector<8x64xf32>
    %556 = math.tanh %555 : vector<8x64xf32>
    %557 = vector.extract_strided_slice %554 {offsets = [0, 64], sizes = [8, 64], strides = [1, 1]} : vector<8x192xf32> to vector<8x64xf32>
    %558 = arith.mulf %557, %538 : vector<8x64xf32>
    %559 = vector.extract_strided_slice %554 {offsets = [0, 0], sizes = [8, 64], strides = [1, 1]} : vector<8x192xf32> to vector<8x64xf32>
    %560 = arith.mulf %559, %556 : vector<8x64xf32>
    %561 = arith.addf %558, %560 : vector<8x64xf32>
    %562 = vector.extract_strided_slice %554 {offsets = [0, 128], sizes = [8, 64], strides = [1, 1]} : vector<8x192xf32> to vector<8x64xf32>
    %563 = math.tanh %561 : vector<8x64xf32>
    %564 = arith.mulf %562, %563 : vector<8x64xf32>
    %c6_239 = arith.constant 6 : index
    %c0_240 = arith.constant 0 : index
    %c0_241 = arith.constant 0 : index
    %565 = vector.load %arg16[%c6_239, %c0_240, %c0_241] : memref<8x8x64xf32, #tpu.memory_space<vmem>>, vector<1x8x64xf32>
    %566 = vector.shape_cast %565 : vector<1x8x64xf32> to vector<8x64xf32>
    %567 = vector.shape_cast %564 : vector<8x64xf32> to vector<1x8x64xf32>
    tpu.vector_store %arg16[%c6_239, %c0_240, %c0_241], %567 {strides = array<i32>} : memref<8x8x64xf32, #tpu.memory_space<vmem>>, vector<1x8x64xf32>,
    %cst_242 = arith.constant dense<0.000000e+00> : vector<8x256xf32>
    %568 = tpu.matmul %564, %402, %cst_242 {dimension_numbers = #tpu.dot_dimension_numbers<[1], [0], [0], [1], [0, 0, 1, 1], [], []>} : vector<8x64xf32>, vector<64x256xf32>, vector<8x256xf32> -> vector<8x256xf32>
    %c7_243 = arith.constant 7 : index
    %c0_244 = arith.constant 0 : index
    %c0_245 = arith.constant 0 : index
    %569 = vector.load %arg15[%c7_243, %c0_244, %c0_245] : memref<8x8x256xf32, #tpu.memory_space<vmem>>, vector<1x8x256xf32>
    %570 = vector.shape_cast %569 : vector<1x8x256xf32> to vector<8x256xf32>
    %571 = arith.addf %570, %568 : vector<8x256xf32>
    %572 = vector.extract_strided_slice %571 {offsets = [0, 0], sizes = [8, 192], strides = [1, 1]} : vector<8x256xf32> to vector<8x192xf32>
    %573 = arith.negf %572 : vector<8x192xf32>
    %574 = math.exp %573 : vector<8x192xf32>
    %cst_246 = arith.constant 1.000000e+00 : f32
    %575 = vector.broadcast %cst_246 : f32 to vector<8x192xf32>
    %576 = arith.addf %575, %574 : vector<8x192xf32>
    %577 = arith.divf %575, %576 : vector<8x192xf32>
    %578 = vector.extract_strided_slice %571 {offsets = [0, 192], sizes = [8, 64], strides = [1, 1]} : vector<8x256xf32> to vector<8x64xf32>
    %579 = math.tanh %578 : vector<8x64xf32>
    %580 = vector.extract_strided_slice %577 {offsets = [0, 64], sizes = [8, 64], strides = [1, 1]} : vector<8x192xf32> to vector<8x64xf32>
    %581 = arith.mulf %580, %561 : vector<8x64xf32>
    %582 = vector.extract_strided_slice %577 {offsets = [0, 0], sizes = [8, 64], strides = [1, 1]} : vector<8x192xf32> to vector<8x64xf32>
    %583 = arith.mulf %582, %579 : vector<8x64xf32>
    %584 = arith.addf %581, %583 : vector<8x64xf32>
    %585 = vector.extract_strided_slice %577 {offsets = [0, 128], sizes = [8, 64], strides = [1, 1]} : vector<8x192xf32> to vector<8x64xf32>
    %586 = math.tanh %584 : vector<8x64xf32>
    %587 = arith.mulf %585, %586 : vector<8x64xf32>
    %c7_247 = arith.constant 7 : index
    %c0_248 = arith.constant 0 : index
    %c0_249 = arith.constant 0 : index
    %588 = vector.load %arg16[%c7_247, %c0_248, %c0_249] : memref<8x8x64xf32, #tpu.memory_space<vmem>>, vector<1x8x64xf32>
    %589 = vector.shape_cast %588 : vector<1x8x64xf32> to vector<8x64xf32>
    %590 = vector.shape_cast %587 : vector<8x64xf32> to vector<1x8x64xf32>
    tpu.vector_store %arg16[%c7_247, %c0_248, %c0_249], %590 {strides = array<i32>} : memref<8x8x64xf32, #tpu.memory_space<vmem>>, vector<1x8x64xf32>,
    %c7_250 = arith.constant 7 : index
    %c0_251 = arith.constant 0 : index
    %c0_252 = arith.constant 0 : index
    %591 = vector.load %arg16[%c7_250, %c0_251, %c0_252] : memref<8x8x64xf32, #tpu.memory_space<vmem>>, vector<1x8x64xf32>
    %592 = vector.shape_cast %591 : vector<1x8x64xf32> to vector<8x64xf32>
    %c0_253 = arith.constant 0 : index
    %c0_254 = arith.constant 0 : index
    %c0_255 = arith.constant 0 : index
    %593 = vector.load %arg16[%c0_253, %c0_254, %c0_255] : memref<8x8x64xf32, #tpu.memory_space<vmem>>, vector<1x8x64xf32>
    %594 = vector.shape_cast %593 : vector<1x8x64xf32> to vector<8x64xf32>
    %595 = arith.select %21, %592, %594 : vector<8x64xi1>, vector<8x64xf32>
    %c0_256 = arith.constant 0 : index
    %c0_257 = arith.constant 0 : index
    %596 = vector.load %arg10[%c0_256, %c0_257] : memref<64x32xf32, #tpu.memory_space<vmem>>, vector<64x32xf32>
    %cst_258 = arith.constant dense<0.000000e+00> : vector<8x32xf32>
    %597 = tpu.matmul %595, %596, %cst_258 {dimension_numbers = #tpu.dot_dimension_numbers<[1], [0], [0], [1], [0, 0, 1, 1], [], []>} : vector<8x64xf32>, vector<64x32xf32>, vector<8x32xf32> -> vector<8x32xf32>
    %c0_259 = arith.constant 0 : index
    %c0_260 = arith.constant 0 : index
    %598 = vector.load %arg11[%c0_259, %c0_260] : memref<1x32xf32, #tpu.memory_space<vmem>>, vector<1x32xf32>
    %599 = vector.broadcast %598 : vector<1x32xf32> to vector<8x32xf32>
    %600 = arith.addf %597, %599 : vector<8x32xf32>
    %cst_261 = arith.constant 0.000000e+00 : f32
    %601 = vector.broadcast %cst_261 : f32 to vector<8x32xf32>
    %602 = arith.maximumf %600, %601 : vector<8x32xf32>
    %c0_262 = arith.constant 0 : index
    %c0_263 = arith.constant 0 : index
    %603 = vector.load %arg12[%c0_262, %c0_263] : memref<32x3xf32, #tpu.memory_space<vmem>>, vector<32x3xf32>
    %cst_264 = arith.constant dense<0.000000e+00> : vector<8x3xf32>
    %604 = tpu.matmul %602, %603, %cst_264 {dimension_numbers = #tpu.dot_dimension_numbers<[1], [0], [0], [1], [0, 0, 1, 1], [], []>} : vector<8x32xf32>, vector<32x3xf32>, vector<8x3xf32> -> vector<8x3xf32>
    %c0_265 = arith.constant 0 : index
    %c0_266 = arith.constant 0 : index
    %605 = vector.load %arg13[%c0_265, %c0_266] : memref<1x3xf32, #tpu.memory_space<vmem>>, vector<1x3xf32>
    %606 = vector.broadcast %605 : vector<1x3xf32> to vector<8x3xf32>
    %607 = arith.addf %604, %606 : vector<8x3xf32>
    %c0_267 = arith.constant 0 : index
    %c0_268 = arith.constant 0 : index
    %608 = vector.load %arg14[%c0_267, %c0_268] : memref<8x3xf32, #tpu.memory_space<vmem>>, vector<8x3xf32>
    tpu.vector_store %arg14[%c0_267, %c0_268], %607 {strides = array<i32>} : memref<8x3xf32, #tpu.memory_space<vmem>>, vector<8x3xf32>,
    return
  }
  func.func @transform_0(%arg0: i32) -> (i32, i32) {
    %c0_i32 = arith.constant 0 : i32
    %c0_i32_0 = arith.constant 0 : i32
    %c0_i32_1 = arith.constant 0 : i32
    return %c0_i32, %c0_i32_0 : i32, i32
  }
  func.func @transform_1(%arg0: i32) -> (i32, i32) {
    %c0_i32 = arith.constant 0 : i32
    %c0_i32_0 = arith.constant 0 : i32
    %c0_i32_1 = arith.constant 0 : i32
    return %c0_i32, %c0_i32_0 : i32, i32
  }
  func.func @transform_2(%arg0: i32) -> (i32, i32) {
    %c0_i32 = arith.constant 0 : i32
    %c0_i32_0 = arith.constant 0 : i32
    %c0_i32_1 = arith.constant 0 : i32
    return %c0_i32, %c0_i32_0 : i32, i32
  }
  func.func @transform_3(%arg0: i32) -> (i32, i32) {
    %c0_i32 = arith.constant 0 : i32
    %c0_i32_0 = arith.constant 0 : i32
    %c0_i32_1 = arith.constant 0 : i32
    return %c0_i32, %c0_i32_0 : i32, i32
  }
  func.func @transform_4(%arg0: i32) -> (i32, i32) {
    %c0_i32 = arith.constant 0 : i32
    %c0_i32_0 = arith.constant 0 : i32
    %c0_i32_1 = arith.constant 0 : i32
    return %c0_i32, %c0_i32_0 : i32, i32
  }
  func.func @transform_5(%arg0: i32) -> (i32, i32) {
    %c0_i32 = arith.constant 0 : i32
    %c0_i32_0 = arith.constant 0 : i32
    %c0_i32_1 = arith.constant 0 : i32
    return %c0_i32, %c0_i32_0 : i32, i32
  }
  func.func @transform_6(%arg0: i32) -> (i32, i32) {
    %c0_i32 = arith.constant 0 : i32
    %c0_i32_0 = arith.constant 0 : i32
    %c0_i32_1 = arith.constant 0 : i32
    return %c0_i32, %c0_i32_0 : i32, i32
  }
  func.func @transform_7(%arg0: i32) -> (i32, i32, i32) {
    %c0_i32 = arith.constant 0 : i32
    %c0_i32_0 = arith.constant 0 : i32
    %c0_i32_1 = arith.constant 0 : i32
    %c0_i32_2 = arith.constant 0 : i32
    return %c0_i32, %c0_i32_0, %c0_i32_1 : i32, i32, i32
  }
  func.func @transform_8(%arg0: i32) -> (i32, i32, i32) {
    %c0_i32 = arith.constant 0 : i32
    %c0_i32_0 = arith.constant 0 : i32
    %c0_i32_1 = arith.constant 0 : i32
    %c0_i32_2 = arith.constant 0 : i32
    return %c0_i32, %c0_i32_0, %c0_i32_1 : i32, i32, i32
  }
  func.func @transform_9(%arg0: i32) -> (i32, i32) {
    %c0_i32 = arith.constant 0 : i32
    %c0_i32_0 = arith.constant 0 : i32
    %c0_i32_1 = arith.constant 0 : i32
    return %c0_i32, %c0_i32_0 : i32, i32
  }
  func.func @transform_10(%arg0: i32) -> (i32, i32) {
    %c0_i32 = arith.constant 0 : i32
    %c0_i32_0 = arith.constant 0 : i32
    %c0_i32_1 = arith.constant 0 : i32
    return %c0_i32, %c0_i32_0 : i32, i32
  }
  func.func @transform_11(%arg0: i32) -> (i32, i32) {
    %c0_i32 = arith.constant 0 : i32
    %c0_i32_0 = arith.constant 0 : i32
    %c0_i32_1 = arith.constant 0 : i32
    return %c0_i32, %c0_i32_0 : i32, i32
  }
  func.func @transform_12(%arg0: i32) -> (i32, i32) {
    %c0_i32 = arith.constant 0 : i32
    %c0_i32_0 = arith.constant 0 : i32
    %c0_i32_1 = arith.constant 0 : i32
    return %c0_i32, %c0_i32_0 : i32, i32
  }
  func.func @transform_13(%arg0: i32) -> (i32, i32) {
    %c0_i32 = arith.constant 0 : i32
    %c0_i32_0 = arith.constant 0 : i32
    %c0_i32_1 = arith.constant 0 : i32
    return %c0_i32, %c0_i32_0 : i32, i32
  }
}

</mosaic_0001>

<llo_original>
// kernel: conv_lstm_linear_forward.1
$region0: #{conv_lstm_linear_forward.1}
  #allocation0 [shape = 'u32[]', space=smem, size = 0x4, offset = 0x4, fixed_abs, tag = 'smem constant byte address 0x4 - core index']
  #allocation1 [shape = 'u32[144,128]{1,0:T(1,128)}', space=vmem, size = 0x12000, scoped, tag = 'internal scratch']
  #allocation2 [shape = 'f32[8,8,256]{2,1,0:T(8,128)}', space=vmem, size = 0x10000, scoped, tag = 'scratch operand']
  #allocation3 [shape = 'f32[8,8,64]{2,1,0:T(8,128)}', space=vmem, size = 0x8000, scoped, tag = 'scratch operand']
  %s0 = inlined_call_operand.vmem [shape: f32[64,4], index: 0, kind: input, shape index: {}]
  %s1 = inlined_call_operand.vmem [shape: f32[4,256], index: 1, kind: input, shape index: {}]
  %s2 = inlined_call_operand.vmem [shape: f32[1,256], index: 2, kind: input, shape index: {}]
  %s3 = inlined_call_operand.vmem [shape: f32[64,256], index: 3, kind: input, shape index: {}]
  %s4 = inlined_call_operand.vmem [shape: f32[64,256], index: 4, kind: input, shape index: {}]
  %s5 = inlined_call_operand.vmem [shape: f32[1,256], index: 5, kind: input, shape index: {}]
  %s6 = inlined_call_operand.vmem [shape: f32[64,256], index: 6, kind: input, shape index: {}]
  %s7 = inlined_call_operand.vmem [shape: f32[2,8,64], index: 7, kind: input, shape index: {}]
  %s8 = inlined_call_operand.vmem [shape: f32[2,8,64], index: 8, kind: input, shape index: {}]
  %s9 = inlined_call_operand.vmem [shape: f32[64,32], index: 9, kind: input, shape index: {}]
  %s10 = inlined_call_operand.vmem [shape: f32[1,32], index: 10, kind: input, shape index: {}]
  %s11 = inlined_call_operand.vmem [shape: f32[32,3], index: 11, kind: input, shape index: {}]
  %s12 = inlined_call_operand.vmem [shape: f32[1,3], index: 12, kind: input, shape index: {}]
  %s13 = inlined_call_operand.vmem [shape: f32[8,3], index: 13, kind: output, shape index: {}]
  %s14 = sld [smem:[#allocation0]]
  $region62: #{conv_lstm_linear_forward.1} parent=0
    _
  %s16 = ssub.s32 1, %s14
  %s17 = scalar_select 0, %s16, %s14
  // Predicated region
  $region2: #{conv_lstm_linear_forward.1} parent=0 // pred_check
    _
  $region3: #{conv_lstm_linear_forward.1} parent=0 // pred_check_branch
    %19 = sbr.rel (0) target = $region5
  $region4: #{conv_lstm_linear_forward.1} parent=0 // pred_region
    _
  $region5: #{conv_lstm_linear_forward.1} parent=0 // pred_fallthru
    _
  // Predicated region
  $region6: #{conv_lstm_linear_forward.1} parent=0 // pred_check
    _
  $region7: #{conv_lstm_linear_forward.1} parent=0 // pred_check_branch
    %21 = sbr.rel (0) target = $region9
  $region8: #{conv_lstm_linear_forward.1} parent=0 // pred_region
    _
  $region9: #{conv_lstm_linear_forward.1} parent=0 // pred_fallthru
    _
  // Predicated region
  $region10: #{conv_lstm_linear_forward.1} parent=0 // pred_check
    _
  $region11: #{conv_lstm_linear_forward.1} parent=0 // pred_check_branch
    %23 = sbr.rel (0) target = $region13
  $region12: #{conv_lstm_linear_forward.1} parent=0 // pred_region
    _
  $region13: #{conv_lstm_linear_forward.1} parent=0 // pred_fallthru
    _
  // Predicated region
  $region14: #{conv_lstm_linear_forward.1} parent=0 // pred_check
    _
  $region15: #{conv_lstm_linear_forward.1} parent=0 // pred_check_branch
    %25 = sbr.rel (0) target = $region17
  $region16: #{conv_lstm_linear_forward.1} parent=0 // pred_region
    _
  $region17: #{conv_lstm_linear_forward.1} parent=0 // pred_fallthru
    _
  // Predicated region
  $region18: #{conv_lstm_linear_forward.1} parent=0 // pred_check
    _
  $region19: #{conv_lstm_linear_forward.1} parent=0 // pred_check_branch
    %27 = sbr.rel (0) target = $region21
  $region20: #{conv_lstm_linear_forward.1} parent=0 // pred_region
    _
  $region21: #{conv_lstm_linear_forward.1} parent=0 // pred_fallthru
    _
  // Predicated region
  $region22: #{conv_lstm_linear_forward.1} parent=0 // pred_check
    _
  $region23: #{conv_lstm_linear_forward.1} parent=0 // pred_check_branch
    %29 = sbr.rel (0) target = $region25
  $region24: #{conv_lstm_linear_forward.1} parent=0 // pred_region
    _
  $region25: #{conv_lstm_linear_forward.1} parent=0 // pred_fallthru
    _
  // Predicated region
  $region26: #{conv_lstm_linear_forward.1} parent=0 // pred_check
    _
  $region27: #{conv_lstm_linear_forward.1} parent=0 // pred_check_branch
    %31 = sbr.rel (0) target = $region29
  $region28: #{conv_lstm_linear_forward.1} parent=0 // pred_region
    _
  $region29: #{conv_lstm_linear_forward.1} parent=0 // pred_fallthru
    _
  // Predicated region
  $region30: #{conv_lstm_linear_forward.1} parent=0 // pred_check
    _
  $region31: #{conv_lstm_linear_forward.1} parent=0 // pred_check_branch
    %33 = sbr.rel (0) target = $region33
  $region32: #{conv_lstm_linear_forward.1} parent=0 // pred_region
    _
  $region33: #{conv_lstm_linear_forward.1} parent=0 // pred_fallthru
    _
  // Predicated region
  $region34: #{conv_lstm_linear_forward.1} parent=0 // pred_check
    _
  $region35: #{conv_lstm_linear_forward.1} parent=0 // pred_check_branch
    %35 = sbr.rel (0) target = $region37
  $region36: #{conv_lstm_linear_forward.1} parent=0 // pred_region
    _
  $region37: #{conv_lstm_linear_forward.1} parent=0 // pred_fallthru
    _
  // Predicated region
  $region38: #{conv_lstm_linear_forward.1} parent=0 // pred_check
    _
  $region39: #{conv_lstm_linear_forward.1} parent=0 // pred_check_branch
    %37 = sbr.rel (0) target = $region41
  $region40: #{conv_lstm_linear_forward.1} parent=0 // pred_region
    _
  $region41: #{conv_lstm_linear_forward.1} parent=0 // pred_fallthru
    _
  // Predicated region
  $region42: #{conv_lstm_linear_forward.1} parent=0 // pred_check
    _
  $region43: #{conv_lstm_linear_forward.1} parent=0 // pred_check_branch
    %39 = sbr.rel (0) target = $region45
  $region44: #{conv_lstm_linear_forward.1} parent=0 // pred_region
    _
  $region45: #{conv_lstm_linear_forward.1} parent=0 // pred_fallthru
    _
  // Predicated region
  $region46: #{conv_lstm_linear_forward.1} parent=0 // pred_check
    _
  $region47: #{conv_lstm_linear_forward.1} parent=0 // pred_check_branch
    %41 = sbr.rel (0) target = $region49
  $region48: #{conv_lstm_linear_forward.1} parent=0 // pred_region
    _
  $region49: #{conv_lstm_linear_forward.1} parent=0 // pred_fallthru
    _
  // Predicated region
  $region50: #{conv_lstm_linear_forward.1} parent=0 // pred_check
    _
  $region51: #{conv_lstm_linear_forward.1} parent=0 // pred_check_branch
    %43 = sbr.rel (0) target = $region53
  $region52: #{conv_lstm_linear_forward.1} parent=0 // pred_region
    _
  $region53: #{conv_lstm_linear_forward.1} parent=0 // pred_fallthru
    _
  %v44 = vlaneseq
  %v45 = vand.u32 %v44, 127
  %v46 = vadd.s32 %v45, 128
  %vm47 = vcmp.lt.s32.totalorder %v45, 0
  %v48 = vsub.s32 0, %v45
  %v49 = vsel %vm47, %v48, %v45
  %v50 = vshrl.u32 %v49, 6
  %v51 = vand.u32 %v49, 63
  %v52 = vsub.s32 0, %v51
  %v53 = vsel %vm47, %v52, %v51
  %vm54 = vcmp.lt.s32.totalorder %v46, 0
  %v55 = vsub.s32 0, %v46
  %v56 = vsel %vm54, %v55, %v46
  %v57 = vshrl.u32 %v56, 6
  %v58 = vand.u32 %v56, 63
  %v59 = vsub.s32 0, %v58
  %v60 = vsel %vm54, %v59, %v58
  %vm61 = vcmp.ne.s32.totalorder %v53, 0
  %vm62 = vcmp.ne.s32.totalorder %v60, 0
  %vm63 = vcmp.lt.s32.totalorder %v53, 0
  %vm64 = vcmp.lt.s32.totalorder %v60, 0
  %vm65 = vmand %vm63, %vm61
  %vm66 = vmand %vm64, %vm62
  %v67 = vadd.s32 %v53, 64
  %v68 = vadd.s32 %v60, 64
  %v69 = vsel %vm65, %v67, %v53
  %v70 = vsel %vm66, %v68, %v60
  %vm71 = vcmp.lt.s32.totalorder %v69, 32
  %vm72 = vcmp.lt.s32.totalorder %v70, 32
  %vm73 = vcmp.lt.s32.totalorder %v45, 32
  %v74 = vld [vmem:[%s0] sm:$0xff]
  %v75 = vld [vmem:[%s0 + $0x8] sm:$0xff]
  %v76 = vld [vmem:[%s0 + $0x10] sm:$0xff]
  %v77 = vld [vmem:[%s0 + $0x18] sm:$0xff]
  %v78 = vld [vmem:[%s0 + $0x20] sm:$0xff]
  %v79 = vld [vmem:[%s0 + $0x28] sm:$0xff]
  %v80 = vld [vmem:[%s0 + $0x30] sm:$0xff]
  %v81 = vld [vmem:[%s0 + $0x38] sm:$0xff]
  %v82 = vld [vmem:[%s1] sm:$0xff]
  %v83 = vld [vmem:[%s2] sm:$0x3]
  %v85 = vlaneseq
  %v86 = vshrl.u32 %v85, 7
  %v87 = vsub.s32 0, %v86
  %v88 = vrot.slane %v83, %v87
  %v89 = vlaneseq
  %v90 = vshrl.u32 %v89, 7
  %v91 = vsub.s32 1, %v90
  %v92 = vrot.slane %v83, %v91
  %v96 = vcombine.high %v82, %v82
  %vm97 = vcmask 31744
  %v99 = vsel %vm97, %v74, 0
  %v102 = vsel %vm97, %v75, 0
  %v105 = vsel %vm97, %v76, 0
  %v108 = vsel %vm97, %v77, 0
  %v111 = vsel %vm97, %v78, 0
  %v114 = vsel %vm97, %v79, 0
  %v117 = vsel %vm97, %v80, 0
  %v120 = vsel %vm97, %v81, 0
  %vm122 = vcmask 1043456
  %v123 = vsel %vm122, %v82, 0
  %v125 = vsel %vm122, %v96, 0
  %127 = vmatprep.subr.mxu0 0.0
  %128 = vmatpush1.msra.mxu0 0.0
  %129 = vmatprep.subr.mxu0 0.0
  %130 = vmatpush1.msra.mxu0 0.0
  %131 = vmatprep.subr.mxu0 0.0
  %132 = vmatpush1.msra.mxu0 0.0
  %133 = vmatprep.subr.mxu0 0.0
  %134 = vmatpush1.msra.mxu0 0.0
  %135 = vmatprep.subr.mxu0 0.0
  %136 = vmatpush1.msra.mxu0 0.0
  %137 = vmatprep.subr.mxu0 0.0
  %138 = vmatpush1.msra.mxu0 0.0
  %139 = vmatprep.subr.mxu0 0.0
  %140 = vmatpush1.msra.mxu0 0.0
  %141 = vmatprep.subr.mxu0 0.0
  %142 = vmatpush1.msra.mxu0 0.0
  %143 = vmatprep.subr.mxu0 0.0
  %144 = vmatpush1.msra.mxu0 0.0
  %145 = vmatprep.subr.mxu0 0.0
  %146 = vmatpush1.msra.mxu0 0.0
  %147 = vmatprep.subr.mxu0 0.0
  %148 = vmatpush1.msra.mxu0 0.0
  %149 = vmatprep.subr.mxu0 0.0
  %150 = vmatpush1.msra.mxu0 0.0
  %151 = vmatprep.subr.mxu0 0.0
  %152 = vmatpush1.msra.mxu0 0.0
  %153 = vmatprep.subr.mxu0 0.0
  %154 = vmatpush1.msra.mxu0 0.0
  %155 = vmatprep.subr.mxu0 0.0
  %156 = vmatpush1.msra.mxu0 0.0
  %157 = vmatprep.subr.mxu0 %v125
  %158 = vmatpush1.msra.mxu0 %v123
  %159 = vmatprep.subr.mxu0 0.0
  %160 = vmatpush2.msra.mxu0 0.0
  %161 = vmatprep.subr.mxu0 0.0
  %162 = vmatpush2.msra.mxu0 0.0
  %163 = vmatprep.subr.mxu0 0.0
  %164 = vmatpush2.msra.mxu0 0.0
  %165 = vmatprep.subr.mxu0 0.0
  %166 = vmatpush2.msra.mxu0 0.0
  %167 = vmatprep.subr.mxu0 0.0
  %168 = vmatpush2.msra.mxu0 0.0
  %169 = vmatprep.subr.mxu0 0.0
  %170 = vmatpush2.msra.mxu0 0.0
  %171 = vmatprep.subr.mxu0 0.0
  %172 = vmatpush2.msra.mxu0 0.0
  %173 = vmatprep.subr.mxu0 0.0
  %174 = vmatpush2.msra.mxu0 0.0
  %175 = vmatprep.subr.mxu0 0.0
  %176 = vmatpush2.msra.mxu0 0.0
  %177 = vmatprep.subr.mxu0 0.0
  %178 = vmatpush2.msra.mxu0 0.0
  %179 = vmatprep.subr.mxu0 0.0
  %180 = vmatpush2.msra.mxu0 0.0
  %181 = vmatprep.subr.mxu0 0.0
  %182 = vmatpush2.msra.mxu0 0.0
  %183 = vmatprep.subr.mxu0 0.0
  %184 = vmatpush2.msra.mxu0 0.0
  %185 = vmatprep.subr.mxu0 0.0
  %186 = vmatpush2.msra.mxu0 0.0
  %187 = vmatprep.subr.mxu0 0.0
  %188 = vmatpush2.msra.mxu0 0.0
  %189 = vmatprep.subr.mxu0 0.0
  %190 = vmatpush2.msra.mxu0 0.0
  %191 = vmatprep.mubr.f32.mxu0 0.0
  %192 = vmatmul.mubr.f32.gmra.mxu0 %v99
  %v193 = vpop.f32.mrf.mxu0
  %v194 = vadd.f32 %v88, %v193
  %v195 = vpop.f32.mrf.mxu0
  %v196 = vadd.f32 %v92, %v195
  %197 = vmatprep.mubr.f32.mxu0 0.0
  %198 = vmatmul.mubr.f32.gmra.mxu0 %v102
  %v199 = vpop.f32.mrf.mxu0
  %v200 = vadd.f32 %v88, %v199
  %v201 = vpop.f32.mrf.mxu0
  %v202 = vadd.f32 %v92, %v201
  %203 = vmatprep.mubr.f32.mxu0 0.0
  %204 = vmatmul.mubr.f32.gmra.mxu0 %v105
  %v205 = vpop.f32.mrf.mxu0
  %v206 = vadd.f32 %v88, %v205
  %v207 = vpop.f32.mrf.mxu0
  %v208 = vadd.f32 %v92, %v207
  %209 = vmatprep.mubr.f32.mxu0 0.0
  %210 = vmatmul.mubr.f32.gmra.mxu0 %v108
  %v211 = vpop.f32.mrf.mxu0
  %v212 = vadd.f32 %v88, %v211
  %v213 = vpop.f32.mrf.mxu0
  %v214 = vadd.f32 %v92, %v213
  %215 = vmatprep.mubr.f32.mxu0 0.0
  %216 = vmatmul.mubr.f32.gmra.mxu0 %v111
  %v217 = vpop.f32.mrf.mxu0
  %v218 = vadd.f32 %v88, %v217
  %v219 = vpop.f32.mrf.mxu0
  %v220 = vadd.f32 %v92, %v219
  %221 = vmatprep.mubr.f32.mxu0 0.0
  %222 = vmatmul.mubr.f32.gmra.mxu0 %v114
  %v223 = vpop.f32.mrf.mxu0
  %v224 = vadd.f32 %v88, %v223
  %v225 = vpop.f32.mrf.mxu0
  %v226 = vadd.f32 %v92, %v225
  %227 = vmatprep.mubr.f32.mxu0 0.0
  %228 = vmatmul.mubr.f32.gmra.mxu0 %v117
  %v229 = vpop.f32.mrf.mxu0
  %v230 = vadd.f32 %v88, %v229
  %v231 = vpop.f32.mrf.mxu0
  %v232 = vadd.f32 %v92, %v231
  %233 = vmatprep.mubr.f32.mxu0 0.0
  %234 = vmatmul.mubr.f32.gmra.mxu0 %v120
  %v235 = vpop.f32.mrf.mxu0
  %v236 = vadd.f32 %v88, %v235
  %v237 = vpop.f32.mrf.mxu0
  %v238 = vadd.f32 %v92, %v237
  %239 = vdwg.mxu0
  %v240 = vsel %vm71, %v194, %v236
  %v241 = vsel %vm72, %v196, %v238
  %242 = vst [vmem:[#allocation2] sm:$0xff] %v240
  %243 = vst [vmem:[#allocation2 + $0x8] sm:$0xff] %v241
  %v244 = vsel %vm71, %v200, %v230
  %v245 = vsel %vm72, %v202, %v232
  %s246 = scalar_lea.vmem [#allocation2], 16
  %247 = vst [vmem:[%s246] sm:$0xff] %v244
  %248 = vst [vmem:[%s246 + $0x8] sm:$0xff] %v245
  %v249 = vsel %vm71, %v206, %v224
  %v250 = vsel %vm72, %v208, %v226
  %s251 = scalar_lea.vmem [#allocation2], 32
  %252 = vst [vmem:[%s251] sm:$0xff] %v249
  %253 = vst [vmem:[%s251 + $0x8] sm:$0xff] %v250
  %v254 = vsel %vm71, %v212, %v218
  %v255 = vsel %vm72, %v214, %v220
  %s256 = scalar_lea.vmem [#allocation2], 48
  %257 = vst [vmem:[%s256] sm:$0xff] %v254
  %258 = vst [vmem:[%s256 + $0x8] sm:$0xff] %v255
  %v259 = vsel %vm71, %v218, %v212
  %v260 = vsel %vm72, %v220, %v214
  %s261 = scalar_lea.vmem [#allocation2], 64
  %262 = vst [vmem:[%s261] sm:$0xff] %v259
  %263 = vst [vmem:[%s261 + $0x8] sm:$0xff] %v260
  %v264 = vsel %vm71, %v224, %v206
  %v265 = vsel %vm72, %v226, %v208
  %s266 = scalar_lea.vmem [#allocation2], 80
  %267 = vst [vmem:[%s266] sm:$0xff] %v264
  %268 = vst [vmem:[%s266 + $0x8] sm:$0xff] %v265
  %v269 = vsel %vm71, %v230, %v200
  %v270 = vsel %vm72, %v232, %v202
  %s271 = scalar_lea.vmem [#allocation2], 96
  %272 = vst [vmem:[%s271] sm:$0xff] %v269
  %273 = vst [vmem:[%s271 + $0x8] sm:$0xff] %v270
  %v274 = vsel %vm71, %v236, %v194
  %v275 = vsel %vm72, %v238, %v196
  %s276 = scalar_lea.vmem [#allocation2], 112
  %277 = vst [vmem:[%s276] sm:$0xff] %v274
  %278 = vst [vmem:[%s276 + $0x8] sm:$0xff] %v275
  %v279 = vld [vmem:[%s3] sm:$0xff]
  %v280 = vld [vmem:[%s3 + $0x8] sm:$0xff]
  %v281 = vld [vmem:[%s3 + $0x10] sm:$0xff]
  %v282 = vld [vmem:[%s3 + $0x18] sm:$0xff]
  %v283 = vld [vmem:[%s3 + $0x20] sm:$0xff]
  %v284 = vld [vmem:[%s3 + $0x28] sm:$0xff]
  %v285 = vld [vmem:[%s3 + $0x30] sm:$0xff]
  %v286 = vld [vmem:[%s3 + $0x38] sm:$0xff]
  %v287 = vld [vmem:[%s3 + $0x40] sm:$0xff]
  %v288 = vld [vmem:[%s3 + $0x48] sm:$0xff]
  %v289 = vld [vmem:[%s3 + $0x50] sm:$0xff]
  %v290 = vld [vmem:[%s3 + $0x58] sm:$0xff]
  %v291 = vld [vmem:[%s3 + $0x60] sm:$0xff]
  %v292 = vld [vmem:[%s3 + $0x68] sm:$0xff]
  %v293 = vld [vmem:[%s3 + $0x70] sm:$0xff]
  %v294 = vld [vmem:[%s3 + $0x78] sm:$0xff]
  %v295 = vld [vmem:[%s7] sm:$0xff]
  %v296 = vld [vmem:[%s8] sm:$0xff]
  %vm297 = vcmask 523264
  %v299 = vsel %vm297, %v295, 0
  %301 = vmatprep.subr.mxu0 0.0
  %302 = vmatpush1.msra.mxu0 0.0
  %303 = vmatprep.subr.mxu0 0.0
  %304 = vmatpush1.msra.mxu0 0.0
  %305 = vmatprep.subr.mxu0 0.0
  %306 = vmatpush1.msra.mxu0 0.0
  %307 = vmatprep.subr.mxu0 0.0
  %308 = vmatpush1.msra.mxu0 0.0
  %309 = vmatprep.subr.mxu0 0.0
  %310 = vmatpush1.msra.mxu0 0.0
  %311 = vmatprep.subr.mxu0 0.0
  %312 = vmatpush1.msra.mxu0 0.0
  %313 = vmatprep.subr.mxu0 0.0
  %314 = vmatpush1.msra.mxu0 0.0
  %315 = vmatprep.subr.mxu0 0.0
  %316 = vmatpush1.msra.mxu0 0.0
  %317 = vmatprep.subr.mxu0 %v294
  %318 = vmatpush1.msra.mxu0 %v293
  %319 = vmatprep.subr.mxu0 %v292
  %320 = vmatpush1.msra.mxu0 %v291
  %321 = vmatprep.subr.mxu0 %v290
  %322 = vmatpush1.msra.mxu0 %v289
  %323 = vmatprep.subr.mxu0 %v288
  %324 = vmatpush1.msra.mxu0 %v287
  %325 = vmatprep.subr.mxu0 %v286
  %326 = vmatpush1.msra.mxu0 %v285
  %327 = vmatprep.subr.mxu0 %v284
  %328 = vmatpush1.msra.mxu0 %v283
  %329 = vmatprep.subr.mxu0 %v282
  %330 = vmatpush1.msra.mxu0 %v281
  %331 = vmatprep.subr.mxu0 %v280
  %332 = vmatpush1.msra.mxu0 %v279
  %333 = vmatprep.subr.mxu0 0.0
  %334 = vmatpush2.msra.mxu0 0.0
  %335 = vmatprep.subr.mxu0 0.0
  %336 = vmatpush2.msra.mxu0 0.0
  %337 = vmatprep.subr.mxu0 0.0
  %338 = vmatpush2.msra.mxu0 0.0
  %339 = vmatprep.subr.mxu0 0.0
  %340 = vmatpush2.msra.mxu0 0.0
  %341 = vmatprep.subr.mxu0 0.0
  %342 = vmatpush2.msra.mxu0 0.0
  %343 = vmatprep.subr.mxu0 0.0
  %344 = vmatpush2.msra.mxu0 0.0
  %345 = vmatprep.subr.mxu0 0.0
  %346 = vmatpush2.msra.mxu0 0.0
  %347 = vmatprep.subr.mxu0 0.0
  %348 = vmatpush2.msra.mxu0 0.0
  %349 = vmatprep.subr.mxu0 0.0
  %350 = vmatpush2.msra.mxu0 0.0
  %351 = vmatprep.subr.mxu0 0.0
  %352 = vmatpush2.msra.mxu0 0.0
  %353 = vmatprep.subr.mxu0 0.0
  %354 = vmatpush2.msra.mxu0 0.0
  %355 = vmatprep.subr.mxu0 0.0
  %356 = vmatpush2.msra.mxu0 0.0
  %357 = vmatprep.subr.mxu0 0.0
  %358 = vmatpush2.msra.mxu0 0.0
  %359 = vmatprep.subr.mxu0 0.0
  %360 = vmatpush2.msra.mxu0 0.0
  %361 = vmatprep.subr.mxu0 0.0
  %362 = vmatpush2.msra.mxu0 0.0
  %363 = vmatprep.subr.mxu0 0.0
  %364 = vmatpush2.msra.mxu0 0.0
  %365 = vmatprep.mubr.f32.mxu0 0.0
  %366 = vmatmul.mubr.f32.gmra.mxu0 %v299
  %v367 = vpop.f32.mrf.mxu0
  %v368 = vadd.f32 0.0, %v367
  %v369 = vpop.f32.mrf.mxu0
  %v370 = vadd.f32 0.0, %v369
  %371 = vdwg.mxu0
  %v372 = vld [vmem:[#allocation2] sm:$0xff]
  %v373 = vld [vmem:[#allocation2 + $0x8] sm:$0xff]
  %v374 = vadd.f32 %v372, %v368
  %v375 = vadd.f32 %v373, %v370
  %v376 = vxor.u32 %v374, 2147483648
  %v377 = vxor.u32 %v375, 2147483648
  %v378 = vmul.f32 %v376, 1.442695
  %v379 = vpow.pop %v378
  %v380 = vmul.f32 %v377, 1.442695
  %v381 = vpow.pop %v380
  %v382 = vadd.f32 %v379, 1.0
  %v383 = vadd.f32 %v381, 1.0
  %v384 = vrcp.pop %v382
  %v385 = vmul.f32 1.0, %v384
  %v386 = vrcp.pop %v383
  %v387 = vmul.f32 1.0, %v386
  %v388 = vtanh.pop %v375
  %390 = vrot.lane.b32.xlu0 %v296, 64
  %v391 = vpop.permute.xlu0 %390
  %v393 = vmul.f32 %v385, %v391
  %395 = vrot.lane.b32.xlu0 %v388, 64
  %v396 = vpop.permute.xlu0 %395
  %v398 = vmul.f32 %v385, %v396
  %400 = vrot.lane.b32.xlu0 %v398, 64
  %v401 = vpop.permute.xlu0 %400
  %v403 = vadd.f32 %v393, %v401
  %v404 = vtanh.pop %v403
  %406 = vrot.lane.b32.xlu0 %v404, 64
  %v407 = vpop.permute.xlu0 %406
  %v409 = vmul.f32 %v387, %v407
  %410 = vst.msk [vmem:[#allocation3] sm:$0xff] %vm297, %v409
  %v412 = vsel %vm297, %v409, 0
  %414 = vmatprep.subr.mxu0 0.0
  %415 = vmatpush1.msra.mxu0 0.0
  %416 = vmatprep.subr.mxu0 0.0
  %417 = vmatpush1.msra.mxu0 0.0
  %418 = vmatprep.subr.mxu0 0.0
  %419 = vmatpush1.msra.mxu0 0.0
  %420 = vmatprep.subr.mxu0 0.0
  %421 = vmatpush1.msra.mxu0 0.0
  %422 = vmatprep.subr.mxu0 0.0
  %423 = vmatpush1.msra.mxu0 0.0
  %424 = vmatprep.subr.mxu0 0.0
  %425 = vmatpush1.msra.mxu0 0.0
  %426 = vmatprep.subr.mxu0 0.0
  %427 = vmatpush1.msra.mxu0 0.0
  %428 = vmatprep.subr.mxu0 0.0
  %429 = vmatpush1.msra.mxu0 0.0
  %430 = vmatprep.subr.mxu0 %v294
  %431 = vmatpush1.msra.mxu0 %v293
  %432 = vmatprep.subr.mxu0 %v292
  %433 = vmatpush1.msra.mxu0 %v291
  %434 = vmatprep.subr.mxu0 %v290
  %435 = vmatpush1.msra.mxu0 %v289
  %436 = vmatprep.subr.mxu0 %v288
  %437 = vmatpush1.msra.mxu0 %v287
  %438 = vmatprep.subr.mxu0 %v286
  %439 = vmatpush1.msra.mxu0 %v285
  %440 = vmatprep.subr.mxu0 %v284
  %441 = vmatpush1.msra.mxu0 %v283
  %442 = vmatprep.subr.mxu0 %v282
  %443 = vmatpush1.msra.mxu0 %v281
  %444 = vmatprep.subr.mxu0 %v280
  %445 = vmatpush1.msra.mxu0 %v279
  %446 = vmatprep.subr.mxu0 0.0
  %447 = vmatpush2.msra.mxu0 0.0
  %448 = vmatprep.subr.mxu0 0.0
  %449 = vmatpush2.msra.mxu0 0.0
  %450 = vmatprep.subr.mxu0 0.0
  %451 = vmatpush2.msra.mxu0 0.0
  %452 = vmatprep.subr.mxu0 0.0
  %453 = vmatpush2.msra.mxu0 0.0
  %454 = vmatprep.subr.mxu0 0.0
  %455 = vmatpush2.msra.mxu0 0.0
  %456 = vmatprep.subr.mxu0 0.0
  %457 = vmatpush2.msra.mxu0 0.0
  %458 = vmatprep.subr.mxu0 0.0
  %459 = vmatpush2.msra.mxu0 0.0
  %460 = vmatprep.subr.mxu0 0.0
  %461 = vmatpush2.msra.mxu0 0.0
  %462 = vmatprep.subr.mxu0 0.0
  %463 = vmatpush2.msra.mxu0 0.0
  %464 = vmatprep.subr.mxu0 0.0
  %465 = vmatpush2.msra.mxu0 0.0
  %466 = vmatprep.subr.mxu0 0.0
  %467 = vmatpush2.msra.mxu0 0.0
  %468 = vmatprep.subr.mxu0 0.0
  %469 = vmatpush2.msra.mxu0 0.0
  %470 = vmatprep.subr.mxu0 0.0
  %471 = vmatpush2.msra.mxu0 0.0
  %472 = vmatprep.subr.mxu0 0.0
  %473 = vmatpush2.msra.mxu0 0.0
  %474 = vmatprep.subr.mxu0 0.0
  %475 = vmatpush2.msra.mxu0 0.0
  %476 = vmatprep.subr.mxu0 0.0
  %477 = vmatpush2.msra.mxu0 0.0
  %478 = vmatprep.mubr.f32.mxu0 0.0
  %479 = vmatmul.mubr.f32.gmra.mxu0 %v412
  %v480 = vpop.f32.mrf.mxu0
  %v481 = vadd.f32 0.0, %v480
  %v482 = vpop.f32.mrf.mxu0
  %v483 = vadd.f32 0.0, %v482
  %484 = vdwg.mxu0
  %v485 = vld [vmem:[%s246] sm:$0xff]
  %v486 = vld [vmem:[%s246 + $0x8] sm:$0xff]
  %v487 = vadd.f32 %v485, %v481
  %v488 = vadd.f32 %v486, %v483
  %v489 = vxor.u32 %v487, 2147483648
  %v490 = vxor.u32 %v488, 2147483648
  %v491 = vmul.f32 %v489, 1.442695
  %v492 = vpow.pop %v491
  %v493 = vmul.f32 %v490, 1.442695
  %v494 = vpow.pop %v493
  %v495 = vadd.f32 %v492, 1.0
  %v496 = vadd.f32 %v494, 1.0
  %v497 = vrcp.pop %v495
  %v498 = vmul.f32 1.0, %v497
  %v499 = vrcp.pop %v496
  %v500 = vmul.f32 1.0, %v499
  %v501 = vtanh.pop %v488
  %v502 = vmul.f32 %v498, %v403
  %504 = vrot.lane.b32.xlu0 %v501, 64
  %v505 = vpop.permute.xlu0 %504
  %v507 = vmul.f32 %v498, %v505
  %509 = vrot.lane.b32.xlu0 %v507, 64
  %v510 = vpop.permute.xlu0 %509
  %v512 = vadd.f32 %v502, %v510
  %v513 = vtanh.pop %v512
  %515 = vrot.lane.b32.xlu0 %v513, 64
  %v516 = vpop.permute.xlu0 %515
  %v518 = vmul.f32 %v500, %v516
  %s519 = scalar_lea.vmem [#allocation3], 8
  %520 = vst.msk [vmem:[%s519] sm:$0xff] %vm297, %v518
  %v522 = vsel %vm297, %v518, 0
  %524 = vmatprep.subr.mxu0 0.0
  %525 = vmatpush1.msra.mxu0 0.0
  %526 = vmatprep.subr.mxu0 0.0
  %527 = vmatpush1.msra.mxu0 0.0
  %528 = vmatprep.subr.mxu0 0.0
  %529 = vmatpush1.msra.mxu0 0.0
  %530 = vmatprep.subr.mxu0 0.0
  %531 = vmatpush1.msra.mxu0 0.0
  %532 = vmatprep.subr.mxu0 0.0
  %533 = vmatpush1.msra.mxu0 0.0
  %534 = vmatprep.subr.mxu0 0.0
  %535 = vmatpush1.msra.mxu0 0.0
  %536 = vmatprep.subr.mxu0 0.0
  %537 = vmatpush1.msra.mxu0 0.0
  %538 = vmatprep.subr.mxu0 0.0
  %539 = vmatpush1.msra.mxu0 0.0
  %540 = vmatprep.subr.mxu0 %v294
  %541 = vmatpush1.msra.mxu0 %v293
  %542 = vmatprep.subr.mxu0 %v292
  %543 = vmatpush1.msra.mxu0 %v291
  %544 = vmatprep.subr.mxu0 %v290
  %545 = vmatpush1.msra.mxu0 %v289
  %546 = vmatprep.subr.mxu0 %v288
  %547 = vmatpush1.msra.mxu0 %v287
  %548 = vmatprep.subr.mxu0 %v286
  %549 = vmatpush1.msra.mxu0 %v285
  %550 = vmatprep.subr.mxu0 %v284
  %551 = vmatpush1.msra.mxu0 %v283
  %552 = vmatprep.subr.mxu0 %v282
  %553 = vmatpush1.msra.mxu0 %v281
  %554 = vmatprep.subr.mxu0 %v280
  %555 = vmatpush1.msra.mxu0 %v279
  %556 = vmatprep.subr.mxu0 0.0
  %557 = vmatpush2.msra.mxu0 0.0
  %558 = vmatprep.subr.mxu0 0.0
  %559 = vmatpush2.msra.mxu0 0.0
  %560 = vmatprep.subr.mxu0 0.0
  %561 = vmatpush2.msra.mxu0 0.0
  %562 = vmatprep.subr.mxu0 0.0
  %563 = vmatpush2.msra.mxu0 0.0
  %564 = vmatprep.subr.mxu0 0.0
  %565 = vmatpush2.msra.mxu0 0.0
  %566 = vmatprep.subr.mxu0 0.0
  %567 = vmatpush2.msra.mxu0 0.0
  %568 = vmatprep.subr.mxu0 0.0
  %569 = vmatpush2.msra.mxu0 0.0
  %570 = vmatprep.subr.mxu0 0.0
  %571 = vmatpush2.msra.mxu0 0.0
  %572 = vmatprep.subr.mxu0 0.0
  %573 = vmatpush2.msra.mxu0 0.0
  %574 = vmatprep.subr.mxu0 0.0
  %575 = vmatpush2.msra.mxu0 0.0
  %576 = vmatprep.subr.mxu0 0.0
  %577 = vmatpush2.msra.mxu0 0.0
  %578 = vmatprep.subr.mxu0 0.0
  %579 = vmatpush2.msra.mxu0 0.0
  %580 = vmatprep.subr.mxu0 0.0
  %581 = vmatpush2.msra.mxu0 0.0
  %582 = vmatprep.subr.mxu0 0.0
  %583 = vmatpush2.msra.mxu0 0.0
  %584 = vmatprep.subr.mxu0 0.0
  %585 = vmatpush2.msra.mxu0 0.0
  %586 = vmatprep.subr.mxu0 0.0
  %587 = vmatpush2.msra.mxu0 0.0
  %588 = vmatprep.mubr.f32.mxu0 0.0
  %589 = vmatmul.mubr.f32.gmra.mxu0 %v522
  %v590 = vpop.f32.mrf.mxu0
  %v591 = vadd.f32 0.0, %v590
  %v592 = vpop.f32.mrf.mxu0
  %v593 = vadd.f32 0.0, %v592
  %594 = vdwg.mxu0
  %v595 = vld [vmem:[%s251] sm:$0xff]
  %v596 = vld [vmem:[%s251 + $0x8] sm:$0xff]
  %v597 = vadd.f32 %v595, %v591
  %v598 = vadd.f32 %v596, %v593
  %v599 = vxor.u32 %v597, 2147483648
  %v600 = vxor.u32 %v598, 2147483648
  %v601 = vmul.f32 %v599, 1.442695
  %v602 = vpow.pop %v601
  %v603 = vmul.f32 %v600, 1.442695
  %v604 = vpow.pop %v603
  %v605 = vadd.f32 %v602, 1.0
  %v606 = vadd.f32 %v604, 1.0
  %v607 = vrcp.pop %v605
  %v608 = vmul.f32 1.0, %v607
  %v609 = vrcp.pop %v606
  %v610 = vmul.f32 1.0, %v609
  %v611 = vtanh.pop %v598
  %v612 = vmul.f32 %v608, %v512
  %614 = vrot.lane.b32.xlu0 %v611, 64
  %v615 = vpop.permute.xlu0 %614
  %v617 = vmul.f32 %v608, %v615
  %619 = vrot.lane.b32.xlu0 %v617, 64
  %v620 = vpop.permute.xlu0 %619
  %v622 = vadd.f32 %v612, %v620
  %v623 = vtanh.pop %v622
  %625 = vrot.lane.b32.xlu0 %v623, 64
  %v626 = vpop.permute.xlu0 %625
  %v628 = vmul.f32 %v610, %v626
  %s629 = scalar_lea.vmem [#allocation3], 16
  %630 = vst.msk [vmem:[%s629] sm:$0xff] %vm297, %v628
  %v632 = vsel %vm297, %v628, 0
  %634 = vmatprep.subr.mxu0 0.0
  %635 = vmatpush1.msra.mxu0 0.0
  %636 = vmatprep.subr.mxu0 0.0
  %637 = vmatpush1.msra.mxu0 0.0
  %638 = vmatprep.subr.mxu0 0.0
  %639 = vmatpush1.msra.mxu0 0.0
  %640 = vmatprep.subr.mxu0 0.0
  %641 = vmatpush1.msra.mxu0 0.0
  %642 = vmatprep.subr.mxu0 0.0
  %643 = vmatpush1.msra.mxu0 0.0
  %644 = vmatprep.subr.mxu0 0.0
  %645 = vmatpush1.msra.mxu0 0.0
  %646 = vmatprep.subr.mxu0 0.0
  %647 = vmatpush1.msra.mxu0 0.0
  %648 = vmatprep.subr.mxu0 0.0
  %649 = vmatpush1.msra.mxu0 0.0
  %650 = vmatprep.subr.mxu0 %v294
  %651 = vmatpush1.msra.mxu0 %v293
  %652 = vmatprep.subr.mxu0 %v292
  %653 = vmatpush1.msra.mxu0 %v291
  %654 = vmatprep.subr.mxu0 %v290
  %655 = vmatpush1.msra.mxu0 %v289
  %656 = vmatprep.subr.mxu0 %v288
  %657 = vmatpush1.msra.mxu0 %v287
  %658 = vmatprep.subr.mxu0 %v286
  %659 = vmatpush1.msra.mxu0 %v285
  %660 = vmatprep.subr.mxu0 %v284
  %661 = vmatpush1.msra.mxu0 %v283
  %662 = vmatprep.subr.mxu0 %v282
  %663 = vmatpush1.msra.mxu0 %v281
  %664 = vmatprep.subr.mxu0 %v280
  %665 = vmatpush1.msra.mxu0 %v279
  %666 = vmatprep.subr.mxu0 0.0
  %667 = vmatpush2.msra.mxu0 0.0
  %668 = vmatprep.subr.mxu0 0.0
  %669 = vmatpush2.msra.mxu0 0.0
  %670 = vmatprep.subr.mxu0 0.0
  %671 = vmatpush2.msra.mxu0 0.0
  %672 = vmatprep.subr.mxu0 0.0
  %673 = vmatpush2.msra.mxu0 0.0
  %674 = vmatprep.subr.mxu0 0.0
  %675 = vmatpush2.msra.mxu0 0.0
  %676 = vmatprep.subr.mxu0 0.0
  %677 = vmatpush2.msra.mxu0 0.0
  %678 = vmatprep.subr.mxu0 0.0
  %679 = vmatpush2.msra.mxu0 0.0
  %680 = vmatprep.subr.mxu0 0.0
  %681 = vmatpush2.msra.mxu0 0.0
  %682 = vmatprep.subr.mxu0 0.0
  %683 = vmatpush2.msra.mxu0 0.0
  %684 = vmatprep.subr.mxu0 0.0
  %685 = vmatpush2.msra.mxu0 0.0
  %686 = vmatprep.subr.mxu0 0.0
  %687 = vmatpush2.msra.mxu0 0.0
  %688 = vmatprep.subr.mxu0 0.0
  %689 = vmatpush2.msra.mxu0 0.0
  %690 = vmatprep.subr.mxu0 0.0
  %691 = vmatpush2.msra.mxu0 0.0
  %692 = vmatprep.subr.mxu0 0.0
  %693 = vmatpush2.msra.mxu0 0.0
  %694 = vmatprep.subr.mxu0 0.0
  %695 = vmatpush2.msra.mxu0 0.0
  %696 = vmatprep.subr.mxu0 0.0
  %697 = vmatpush2.msra.mxu0 0.0
  %698 = vmatprep.mubr.f32.mxu0 0.0
  %699 = vmatmul.mubr.f32.gmra.mxu0 %v632
  %v700 = vpop.f32.mrf.mxu0
  %v701 = vadd.f32 0.0, %v700
  %v702 = vpop.f32.mrf.mxu0
  %v703 = vadd.f32 0.0, %v702
  %704 = vdwg.mxu0
  %v705 = vld [vmem:[%s256] sm:$0xff]
  %v706 = vld [vmem:[%s256 + $0x8] sm:$0xff]
  %v707 = vadd.f32 %v705, %v701
  %v708 = vadd.f32 %v706, %v703
  %v709 = vxor.u32 %v707, 2147483648
  %v710 = vxor.u32 %v708, 2147483648
  %v711 = vmul.f32 %v709, 1.442695
  %v712 = vpow.pop %v711
  %v713 = vmul.f32 %v710, 1.442695
  %v714 = vpow.pop %v713
  %v715 = vadd.f32 %v712, 1.0
  %v716 = vadd.f32 %v714, 1.0
  %v717 = vrcp.pop %v715
  %v718 = vmul.f32 1.0, %v717
  %v719 = vrcp.pop %v716
  %v720 = vmul.f32 1.0, %v719
  %v721 = vtanh.pop %v708
  %v722 = vmul.f32 %v718, %v622
  %724 = vrot.lane.b32.xlu0 %v721, 64
  %v725 = vpop.permute.xlu0 %724
  %v727 = vmul.f32 %v718, %v725
  %729 = vrot.lane.b32.xlu0 %v727, 64
  %v730 = vpop.permute.xlu0 %729
  %v732 = vadd.f32 %v722, %v730
  %v733 = vtanh.pop %v732
  %735 = vrot.lane.b32.xlu0 %v733, 64
  %v736 = vpop.permute.xlu0 %735
  %v738 = vmul.f32 %v720, %v736
  %s739 = scalar_lea.vmem [#allocation3], 24
  %740 = vst.msk [vmem:[%s739] sm:$0xff] %vm297, %v738
  %v742 = vsel %vm297, %v738, 0
  %744 = vmatprep.subr.mxu0 0.0
  %745 = vmatpush1.msra.mxu0 0.0
  %746 = vmatprep.subr.mxu0 0.0
  %747 = vmatpush1.msra.mxu0 0.0
  %748 = vmatprep.subr.mxu0 0.0
  %749 = vmatpush1.msra.mxu0 0.0
  %750 = vmatprep.subr.mxu0 0.0
  %751 = vmatpush1.msra.mxu0 0.0
  %752 = vmatprep.subr.mxu0 0.0
  %753 = vmatpush1.msra.mxu0 0.0
  %754 = vmatprep.subr.mxu0 0.0
  %755 = vmatpush1.msra.mxu0 0.0
  %756 = vmatprep.subr.mxu0 0.0
  %757 = vmatpush1.msra.mxu0 0.0
  %758 = vmatprep.subr.mxu0 0.0
  %759 = vmatpush1.msra.mxu0 0.0
  %760 = vmatprep.subr.mxu0 %v294
  %761 = vmatpush1.msra.mxu0 %v293
  %762 = vmatprep.subr.mxu0 %v292
  %763 = vmatpush1.msra.mxu0 %v291
  %764 = vmatprep.subr.mxu0 %v290
  %765 = vmatpush1.msra.mxu0 %v289
  %766 = vmatprep.subr.mxu0 %v288
  %767 = vmatpush1.msra.mxu0 %v287
  %768 = vmatprep.subr.mxu0 %v286
  %769 = vmatpush1.msra.mxu0 %v285
  %770 = vmatprep.subr.mxu0 %v284
  %771 = vmatpush1.msra.mxu0 %v283
  %772 = vmatprep.subr.mxu0 %v282
  %773 = vmatpush1.msra.mxu0 %v281
  %774 = vmatprep.subr.mxu0 %v280
  %775 = vmatpush1.msra.mxu0 %v279
  %776 = vmatprep.subr.mxu0 0.0
  %777 = vmatpush2.msra.mxu0 0.0
  %778 = vmatprep.subr.mxu0 0.0
  %779 = vmatpush2.msra.mxu0 0.0
  %780 = vmatprep.subr.mxu0 0.0
  %781 = vmatpush2.msra.mxu0 0.0
  %782 = vmatprep.subr.mxu0 0.0
  %783 = vmatpush2.msra.mxu0 0.0
  %784 = vmatprep.subr.mxu0 0.0
  %785 = vmatpush2.msra.mxu0 0.0
  %786 = vmatprep.subr.mxu0 0.0
  %787 = vmatpush2.msra.mxu0 0.0
  %788 = vmatprep.subr.mxu0 0.0
  %789 = vmatpush2.msra.mxu0 0.0
  %790 = vmatprep.subr.mxu0 0.0
  %791 = vmatpush2.msra.mxu0 0.0
  %792 = vmatprep.subr.mxu0 0.0
  %793 = vmatpush2.msra.mxu0 0.0
  %794 = vmatprep.subr.mxu0 0.0
  %795 = vmatpush2.msra.mxu0 0.0
  %796 = vmatprep.subr.mxu0 0.0
  %797 = vmatpush2.msra.mxu0 0.0
  %798 = vmatprep.subr.mxu0 0.0
  %799 = vmatpush2.msra.mxu0 0.0
  %800 = vmatprep.subr.mxu0 0.0
  %801 = vmatpush2.msra.mxu0 0.0
  %802 = vmatprep.subr.mxu0 0.0
  %803 = vmatpush2.msra.mxu0 0.0
  %804 = vmatprep.subr.mxu0 0.0
  %805 = vmatpush2.msra.mxu0 0.0
  %806 = vmatprep.subr.mxu0 0.0
  %807 = vmatpush2.msra.mxu0 0.0
  %808 = vmatprep.mubr.f32.mxu0 0.0
  %809 = vmatmul.mubr.f32.gmra.mxu0 %v742
  %v810 = vpop.f32.mrf.mxu0
  %v811 = vadd.f32 0.0, %v810
  %v812 = vpop.f32.mrf.mxu0
  %v813 = vadd.f32 0.0, %v812
  %814 = vdwg.mxu0
  %v815 = vld [vmem:[%s261] sm:$0xff]
  %v816 = vld [vmem:[%s261 + $0x8] sm:$0xff]
  %v817 = vadd.f32 %v815, %v811
  %v818 = vadd.f32 %v816, %v813
  %v819 = vxor.u32 %v817, 2147483648
  %v820 = vxor.u32 %v818, 2147483648
  %v821 = vmul.f32 %v819, 1.442695
  %v822 = vpow.pop %v821
  %v823 = vmul.f32 %v820, 1.442695
  %v824 = vpow.pop %v823
  %v825 = vadd.f32 %v822, 1.0
  %v826 = vadd.f32 %v824, 1.0
  %v827 = vrcp.pop %v825
  %v828 = vmul.f32 1.0, %v827
  %v829 = vrcp.pop %v826
  %v830 = vmul.f32 1.0, %v829
  %v831 = vtanh.pop %v818
  %v832 = vmul.f32 %v828, %v732
  %834 = vrot.lane.b32.xlu0 %v831, 64
  %v835 = vpop.permute.xlu0 %834
  %v837 = vmul.f32 %v828, %v835
  %839 = vrot.lane.b32.xlu0 %v837, 64
  %v840 = vpop.permute.xlu0 %839
  %v842 = vadd.f32 %v832, %v840
  %v843 = vtanh.pop %v842
  %845 = vrot.lane.b32.xlu0 %v843, 64
  %v846 = vpop.permute.xlu0 %845
  %v848 = vmul.f32 %v830, %v846
  %s849 = scalar_lea.vmem [#allocation3], 32
  %850 = vst.msk [vmem:[%s849] sm:$0xff] %vm297, %v848
  %v852 = vsel %vm297, %v848, 0
  %854 = vmatprep.subr.mxu0 0.0
  %855 = vmatpush1.msra.mxu0 0.0
  %856 = vmatprep.subr.mxu0 0.0
  %857 = vmatpush1.msra.mxu0 0.0
  %858 = vmatprep.subr.mxu0 0.0
  %859 = vmatpush1.msra.mxu0 0.0
  %860 = vmatprep.subr.mxu0 0.0
  %861 = vmatpush1.msra.mxu0 0.0
  %862 = vmatprep.subr.mxu0 0.0
  %863 = vmatpush1.msra.mxu0 0.0
  %864 = vmatprep.subr.mxu0 0.0
  %865 = vmatpush1.msra.mxu0 0.0
  %866 = vmatprep.subr.mxu0 0.0
  %867 = vmatpush1.msra.mxu0 0.0
  %868 = vmatprep.subr.mxu0 0.0
  %869 = vmatpush1.msra.mxu0 0.0
  %870 = vmatprep.subr.mxu0 %v294
  %871 = vmatpush1.msra.mxu0 %v293
  %872 = vmatprep.subr.mxu0 %v292
  %873 = vmatpush1.msra.mxu0 %v291
  %874 = vmatprep.subr.mxu0 %v290
  %875 = vmatpush1.msra.mxu0 %v289
  %876 = vmatprep.subr.mxu0 %v288
  %877 = vmatpush1.msra.mxu0 %v287
  %878 = vmatprep.subr.mxu0 %v286
  %879 = vmatpush1.msra.mxu0 %v285
  %880 = vmatprep.subr.mxu0 %v284
  %881 = vmatpush1.msra.mxu0 %v283
  %882 = vmatprep.subr.mxu0 %v282
  %883 = vmatpush1.msra.mxu0 %v281
  %884 = vmatprep.subr.mxu0 %v280
  %885 = vmatpush1.msra.mxu0 %v279
  %886 = vmatprep.subr.mxu0 0.0
  %887 = vmatpush2.msra.mxu0 0.0
  %888 = vmatprep.subr.mxu0 0.0
  %889 = vmatpush2.msra.mxu0 0.0
  %890 = vmatprep.subr.mxu0 0.0
  %891 = vmatpush2.msra.mxu0 0.0
  %892 = vmatprep.subr.mxu0 0.0
  %893 = vmatpush2.msra.mxu0 0.0
  %894 = vmatprep.subr.mxu0 0.0
  %895 = vmatpush2.msra.mxu0 0.0
  %896 = vmatprep.subr.mxu0 0.0
  %897 = vmatpush2.msra.mxu0 0.0
  %898 = vmatprep.subr.mxu0 0.0
  %899 = vmatpush2.msra.mxu0 0.0
  %900 = vmatprep.subr.mxu0 0.0
  %901 = vmatpush2.msra.mxu0 0.0
  %902 = vmatprep.subr.mxu0 0.0
  %903 = vmatpush2.msra.mxu0 0.0
  %904 = vmatprep.subr.mxu0 0.0
  %905 = vmatpush2.msra.mxu0 0.0
  %906 = vmatprep.subr.mxu0 0.0
  %907 = vmatpush2.msra.mxu0 0.0
  %908 = vmatprep.subr.mxu0 0.0
  %909 = vmatpush2.msra.mxu0 0.0
  %910 = vmatprep.subr.mxu0 0.0
  %911 = vmatpush2.msra.mxu0 0.0
  %912 = vmatprep.subr.mxu0 0.0
  %913 = vmatpush2.msra.mxu0 0.0
  %914 = vmatprep.subr.mxu0 0.0
  %915 = vmatpush2.msra.mxu0 0.0
  %916 = vmatprep.subr.mxu0 0.0
  %917 = vmatpush2.msra.mxu0 0.0
  %918 = vmatprep.mubr.f32.mxu0 0.0
  %919 = vmatmul.mubr.f32.gmra.mxu0 %v852
  %v920 = vpop.f32.mrf.mxu0
  %v921 = vadd.f32 0.0, %v920
  %v922 = vpop.f32.mrf.mxu0
  %v923 = vadd.f32 0.0, %v922
  %924 = vdwg.mxu0
  %v925 = vld [vmem:[%s266] sm:$0xff]
  %v926 = vld [vmem:[%s266 + $0x8] sm:$0xff]
  %v927 = vadd.f32 %v925, %v921
  %v928 = vadd.f32 %v926, %v923
  %v929 = vxor.u32 %v927, 2147483648
  %v930 = vxor.u32 %v928, 2147483648
  %v931 = vmul.f32 %v929, 1.442695
  %v932 = vpow.pop %v931
  %v933 = vmul.f32 %v930, 1.442695
  %v934 = vpow.pop %v933
  %v935 = vadd.f32 %v932, 1.0
  %v936 = vadd.f32 %v934, 1.0
  %v937 = vrcp.pop %v935
  %v938 = vmul.f32 1.0, %v937
  %v939 = vrcp.pop %v936
  %v940 = vmul.f32 1.0, %v939
  %v941 = vtanh.pop %v928
  %v942 = vmul.f32 %v938, %v842
  %944 = vrot.lane.b32.xlu0 %v941, 64
  %v945 = vpop.permute.xlu0 %944
  %v947 = vmul.f32 %v938, %v945
  %949 = vrot.lane.b32.xlu0 %v947, 64
  %v950 = vpop.permute.xlu0 %949
  %v952 = vadd.f32 %v942, %v950
  %v953 = vtanh.pop %v952
  %955 = vrot.lane.b32.xlu0 %v953, 64
  %v956 = vpop.permute.xlu0 %955
  %v958 = vmul.f32 %v940, %v956
  %s959 = scalar_lea.vmem [#allocation3], 40
  %960 = vst.msk [vmem:[%s959] sm:$0xff] %vm297, %v958
  %v962 = vsel %vm297, %v958, 0
  %964 = vmatprep.subr.mxu0 0.0
  %965 = vmatpush1.msra.mxu0 0.0
  %966 = vmatprep.subr.mxu0 0.0
  %967 = vmatpush1.msra.mxu0 0.0
  %968 = vmatprep.subr.mxu0 0.0
  %969 = vmatpush1.msra.mxu0 0.0
  %970 = vmatprep.subr.mxu0 0.0
  %971 = vmatpush1.msra.mxu0 0.0
  %972 = vmatprep.subr.mxu0 0.0
  %973 = vmatpush1.msra.mxu0 0.0
  %974 = vmatprep.subr.mxu0 0.0
  %975 = vmatpush1.msra.mxu0 0.0
  %976 = vmatprep.subr.mxu0 0.0
  %977 = vmatpush1.msra.mxu0 0.0
  %978 = vmatprep.subr.mxu0 0.0
  %979 = vmatpush1.msra.mxu0 0.0
  %980 = vmatprep.subr.mxu0 %v294
  %981 = vmatpush1.msra.mxu0 %v293
  %982 = vmatprep.subr.mxu0 %v292
  %983 = vmatpush1.msra.mxu0 %v291
  %984 = vmatprep.subr.mxu0 %v290
  %985 = vmatpush1.msra.mxu0 %v289
  %986 = vmatprep.subr.mxu0 %v288
  %987 = vmatpush1.msra.mxu0 %v287
  %988 = vmatprep.subr.mxu0 %v286
  %989 = vmatpush1.msra.mxu0 %v285
  %990 = vmatprep.subr.mxu0 %v284
  %991 = vmatpush1.msra.mxu0 %v283
  %992 = vmatprep.subr.mxu0 %v282
  %993 = vmatpush1.msra.mxu0 %v281
  %994 = vmatprep.subr.mxu0 %v280
  %995 = vmatpush1.msra.mxu0 %v279
  %996 = vmatprep.subr.mxu0 0.0
  %997 = vmatpush2.msra.mxu0 0.0
  %998 = vmatprep.subr.mxu0 0.0
  %999 = vmatpush2.msra.mxu0 0.0
  %1000 = vmatprep.subr.mxu0 0.0
  %1001 = vmatpush2.msra.mxu0 0.0
  %1002 = vmatprep.subr.mxu0 0.0
  %1003 = vmatpush2.msra.mxu0 0.0
  %1004 = vmatprep.subr.mxu0 0.0
  %1005 = vmatpush2.msra.mxu0 0.0
  %1006 = vmatprep.subr.mxu0 0.0
  %1007 = vmatpush2.msra.mxu0 0.0
  %1008 = vmatprep.subr.mxu0 0.0
  %1009 = vmatpush2.msra.mxu0 0.0
  %1010 = vmatprep.subr.mxu0 0.0
  %1011 = vmatpush2.msra.mxu0 0.0
  %1012 = vmatprep.subr.mxu0 0.0
  %1013 = vmatpush2.msra.mxu0 0.0
  %1014 = vmatprep.subr.mxu0 0.0
  %1015 = vmatpush2.msra.mxu0 0.0
  %1016 = vmatprep.subr.mxu0 0.0
  %1017 = vmatpush2.msra.mxu0 0.0
  %1018 = vmatprep.subr.mxu0 0.0
  %1019 = vmatpush2.msra.mxu0 0.0
  %1020 = vmatprep.subr.mxu0 0.0
  %1021 = vmatpush2.msra.mxu0 0.0
  %1022 = vmatprep.subr.mxu0 0.0
  %1023 = vmatpush2.msra.mxu0 0.0
  %1024 = vmatprep.subr.mxu0 0.0
  %1025 = vmatpush2.msra.mxu0 0.0
  %1026 = vmatprep.subr.mxu0 0.0
  %1027 = vmatpush2.msra.mxu0 0.0
  %1028 = vmatprep.mubr.f32.mxu0 0.0
  %1029 = vmatmul.mubr.f32.gmra.mxu0 %v962
  %v1030 = vpop.f32.mrf.mxu0
  %v1031 = vadd.f32 0.0, %v1030
  %v1032 = vpop.f32.mrf.mxu0
  %v1033 = vadd.f32 0.0, %v1032
  %1034 = vdwg.mxu0
  %v1035 = vld [vmem:[%s271] sm:$0xff]
  %v1036 = vld [vmem:[%s271 + $0x8] sm:$0xff]
  %v1037 = vadd.f32 %v1035, %v1031
  %v1038 = vadd.f32 %v1036, %v1033
  %v1039 = vxor.u32 %v1037, 2147483648
  %v1040 = vxor.u32 %v1038, 2147483648
  %v1041 = vmul.f32 %v1039, 1.442695
  %v1042 = vpow.pop %v1041
  %v1043 = vmul.f32 %v1040, 1.442695
  %v1044 = vpow.pop %v1043
  %v1045 = vadd.f32 %v1042, 1.0
  %v1046 = vadd.f32 %v1044, 1.0
  %v1047 = vrcp.pop %v1045
  %v1048 = vmul.f32 1.0, %v1047
  %v1049 = vrcp.pop %v1046
  %v1050 = vmul.f32 1.0, %v1049
  %v1051 = vtanh.pop %v1038
  %v1052 = vmul.f32 %v1048, %v952
  %1054 = vrot.lane.b32.xlu0 %v1051, 64
  %v1055 = vpop.permute.xlu0 %1054
  %v1057 = vmul.f32 %v1048, %v1055
  %1059 = vrot.lane.b32.xlu0 %v1057, 64
  %v1060 = vpop.permute.xlu0 %1059
  %v1062 = vadd.f32 %v1052, %v1060
  %v1063 = vtanh.pop %v1062
  %1065 = vrot.lane.b32.xlu0 %v1063, 64
  %v1066 = vpop.permute.xlu0 %1065
  %v1068 = vmul.f32 %v1050, %v1066
  %s1069 = scalar_lea.vmem [#allocation3], 48
  %1070 = vst.msk [vmem:[%s1069] sm:$0xff] %vm297, %v1068
  %v1072 = vsel %vm297, %v1068, 0
  %1074 = vmatprep.subr.mxu0 0.0
  %1075 = vmatpush1.msra.mxu0 0.0
  %1076 = vmatprep.subr.mxu0 0.0
  %1077 = vmatpush1.msra.mxu0 0.0
  %1078 = vmatprep.subr.mxu0 0.0
  %1079 = vmatpush1.msra.mxu0 0.0
  %1080 = vmatprep.subr.mxu0 0.0
  %1081 = vmatpush1.msra.mxu0 0.0
  %1082 = vmatprep.subr.mxu0 0.0
  %1083 = vmatpush1.msra.mxu0 0.0
  %1084 = vmatprep.subr.mxu0 0.0
  %1085 = vmatpush1.msra.mxu0 0.0
  %1086 = vmatprep.subr.mxu0 0.0
  %1087 = vmatpush1.msra.mxu0 0.0
  %1088 = vmatprep.subr.mxu0 0.0
  %1089 = vmatpush1.msra.mxu0 0.0
  %1090 = vmatprep.subr.mxu0 %v294
  %1091 = vmatpush1.msra.mxu0 %v293
  %1092 = vmatprep.subr.mxu0 %v292
  %1093 = vmatpush1.msra.mxu0 %v291
  %1094 = vmatprep.subr.mxu0 %v290
  %1095 = vmatpush1.msra.mxu0 %v289
  %1096 = vmatprep.subr.mxu0 %v288
  %1097 = vmatpush1.msra.mxu0 %v287
  %1098 = vmatprep.subr.mxu0 %v286
  %1099 = vmatpush1.msra.mxu0 %v285
  %1100 = vmatprep.subr.mxu0 %v284
  %1101 = vmatpush1.msra.mxu0 %v283
  %1102 = vmatprep.subr.mxu0 %v282
  %1103 = vmatpush1.msra.mxu0 %v281
  %1104 = vmatprep.subr.mxu0 %v280
  %1105 = vmatpush1.msra.mxu0 %v279
  %1106 = vmatprep.subr.mxu0 0.0
  %1107 = vmatpush2.msra.mxu0 0.0
  %1108 = vmatprep.subr.mxu0 0.0
  %1109 = vmatpush2.msra.mxu0 0.0
  %1110 = vmatprep.subr.mxu0 0.0
  %1111 = vmatpush2.msra.mxu0 0.0
  %1112 = vmatprep.subr.mxu0 0.0
  %1113 = vmatpush2.msra.mxu0 0.0
  %1114 = vmatprep.subr.mxu0 0.0
  %1115 = vmatpush2.msra.mxu0 0.0
  %1116 = vmatprep.subr.mxu0 0.0
  %1117 = vmatpush2.msra.mxu0 0.0
  %1118 = vmatprep.subr.mxu0 0.0
  %1119 = vmatpush2.msra.mxu0 0.0
  %1120 = vmatprep.subr.mxu0 0.0
  %1121 = vmatpush2.msra.mxu0 0.0
  %1122 = vmatprep.subr.mxu0 0.0
  %1123 = vmatpush2.msra.mxu0 0.0
  %1124 = vmatprep.subr.mxu0 0.0
  %1125 = vmatpush2.msra.mxu0 0.0
  %1126 = vmatprep.subr.mxu0 0.0
  %1127 = vmatpush2.msra.mxu0 0.0
  %1128 = vmatprep.subr.mxu0 0.0
  %1129 = vmatpush2.msra.mxu0 0.0
  %1130 = vmatprep.subr.mxu0 0.0
  %1131 = vmatpush2.msra.mxu0 0.0
  %1132 = vmatprep.subr.mxu0 0.0
  %1133 = vmatpush2.msra.mxu0 0.0
  %1134 = vmatprep.subr.mxu0 0.0
  %1135 = vmatpush2.msra.mxu0 0.0
  %1136 = vmatprep.subr.mxu0 0.0
  %1137 = vmatpush2.msra.mxu0 0.0
  %1138 = vmatprep.mubr.f32.mxu0 0.0
  %1139 = vmatmul.mubr.f32.gmra.mxu0 %v1072
  %v1140 = vpop.f32.mrf.mxu0
  %v1141 = vadd.f32 0.0, %v1140
  %v1142 = vpop.f32.mrf.mxu0
  %v1143 = vadd.f32 0.0, %v1142
  %1144 = vdwg.mxu0
  %v1145 = vld [vmem:[%s276] sm:$0xff]
  %v1146 = vld [vmem:[%s276 + $0x8] sm:$0xff]
  %v1147 = vadd.f32 %v1145, %v1141
  %v1148 = vadd.f32 %v1146, %v1143
  %v1149 = vxor.u32 %v1147, 2147483648
  %v1150 = vxor.u32 %v1148, 2147483648
  %v1151 = vmul.f32 %v1149, 1.442695
  %v1152 = vpow.pop %v1151
  %v1153 = vmul.f32 %v1150, 1.442695
  %v1154 = vpow.pop %v1153
  %v1155 = vadd.f32 %v1152, 1.0
  %v1156 = vadd.f32 %v1154, 1.0
  %v1157 = vrcp.pop %v1155
  %v1158 = vmul.f32 1.0, %v1157
  %v1159 = vrcp.pop %v1156
  %v1160 = vmul.f32 1.0, %v1159
  %v1161 = vtanh.pop %v1148
  %v1162 = vmul.f32 %v1158, %v1062
  %1164 = vrot.lane.b32.xlu0 %v1161, 64
  %v1165 = vpop.permute.xlu0 %1164
  %v1167 = vmul.f32 %v1158, %v1165
  %1169 = vrot.lane.b32.xlu0 %v1167, 64
  %v1170 = vpop.permute.xlu0 %1169
  %v1172 = vadd.f32 %v1162, %v1170
  %v1173 = vtanh.pop %v1172
  %1175 = vrot.lane.b32.xlu0 %v1173, 64
  %v1176 = vpop.permute.xlu0 %1175
  %v1178 = vmul.f32 %v1160, %v1176
  %s1179 = scalar_lea.vmem [#allocation3], 56
  %1180 = vst.msk [vmem:[%s1179] sm:$0xff] %vm297, %v1178
  %v1181 = vld [vmem:[#allocation3] sm:$0xff]
  %v1182 = vld [vmem:[%s1179] sm:$0xff]
  %v1183 = vsel %vm73, %v1181, %v1182
  %1184 = vst.msk [vmem:[#allocation3] sm:$0xff] %vm297, %v1183
  %v1185 = vsel %vm73, %v1182, %v1181
  %1186 = vst.msk [vmem:[%s1179] sm:$0xff] %vm297, %v1185
  %v1187 = vld [vmem:[%s519] sm:$0xff]
  %v1188 = vld [vmem:[%s1069] sm:$0xff]
  %v1189 = vsel %vm73, %v1187, %v1188
  %1190 = vst.msk [vmem:[%s519] sm:$0xff] %vm297, %v1189
  %v1191 = vsel %vm73, %v1188, %v1187
  %1192 = vst.msk [vmem:[%s1069] sm:$0xff] %vm297, %v1191
  %v1193 = vld [vmem:[%s629] sm:$0xff]
  %v1194 = vld [vmem:[%s959] sm:$0xff]
  %v1195 = vsel %vm73, %v1193, %v1194
  %1196 = vst.msk [vmem:[%s629] sm:$0xff] %vm297, %v1195
  %v1197 = vsel %vm73, %v1194, %v1193
  %1198 = vst.msk [vmem:[%s959] sm:$0xff] %vm297, %v1197
  %v1199 = vld [vmem:[%s739] sm:$0xff]
  %v1200 = vld [vmem:[%s849] sm:$0xff]
  %v1201 = vsel %vm73, %v1199, %v1200
  %1202 = vst.msk [vmem:[%s739] sm:$0xff] %vm297, %v1201
  %v1203 = vsel %vm73, %v1200, %v1199
  %1204 = vst.msk [vmem:[%s849] sm:$0xff] %vm297, %v1203
  %v1205 = vld [vmem:[#allocation3] sm:$0xff]
  %v1206 = vld [vmem:[#allocation3 + $0x8] sm:$0xff]
  %v1207 = vld [vmem:[#allocation3 + $0x10] sm:$0xff]
  %v1208 = vld [vmem:[#allocation3 + $0x18] sm:$0xff]
  %v1209 = vld [vmem:[#allocation3 + $0x20] sm:$0xff]
  %v1210 = vld [vmem:[#allocation3 + $0x28] sm:$0xff]
  %v1211 = vld [vmem:[#allocation3 + $0x30] sm:$0xff]
  %v1212 = vld [vmem:[#allocation3 + $0x38] sm:$0xff]
  %v1213 = vld [vmem:[%s4] sm:$0xff]
  %v1214 = vld [vmem:[%s4 + $0x8] sm:$0xff]
  %v1215 = vld [vmem:[%s4 + $0x10] sm:$0xff]
  %v1216 = vld [vmem:[%s4 + $0x18] sm:$0xff]
  %v1217 = vld [vmem:[%s4 + $0x20] sm:$0xff]
  %v1218 = vld [vmem:[%s4 + $0x28] sm:$0xff]
  %v1219 = vld [vmem:[%s4 + $0x30] sm:$0xff]
  %v1220 = vld [vmem:[%s4 + $0x38] sm:$0xff]
  %v1221 = vld [vmem:[%s4 + $0x40] sm:$0xff]
  %v1222 = vld [vmem:[%s4 + $0x48] sm:$0xff]
  %v1223 = vld [vmem:[%s4 + $0x50] sm:$0xff]
  %v1224 = vld [vmem:[%s4 + $0x58] sm:$0xff]
  %v1225 = vld [vmem:[%s4 + $0x60] sm:$0xff]
  %v1226 = vld [vmem:[%s4 + $0x68] sm:$0xff]
  %v1227 = vld [vmem:[%s4 + $0x70] sm:$0xff]
  %v1228 = vld [vmem:[%s4 + $0x78] sm:$0xff]
  %v1229 = vld [vmem:[%s5] sm:$0x3]
  %v1231 = vlaneseq
  %v1232 = vshrl.u32 %v1231, 7
  %v1233 = vsub.s32 0, %v1232
  %v1234 = vrot.slane %v1229, %v1233
  %v1235 = vlaneseq
  %v1236 = vshrl.u32 %v1235, 7
  %v1237 = vsub.s32 1, %v1236
  %v1238 = vrot.slane %v1229, %v1237
  %v1242 = vsel %vm297, %v1205, 0
  %v1245 = vsel %vm297, %v1206, 0
  %v1248 = vsel %vm297, %v1207, 0
  %v1251 = vsel %vm297, %v1208, 0
  %v1254 = vsel %vm297, %v1209, 0
  %v1257 = vsel %vm297, %v1210, 0
  %v1260 = vsel %vm297, %v1211, 0
  %v1263 = vsel %vm297, %v1212, 0
  %1265 = vmatprep.subr.mxu0 0.0
  %1266 = vmatpush1.msra.mxu0 0.0
  %1267 = vmatprep.subr.mxu0 0.0
  %1268 = vmatpush1.msra.mxu0 0.0
  %1269 = vmatprep.subr.mxu0 0.0
  %1270 = vmatpush1.msra.mxu0 0.0
  %1271 = vmatprep.subr.mxu0 0.0
  %1272 = vmatpush1.msra.mxu0 0.0
  %1273 = vmatprep.subr.mxu0 0.0
  %1274 = vmatpush1.msra.mxu0 0.0
  %1275 = vmatprep.subr.mxu0 0.0
  %1276 = vmatpush1.msra.mxu0 0.0
  %1277 = vmatprep.subr.mxu0 0.0
  %1278 = vmatpush1.msra.mxu0 0.0
  %1279 = vmatprep.subr.mxu0 0.0
  %1280 = vmatpush1.msra.mxu0 0.0
  %1281 = vmatprep.subr.mxu0 %v1228
  %1282 = vmatpush1.msra.mxu0 %v1227
  %1283 = vmatprep.subr.mxu0 %v1226
  %1284 = vmatpush1.msra.mxu0 %v1225
  %1285 = vmatprep.subr.mxu0 %v1224
  %1286 = vmatpush1.msra.mxu0 %v1223
  %1287 = vmatprep.subr.mxu0 %v1222
  %1288 = vmatpush1.msra.mxu0 %v1221
  %1289 = vmatprep.subr.mxu0 %v1220
  %1290 = vmatpush1.msra.mxu0 %v1219
  %1291 = vmatprep.subr.mxu0 %v1218
  %1292 = vmatpush1.msra.mxu0 %v1217
  %1293 = vmatprep.subr.mxu0 %v1216
  %1294 = vmatpush1.msra.mxu0 %v1215
  %1295 = vmatprep.subr.mxu0 %v1214
  %1296 = vmatpush1.msra.mxu0 %v1213
  %1297 = vmatprep.subr.mxu0 0.0
  %1298 = vmatpush2.msra.mxu0 0.0
  %1299 = vmatprep.subr.mxu0 0.0
  %1300 = vmatpush2.msra.mxu0 0.0
  %1301 = vmatprep.subr.mxu0 0.0
  %1302 = vmatpush2.msra.mxu0 0.0
  %1303 = vmatprep.subr.mxu0 0.0
  %1304 = vmatpush2.msra.mxu0 0.0
  %1305 = vmatprep.subr.mxu0 0.0
  %1306 = vmatpush2.msra.mxu0 0.0
  %1307 = vmatprep.subr.mxu0 0.0
  %1308 = vmatpush2.msra.mxu0 0.0
  %1309 = vmatprep.subr.mxu0 0.0
  %1310 = vmatpush2.msra.mxu0 0.0
  %1311 = vmatprep.subr.mxu0 0.0
  %1312 = vmatpush2.msra.mxu0 0.0
  %1313 = vmatprep.subr.mxu0 0.0
  %1314 = vmatpush2.msra.mxu0 0.0
  %1315 = vmatprep.subr.mxu0 0.0
  %1316 = vmatpush2.msra.mxu0 0.0
  %1317 = vmatprep.subr.mxu0 0.0
  %1318 = vmatpush2.msra.mxu0 0.0
  %1319 = vmatprep.subr.mxu0 0.0
  %1320 = vmatpush2.msra.mxu0 0.0
  %1321 = vmatprep.subr.mxu0 0.0
  %1322 = vmatpush2.msra.mxu0 0.0
  %1323 = vmatprep.subr.mxu0 0.0
  %1324 = vmatpush2.msra.mxu0 0.0
  %1325 = vmatprep.subr.mxu0 0.0
  %1326 = vmatpush2.msra.mxu0 0.0
  %1327 = vmatprep.subr.mxu0 0.0
  %1328 = vmatpush2.msra.mxu0 0.0
  %1329 = vmatprep.mubr.f32.mxu0 0.0
  %1330 = vmatmul.mubr.f32.gmra.mxu0 %v1242
  %v1331 = vpop.f32.mrf.mxu0
  %v1332 = vadd.f32 %v1234, %v1331
  %v1333 = vpop.f32.mrf.mxu0
  %v1334 = vadd.f32 %v1238, %v1333
  %1335 = vmatprep.mubr.f32.mxu0 0.0
  %1336 = vmatmul.mubr.f32.gmra.mxu0 %v1245
  %v1337 = vpop.f32.mrf.mxu0
  %v1338 = vadd.f32 %v1234, %v1337
  %v1339 = vpop.f32.mrf.mxu0
  %v1340 = vadd.f32 %v1238, %v1339
  %1341 = vmatprep.mubr.f32.mxu0 0.0
  %1342 = vmatmul.mubr.f32.gmra.mxu0 %v1248
  %v1343 = vpop.f32.mrf.mxu0
  %v1344 = vadd.f32 %v1234, %v1343
  %v1345 = vpop.f32.mrf.mxu0
  %v1346 = vadd.f32 %v1238, %v1345
  %1347 = vmatprep.mubr.f32.mxu0 0.0
  %1348 = vmatmul.mubr.f32.gmra.mxu0 %v1251
  %v1349 = vpop.f32.mrf.mxu0
  %v1350 = vadd.f32 %v1234, %v1349
  %v1351 = vpop.f32.mrf.mxu0
  %v1352 = vadd.f32 %v1238, %v1351
  %1353 = vmatprep.mubr.f32.mxu0 0.0
  %1354 = vmatmul.mubr.f32.gmra.mxu0 %v1254
  %v1355 = vpop.f32.mrf.mxu0
  %v1356 = vadd.f32 %v1234, %v1355
  %v1357 = vpop.f32.mrf.mxu0
  %v1358 = vadd.f32 %v1238, %v1357
  %1359 = vmatprep.mubr.f32.mxu0 0.0
  %1360 = vmatmul.mubr.f32.gmra.mxu0 %v1257
  %v1361 = vpop.f32.mrf.mxu0
  %v1362 = vadd.f32 %v1234, %v1361
  %v1363 = vpop.f32.mrf.mxu0
  %v1364 = vadd.f32 %v1238, %v1363
  %1365 = vmatprep.mubr.f32.mxu0 0.0
  %1366 = vmatmul.mubr.f32.gmra.mxu0 %v1260
  %v1367 = vpop.f32.mrf.mxu0
  %v1368 = vadd.f32 %v1234, %v1367
  %v1369 = vpop.f32.mrf.mxu0
  %v1370 = vadd.f32 %v1238, %v1369
  %1371 = vmatprep.mubr.f32.mxu0 0.0
  %1372 = vmatmul.mubr.f32.gmra.mxu0 %v1263
  %v1373 = vpop.f32.mrf.mxu0
  %v1374 = vadd.f32 %v1234, %v1373
  %v1375 = vpop.f32.mrf.mxu0
  %v1376 = vadd.f32 %v1238, %v1375
  %1377 = vdwg.mxu0
  %v1378 = vsel %vm71, %v1332, %v1374
  %v1379 = vsel %vm72, %v1334, %v1376
  %1380 = vst [vmem:[#allocation2] sm:$0xff] %v1378
  %1381 = vst [vmem:[#allocation2 + $0x8] sm:$0xff] %v1379
  %v1382 = vsel %vm71, %v1338, %v1368
  %v1383 = vsel %vm72, %v1340, %v1370
  %1384 = vst [vmem:[%s246] sm:$0xff] %v1382
  %1385 = vst [vmem:[%s246 + $0x8] sm:$0xff] %v1383
  %v1386 = vsel %vm71, %v1344, %v1362
  %v1387 = vsel %vm72, %v1346, %v1364
  %1388 = vst [vmem:[%s251] sm:$0xff] %v1386
  %1389 = vst [vmem:[%s251 + $0x8] sm:$0xff] %v1387
  %v1390 = vsel %vm71, %v1350, %v1356
  %v1391 = vsel %vm72, %v1352, %v1358
  %1392 = vst [vmem:[%s256] sm:$0xff] %v1390
  %1393 = vst [vmem:[%s256 + $0x8] sm:$0xff] %v1391
  %v1394 = vsel %vm71, %v1356, %v1350
  %v1395 = vsel %vm72, %v1358, %v1352
  %1396 = vst [vmem:[%s261] sm:$0xff] %v1394
  %1397 = vst [vmem:[%s261 + $0x8] sm:$0xff] %v1395
  %v1398 = vsel %vm71, %v1362, %v1344
  %v1399 = vsel %vm72, %v1364, %v1346
  %1400 = vst [vmem:[%s266] sm:$0xff] %v1398
  %1401 = vst [vmem:[%s266 + $0x8] sm:$0xff] %v1399
  %v1402 = vsel %vm71, %v1368, %v1338
  %v1403 = vsel %vm72, %v1370, %v1340
  %1404 = vst [vmem:[%s271] sm:$0xff] %v1402
  %1405 = vst [vmem:[%s271 + $0x8] sm:$0xff] %v1403
  %v1406 = vsel %vm71, %v1374, %v1332
  %v1407 = vsel %vm72, %v1376, %v1334
  %1408 = vst [vmem:[%s276] sm:$0xff] %v1406
  %1409 = vst [vmem:[%s276 + $0x8] sm:$0xff] %v1407
  %v1410 = vld [vmem:[%s6] sm:$0xff]
  %v1411 = vld [vmem:[%s6 + $0x8] sm:$0xff]
  %v1412 = vld [vmem:[%s6 + $0x10] sm:$0xff]
  %v1413 = vld [vmem:[%s6 + $0x18] sm:$0xff]
  %v1414 = vld [vmem:[%s6 + $0x20] sm:$0xff]
  %v1415 = vld [vmem:[%s6 + $0x28] sm:$0xff]
  %v1416 = vld [vmem:[%s6 + $0x30] sm:$0xff]
  %v1417 = vld [vmem:[%s6 + $0x38] sm:$0xff]
  %v1418 = vld [vmem:[%s6 + $0x40] sm:$0xff]
  %v1419 = vld [vmem:[%s6 + $0x48] sm:$0xff]
  %v1420 = vld [vmem:[%s6 + $0x50] sm:$0xff]
  %v1421 = vld [vmem:[%s6 + $0x58] sm:$0xff]
  %v1422 = vld [vmem:[%s6 + $0x60] sm:$0xff]
  %v1423 = vld [vmem:[%s6 + $0x68] sm:$0xff]
  %v1424 = vld [vmem:[%s6 + $0x70] sm:$0xff]
  %v1425 = vld [vmem:[%s6 + $0x78] sm:$0xff]
  %s1426 = scalar_lea.vmem %s7, 8
  %v1427 = vld [vmem:[%s1426] sm:$0xff]
  %s1428 = scalar_lea.vmem %s8, 8
  %v1429 = vld [vmem:[%s1428] sm:$0xff]
  %v1431 = vsel %vm297, %v1427, 0
  %1433 = vmatprep.subr.mxu0 0.0
  %1434 = vmatpush1.msra.mxu0 0.0
  %1435 = vmatprep.subr.mxu0 0.0
  %1436 = vmatpush1.msra.mxu0 0.0
  %1437 = vmatprep.subr.mxu0 0.0
  %1438 = vmatpush1.msra.mxu0 0.0
  %1439 = vmatprep.subr.mxu0 0.0
  %1440 = vmatpush1.msra.mxu0 0.0
  %1441 = vmatprep.subr.mxu0 0.0
  %1442 = vmatpush1.msra.mxu0 0.0
  %1443 = vmatprep.subr.mxu0 0.0
  %1444 = vmatpush1.msra.mxu0 0.0
  %1445 = vmatprep.subr.mxu0 0.0
  %1446 = vmatpush1.msra.mxu0 0.0
  %1447 = vmatprep.subr.mxu0 0.0
  %1448 = vmatpush1.msra.mxu0 0.0
  %1449 = vmatprep.subr.mxu0 %v1425
  %1450 = vmatpush1.msra.mxu0 %v1424
  %1451 = vmatprep.subr.mxu0 %v1423
  %1452 = vmatpush1.msra.mxu0 %v1422
  %1453 = vmatprep.subr.mxu0 %v1421
  %1454 = vmatpush1.msra.mxu0 %v1420
  %1455 = vmatprep.subr.mxu0 %v1419
  %1456 = vmatpush1.msra.mxu0 %v1418
  %1457 = vmatprep.subr.mxu0 %v1417
  %1458 = vmatpush1.msra.mxu0 %v1416
  %1459 = vmatprep.subr.mxu0 %v1415
  %1460 = vmatpush1.msra.mxu0 %v1414
  %1461 = vmatprep.subr.mxu0 %v1413
  %1462 = vmatpush1.msra.mxu0 %v1412
  %1463 = vmatprep.subr.mxu0 %v1411
  %1464 = vmatpush1.msra.mxu0 %v1410
  %1465 = vmatprep.subr.mxu0 0.0
  %1466 = vmatpush2.msra.mxu0 0.0
  %1467 = vmatprep.subr.mxu0 0.0
  %1468 = vmatpush2.msra.mxu0 0.0
  %1469 = vmatprep.subr.mxu0 0.0
  %1470 = vmatpush2.msra.mxu0 0.0
  %1471 = vmatprep.subr.mxu0 0.0
  %1472 = vmatpush2.msra.mxu0 0.0
  %1473 = vmatprep.subr.mxu0 0.0
  %1474 = vmatpush2.msra.mxu0 0.0
  %1475 = vmatprep.subr.mxu0 0.0
  %1476 = vmatpush2.msra.mxu0 0.0
  %1477 = vmatprep.subr.mxu0 0.0
  %1478 = vmatpush2.msra.mxu0 0.0
  %1479 = vmatprep.subr.mxu0 0.0
  %1480 = vmatpush2.msra.mxu0 0.0
  %1481 = vmatprep.subr.mxu0 0.0
  %1482 = vmatpush2.msra.mxu0 0.0
  %1483 = vmatprep.subr.mxu0 0.0
  %1484 = vmatpush2.msra.mxu0 0.0
  %1485 = vmatprep.subr.mxu0 0.0
  %1486 = vmatpush2.msra.mxu0 0.0
  %1487 = vmatprep.subr.mxu0 0.0
  %1488 = vmatpush2.msra.mxu0 0.0
  %1489 = vmatprep.subr.mxu0 0.0
  %1490 = vmatpush2.msra.mxu0 0.0
  %1491 = vmatprep.subr.mxu0 0.0
  %1492 = vmatpush2.msra.mxu0 0.0
  %1493 = vmatprep.subr.mxu0 0.0
  %1494 = vmatpush2.msra.mxu0 0.0
  %1495 = vmatprep.subr.mxu0 0.0
  %1496 = vmatpush2.msra.mxu0 0.0
  %1497 = vmatprep.mubr.f32.mxu0 0.0
  %1498 = vmatmul.mubr.f32.gmra.mxu0 %v1431
  %v1499 = vpop.f32.mrf.mxu0
  %v1500 = vadd.f32 0.0, %v1499
  %v1501 = vpop.f32.mrf.mxu0
  %v1502 = vadd.f32 0.0, %v1501
  %1503 = vdwg.mxu0
  %v1504 = vld [vmem:[#allocation2] sm:$0xff]
  %v1505 = vld [vmem:[#allocation2 + $0x8] sm:$0xff]
  %v1506 = vadd.f32 %v1504, %v1500
  %v1507 = vadd.f32 %v1505, %v1502
  %v1508 = vxor.u32 %v1506, 2147483648
  %v1509 = vxor.u32 %v1507, 2147483648
  %v1510 = vmul.f32 %v1508, 1.442695
  %v1511 = vpow.pop %v1510
  %v1512 = vmul.f32 %v1509, 1.442695
  %v1513 = vpow.pop %v1512
  %v1514 = vadd.f32 %v1511, 1.0
  %v1515 = vadd.f32 %v1513, 1.0
  %v1516 = vrcp.pop %v1514
  %v1517 = vmul.f32 1.0, %v1516
  %v1518 = vrcp.pop %v1515
  %v1519 = vmul.f32 1.0, %v1518
  %v1520 = vtanh.pop %v1507
  %1522 = vrot.lane.b32.xlu0 %v1429, 64
  %v1523 = vpop.permute.xlu0 %1522
  %v1525 = vmul.f32 %v1517, %v1523
  %1527 = vrot.lane.b32.xlu0 %v1520, 64
  %v1528 = vpop.permute.xlu0 %1527
  %v1530 = vmul.f32 %v1517, %v1528
  %1532 = vrot.lane.b32.xlu0 %v1530, 64
  %v1533 = vpop.permute.xlu0 %1532
  %v1535 = vadd.f32 %v1525, %v1533
  %v1536 = vtanh.pop %v1535
  %1538 = vrot.lane.b32.xlu0 %v1536, 64
  %v1539 = vpop.permute.xlu0 %1538
  %v1541 = vmul.f32 %v1519, %v1539
  %1542 = vst.msk [vmem:[#allocation3] sm:$0xff] %vm297, %v1541
  %v1544 = vsel %vm297, %v1541, 0
  %1546 = vmatprep.subr.mxu0 0.0
  %1547 = vmatpush1.msra.mxu0 0.0
  %1548 = vmatprep.subr.mxu0 0.0
  %1549 = vmatpush1.msra.mxu0 0.0
  %1550 = vmatprep.subr.mxu0 0.0
  %1551 = vmatpush1.msra.mxu0 0.0
  %1552 = vmatprep.subr.mxu0 0.0
  %1553 = vmatpush1.msra.mxu0 0.0
  %1554 = vmatprep.subr.mxu0 0.0
  %1555 = vmatpush1.msra.mxu0 0.0
  %1556 = vmatprep.subr.mxu0 0.0
  %1557 = vmatpush1.msra.mxu0 0.0
  %1558 = vmatprep.subr.mxu0 0.0
  %1559 = vmatpush1.msra.mxu0 0.0
  %1560 = vmatprep.subr.mxu0 0.0
  %1561 = vmatpush1.msra.mxu0 0.0
  %1562 = vmatprep.subr.mxu0 %v1425
  %1563 = vmatpush1.msra.mxu0 %v1424
  %1564 = vmatprep.subr.mxu0 %v1423
  %1565 = vmatpush1.msra.mxu0 %v1422
  %1566 = vmatprep.subr.mxu0 %v1421
  %1567 = vmatpush1.msra.mxu0 %v1420
  %1568 = vmatprep.subr.mxu0 %v1419
  %1569 = vmatpush1.msra.mxu0 %v1418
  %1570 = vmatprep.subr.mxu0 %v1417
  %1571 = vmatpush1.msra.mxu0 %v1416
  %1572 = vmatprep.subr.mxu0 %v1415
  %1573 = vmatpush1.msra.mxu0 %v1414
  %1574 = vmatprep.subr.mxu0 %v1413
  %1575 = vmatpush1.msra.mxu0 %v1412
  %1576 = vmatprep.subr.mxu0 %v1411
  %1577 = vmatpush1.msra.mxu0 %v1410
  %1578 = vmatprep.subr.mxu0 0.0
  %1579 = vmatpush2.msra.mxu0 0.0
  %1580 = vmatprep.subr.mxu0 0.0
  %1581 = vmatpush2.msra.mxu0 0.0
  %1582 = vmatprep.subr.mxu0 0.0
  %1583 = vmatpush2.msra.mxu0 0.0
  %1584 = vmatprep.subr.mxu0 0.0
  %1585 = vmatpush2.msra.mxu0 0.0
  %1586 = vmatprep.subr.mxu0 0.0
  %1587 = vmatpush2.msra.mxu0 0.0
  %1588 = vmatprep.subr.mxu0 0.0
  %1589 = vmatpush2.msra.mxu0 0.0
  %1590 = vmatprep.subr.mxu0 0.0
  %1591 = vmatpush2.msra.mxu0 0.0
  %1592 = vmatprep.subr.mxu0 0.0
  %1593 = vmatpush2.msra.mxu0 0.0
  %1594 = vmatprep.subr.mxu0 0.0
  %1595 = vmatpush2.msra.mxu0 0.0
  %1596 = vmatprep.subr.mxu0 0.0
  %1597 = vmatpush2.msra.mxu0 0.0
  %1598 = vmatprep.subr.mxu0 0.0
  %1599 = vmatpush2.msra.mxu0 0.0
  %1600 = vmatprep.subr.mxu0 0.0
  %1601 = vmatpush2.msra.mxu0 0.0
  %1602 = vmatprep.subr.mxu0 0.0
  %1603 = vmatpush2.msra.mxu0 0.0
  %1604 = vmatprep.subr.mxu0 0.0
  %1605 = vmatpush2.msra.mxu0 0.0
  %1606 = vmatprep.subr.mxu0 0.0
  %1607 = vmatpush2.msra.mxu0 0.0
  %1608 = vmatprep.subr.mxu0 0.0
  %1609 = vmatpush2.msra.mxu0 0.0
  %1610 = vmatprep.mubr.f32.mxu0 0.0
  %1611 = vmatmul.mubr.f32.gmra.mxu0 %v1544
  %v1612 = vpop.f32.mrf.mxu0
  %v1613 = vadd.f32 0.0, %v1612
  %v1614 = vpop.f32.mrf.mxu0
  %v1615 = vadd.f32 0.0, %v1614
  %1616 = vdwg.mxu0
  %v1617 = vld [vmem:[%s246] sm:$0xff]
  %v1618 = vld [vmem:[%s246 + $0x8] sm:$0xff]
  %v1619 = vadd.f32 %v1617, %v1613
  %v1620 = vadd.f32 %v1618, %v1615
  %v1621 = vxor.u32 %v1619, 2147483648
  %v1622 = vxor.u32 %v1620, 2147483648
  %v1623 = vmul.f32 %v1621, 1.442695
  %v1624 = vpow.pop %v1623
  %v1625 = vmul.f32 %v1622, 1.442695
  %v1626 = vpow.pop %v1625
  %v1627 = vadd.f32 %v1624, 1.0
  %v1628 = vadd.f32 %v1626, 1.0
  %v1629 = vrcp.pop %v1627
  %v1630 = vmul.f32 1.0, %v1629
  %v1631 = vrcp.pop %v1628
  %v1632 = vmul.f32 1.0, %v1631
  %v1633 = vtanh.pop %v1620
  %v1634 = vmul.f32 %v1630, %v1535
  %1636 = vrot.lane.b32.xlu0 %v1633, 64
  %v1637 = vpop.permute.xlu0 %1636
  %v1639 = vmul.f32 %v1630, %v1637
  %1641 = vrot.lane.b32.xlu0 %v1639, 64
  %v1642 = vpop.permute.xlu0 %1641
  %v1644 = vadd.f32 %v1634, %v1642
  %v1645 = vtanh.pop %v1644
  %1647 = vrot.lane.b32.xlu0 %v1645, 64
  %v1648 = vpop.permute.xlu0 %1647
  %v1650 = vmul.f32 %v1632, %v1648
  %1651 = vst.msk [vmem:[%s519] sm:$0xff] %vm297, %v1650
  %v1653 = vsel %vm297, %v1650, 0
  %1655 = vmatprep.subr.mxu0 0.0
  %1656 = vmatpush1.msra.mxu0 0.0
  %1657 = vmatprep.subr.mxu0 0.0
  %1658 = vmatpush1.msra.mxu0 0.0
  %1659 = vmatprep.subr.mxu0 0.0
  %1660 = vmatpush1.msra.mxu0 0.0
  %1661 = vmatprep.subr.mxu0 0.0
  %1662 = vmatpush1.msra.mxu0 0.0
  %1663 = vmatprep.subr.mxu0 0.0
  %1664 = vmatpush1.msra.mxu0 0.0
  %1665 = vmatprep.subr.mxu0 0.0
  %1666 = vmatpush1.msra.mxu0 0.0
  %1667 = vmatprep.subr.mxu0 0.0
  %1668 = vmatpush1.msra.mxu0 0.0
  %1669 = vmatprep.subr.mxu0 0.0
  %1670 = vmatpush1.msra.mxu0 0.0
  %1671 = vmatprep.subr.mxu0 %v1425
  %1672 = vmatpush1.msra.mxu0 %v1424
  %1673 = vmatprep.subr.mxu0 %v1423
  %1674 = vmatpush1.msra.mxu0 %v1422
  %1675 = vmatprep.subr.mxu0 %v1421
  %1676 = vmatpush1.msra.mxu0 %v1420
  %1677 = vmatprep.subr.mxu0 %v1419
  %1678 = vmatpush1.msra.mxu0 %v1418
  %1679 = vmatprep.subr.mxu0 %v1417
  %1680 = vmatpush1.msra.mxu0 %v1416
  %1681 = vmatprep.subr.mxu0 %v1415
  %1682 = vmatpush1.msra.mxu0 %v1414
  %1683 = vmatprep.subr.mxu0 %v1413
  %1684 = vmatpush1.msra.mxu0 %v1412
  %1685 = vmatprep.subr.mxu0 %v1411
  %1686 = vmatpush1.msra.mxu0 %v1410
  %1687 = vmatprep.subr.mxu0 0.0
  %1688 = vmatpush2.msra.mxu0 0.0
  %1689 = vmatprep.subr.mxu0 0.0
  %1690 = vmatpush2.msra.mxu0 0.0
  %1691 = vmatprep.subr.mxu0 0.0
  %1692 = vmatpush2.msra.mxu0 0.0
  %1693 = vmatprep.subr.mxu0 0.0
  %1694 = vmatpush2.msra.mxu0 0.0
  %1695 = vmatprep.subr.mxu0 0.0
  %1696 = vmatpush2.msra.mxu0 0.0
  %1697 = vmatprep.subr.mxu0 0.0
  %1698 = vmatpush2.msra.mxu0 0.0
  %1699 = vmatprep.subr.mxu0 0.0
  %1700 = vmatpush2.msra.mxu0 0.0
  %1701 = vmatprep.subr.mxu0 0.0
  %1702 = vmatpush2.msra.mxu0 0.0
  %1703 = vmatprep.subr.mxu0 0.0
  %1704 = vmatpush2.msra.mxu0 0.0
  %1705 = vmatprep.subr.mxu0 0.0
  %1706 = vmatpush2.msra.mxu0 0.0
  %1707 = vmatprep.subr.mxu0 0.0
  %1708 = vmatpush2.msra.mxu0 0.0
  %1709 = vmatprep.subr.mxu0 0.0
  %1710 = vmatpush2.msra.mxu0 0.0
  %1711 = vmatprep.subr.mxu0 0.0
  %1712 = vmatpush2.msra.mxu0 0.0
  %1713 = vmatprep.subr.mxu0 0.0
  %1714 = vmatpush2.msra.mxu0 0.0
  %1715 = vmatprep.subr.mxu0 0.0
  %1716 = vmatpush2.msra.mxu0 0.0
  %1717 = vmatprep.subr.mxu0 0.0
  %1718 = vmatpush2.msra.mxu0 0.0
  %1719 = vmatprep.mubr.f32.mxu0 0.0
  %1720 = vmatmul.mubr.f32.gmra.mxu0 %v1653
  %v1721 = vpop.f32.mrf.mxu0
  %v1722 = vadd.f32 0.0, %v1721
  %v1723 = vpop.f32.mrf.mxu0
  %v1724 = vadd.f32 0.0, %v1723
  %1725 = vdwg.mxu0
  %v1726 = vld [vmem:[%s251] sm:$0xff]
  %v1727 = vld [vmem:[%s251 + $0x8] sm:$0xff]
  %v1728 = vadd.f32 %v1726, %v1722
  %v1729 = vadd.f32 %v1727, %v1724
  %v1730 = vxor.u32 %v1728, 2147483648
  %v1731 = vxor.u32 %v1729, 2147483648
  %v1732 = vmul.f32 %v1730, 1.442695
  %v1733 = vpow.pop %v1732
  %v1734 = vmul.f32 %v1731, 1.442695
  %v1735 = vpow.pop %v1734
  %v1736 = vadd.f32 %v1733, 1.0
  %v1737 = vadd.f32 %v1735, 1.0
  %v1738 = vrcp.pop %v1736
  %v1739 = vmul.f32 1.0, %v1738
  %v1740 = vrcp.pop %v1737
  %v1741 = vmul.f32 1.0, %v1740
  %v1742 = vtanh.pop %v1729
  %v1743 = vmul.f32 %v1739, %v1644
  %1745 = vrot.lane.b32.xlu0 %v1742, 64
  %v1746 = vpop.permute.xlu0 %1745
  %v1748 = vmul.f32 %v1739, %v1746
  %1750 = vrot.lane.b32.xlu0 %v1748, 64
  %v1751 = vpop.permute.xlu0 %1750
  %v1753 = vadd.f32 %v1743, %v1751
  %v1754 = vtanh.pop %v1753
  %1756 = vrot.lane.b32.xlu0 %v1754, 64
  %v1757 = vpop.permute.xlu0 %1756
  %v1759 = vmul.f32 %v1741, %v1757
  %1760 = vst.msk [vmem:[%s629] sm:$0xff] %vm297, %v1759
  %v1762 = vsel %vm297, %v1759, 0
  %1764 = vmatprep.subr.mxu0 0.0
  %1765 = vmatpush1.msra.mxu0 0.0
  %1766 = vmatprep.subr.mxu0 0.0
  %1767 = vmatpush1.msra.mxu0 0.0
  %1768 = vmatprep.subr.mxu0 0.0
  %1769 = vmatpush1.msra.mxu0 0.0
  %1770 = vmatprep.subr.mxu0 0.0
  %1771 = vmatpush1.msra.mxu0 0.0
  %1772 = vmatprep.subr.mxu0 0.0
  %1773 = vmatpush1.msra.mxu0 0.0
  %1774 = vmatprep.subr.mxu0 0.0
  %1775 = vmatpush1.msra.mxu0 0.0
  %1776 = vmatprep.subr.mxu0 0.0
  %1777 = vmatpush1.msra.mxu0 0.0
  %1778 = vmatprep.subr.mxu0 0.0
  %1779 = vmatpush1.msra.mxu0 0.0
  %1780 = vmatprep.subr.mxu0 %v1425
  %1781 = vmatpush1.msra.mxu0 %v1424
  %1782 = vmatprep.subr.mxu0 %v1423
  %1783 = vmatpush1.msra.mxu0 %v1422
  %1784 = vmatprep.subr.mxu0 %v1421
  %1785 = vmatpush1.msra.mxu0 %v1420
  %1786 = vmatprep.subr.mxu0 %v1419
  %1787 = vmatpush1.msra.mxu0 %v1418
  %1788 = vmatprep.subr.mxu0 %v1417
  %1789 = vmatpush1.msra.mxu0 %v1416
  %1790 = vmatprep.subr.mxu0 %v1415
  %1791 = vmatpush1.msra.mxu0 %v1414
  %1792 = vmatprep.subr.mxu0 %v1413
  %1793 = vmatpush1.msra.mxu0 %v1412
  %1794 = vmatprep.subr.mxu0 %v1411
  %1795 = vmatpush1.msra.mxu0 %v1410
  %1796 = vmatprep.subr.mxu0 0.0
  %1797 = vmatpush2.msra.mxu0 0.0
  %1798 = vmatprep.subr.mxu0 0.0
  %1799 = vmatpush2.msra.mxu0 0.0
  %1800 = vmatprep.subr.mxu0 0.0
  %1801 = vmatpush2.msra.mxu0 0.0
  %1802 = vmatprep.subr.mxu0 0.0
  %1803 = vmatpush2.msra.mxu0 0.0
  %1804 = vmatprep.subr.mxu0 0.0
  %1805 = vmatpush2.msra.mxu0 0.0
  %1806 = vmatprep.subr.mxu0 0.0
  %1807 = vmatpush2.msra.mxu0 0.0
  %1808 = vmatprep.subr.mxu0 0.0
  %1809 = vmatpush2.msra.mxu0 0.0
  %1810 = vmatprep.subr.mxu0 0.0
  %1811 = vmatpush2.msra.mxu0 0.0
  %1812 = vmatprep.subr.mxu0 0.0
  %1813 = vmatpush2.msra.mxu0 0.0
  %1814 = vmatprep.subr.mxu0 0.0
  %1815 = vmatpush2.msra.mxu0 0.0
  %1816 = vmatprep.subr.mxu0 0.0
  %1817 = vmatpush2.msra.mxu0 0.0
  %1818 = vmatprep.subr.mxu0 0.0
  %1819 = vmatpush2.msra.mxu0 0.0
  %1820 = vmatprep.subr.mxu0 0.0
  %1821 = vmatpush2.msra.mxu0 0.0
  %1822 = vmatprep.subr.mxu0 0.0
  %1823 = vmatpush2.msra.mxu0 0.0
  %1824 = vmatprep.subr.mxu0 0.0
  %1825 = vmatpush2.msra.mxu0 0.0
  %1826 = vmatprep.subr.mxu0 0.0
  %1827 = vmatpush2.msra.mxu0 0.0
  %1828 = vmatprep.mubr.f32.mxu0 0.0
  %1829 = vmatmul.mubr.f32.gmra.mxu0 %v1762
  %v1830 = vpop.f32.mrf.mxu0
  %v1831 = vadd.f32 0.0, %v1830
  %v1832 = vpop.f32.mrf.mxu0
  %v1833 = vadd.f32 0.0, %v1832
  %1834 = vdwg.mxu0
  %v1835 = vld [vmem:[%s256] sm:$0xff]
  %v1836 = vld [vmem:[%s256 + $0x8] sm:$0xff]
  %v1837 = vadd.f32 %v1835, %v1831
  %v1838 = vadd.f32 %v1836, %v1833
  %v1839 = vxor.u32 %v1837, 2147483648
  %v1840 = vxor.u32 %v1838, 2147483648
  %v1841 = vmul.f32 %v1839, 1.442695
  %v1842 = vpow.pop %v1841
  %v1843 = vmul.f32 %v1840, 1.442695
  %v1844 = vpow.pop %v1843
  %v1845 = vadd.f32 %v1842, 1.0
  %v1846 = vadd.f32 %v1844, 1.0
  %v1847 = vrcp.pop %v1845
  %v1848 = vmul.f32 1.0, %v1847
  %v1849 = vrcp.pop %v1846
  %v1850 = vmul.f32 1.0, %v1849
  %v1851 = vtanh.pop %v1838
  %v1852 = vmul.f32 %v1848, %v1753
  %1854 = vrot.lane.b32.xlu0 %v1851, 64
  %v1855 = vpop.permute.xlu0 %1854
  %v1857 = vmul.f32 %v1848, %v1855
  %1859 = vrot.lane.b32.xlu0 %v1857, 64
  %v1860 = vpop.permute.xlu0 %1859
  %v1862 = vadd.f32 %v1852, %v1860
  %v1863 = vtanh.pop %v1862
  %1865 = vrot.lane.b32.xlu0 %v1863, 64
  %v1866 = vpop.permute.xlu0 %1865
  %v1868 = vmul.f32 %v1850, %v1866
  %1869 = vst.msk [vmem:[%s739] sm:$0xff] %vm297, %v1868
  %v1871 = vsel %vm297, %v1868, 0
  %1873 = vmatprep.subr.mxu0 0.0
  %1874 = vmatpush1.msra.mxu0 0.0
  %1875 = vmatprep.subr.mxu0 0.0
  %1876 = vmatpush1.msra.mxu0 0.0
  %1877 = vmatprep.subr.mxu0 0.0
  %1878 = vmatpush1.msra.mxu0 0.0
  %1879 = vmatprep.subr.mxu0 0.0
  %1880 = vmatpush1.msra.mxu0 0.0
  %1881 = vmatprep.subr.mxu0 0.0
  %1882 = vmatpush1.msra.mxu0 0.0
  %1883 = vmatprep.subr.mxu0 0.0
  %1884 = vmatpush1.msra.mxu0 0.0
  %1885 = vmatprep.subr.mxu0 0.0
  %1886 = vmatpush1.msra.mxu0 0.0
  %1887 = vmatprep.subr.mxu0 0.0
  %1888 = vmatpush1.msra.mxu0 0.0
  %1889 = vmatprep.subr.mxu0 %v1425
  %1890 = vmatpush1.msra.mxu0 %v1424
  %1891 = vmatprep.subr.mxu0 %v1423
  %1892 = vmatpush1.msra.mxu0 %v1422
  %1893 = vmatprep.subr.mxu0 %v1421
  %1894 = vmatpush1.msra.mxu0 %v1420
  %1895 = vmatprep.subr.mxu0 %v1419
  %1896 = vmatpush1.msra.mxu0 %v1418
  %1897 = vmatprep.subr.mxu0 %v1417
  %1898 = vmatpush1.msra.mxu0 %v1416
  %1899 = vmatprep.subr.mxu0 %v1415
  %1900 = vmatpush1.msra.mxu0 %v1414
  %1901 = vmatprep.subr.mxu0 %v1413
  %1902 = vmatpush1.msra.mxu0 %v1412
  %1903 = vmatprep.subr.mxu0 %v1411
  %1904 = vmatpush1.msra.mxu0 %v1410
  %1905 = vmatprep.subr.mxu0 0.0
  %1906 = vmatpush2.msra.mxu0 0.0
  %1907 = vmatprep.subr.mxu0 0.0
  %1908 = vmatpush2.msra.mxu0 0.0
  %1909 = vmatprep.subr.mxu0 0.0
  %1910 = vmatpush2.msra.mxu0 0.0
  %1911 = vmatprep.subr.mxu0 0.0
  %1912 = vmatpush2.msra.mxu0 0.0
  %1913 = vmatprep.subr.mxu0 0.0
  %1914 = vmatpush2.msra.mxu0 0.0
  %1915 = vmatprep.subr.mxu0 0.0
  %1916 = vmatpush2.msra.mxu0 0.0
  %1917 = vmatprep.subr.mxu0 0.0
  %1918 = vmatpush2.msra.mxu0 0.0
  %1919 = vmatprep.subr.mxu0 0.0
  %1920 = vmatpush2.msra.mxu0 0.0
  %1921 = vmatprep.subr.mxu0 0.0
  %1922 = vmatpush2.msra.mxu0 0.0
  %1923 = vmatprep.subr.mxu0 0.0
  %1924 = vmatpush2.msra.mxu0 0.0
  %1925 = vmatprep.subr.mxu0 0.0
  %1926 = vmatpush2.msra.mxu0 0.0
  %1927 = vmatprep.subr.mxu0 0.0
  %1928 = vmatpush2.msra.mxu0 0.0
  %1929 = vmatprep.subr.mxu0 0.0
  %1930 = vmatpush2.msra.mxu0 0.0
  %1931 = vmatprep.subr.mxu0 0.0
  %1932 = vmatpush2.msra.mxu0 0.0
  %1933 = vmatprep.subr.mxu0 0.0
  %1934 = vmatpush2.msra.mxu0 0.0
  %1935 = vmatprep.subr.mxu0 0.0
  %1936 = vmatpush2.msra.mxu0 0.0
  %1937 = vmatprep.mubr.f32.mxu0 0.0
  %1938 = vmatmul.mubr.f32.gmra.mxu0 %v1871
  %v1939 = vpop.f32.mrf.mxu0
  %v1940 = vadd.f32 0.0, %v1939
  %v1941 = vpop.f32.mrf.mxu0
  %v1942 = vadd.f32 0.0, %v1941
  %1943 = vdwg.mxu0
  %v1944 = vld [vmem:[%s261] sm:$0xff]
  %v1945 = vld [vmem:[%s261 + $0x8] sm:$0xff]
  %v1946 = vadd.f32 %v1944, %v1940
  %v1947 = vadd.f32 %v1945, %v1942
  %v1948 = vxor.u32 %v1946, 2147483648
  %v1949 = vxor.u32 %v1947, 2147483648
  %v1950 = vmul.f32 %v1948, 1.442695
  %v1951 = vpow.pop %v1950
  %v1952 = vmul.f32 %v1949, 1.442695
  %v1953 = vpow.pop %v1952
  %v1954 = vadd.f32 %v1951, 1.0
  %v1955 = vadd.f32 %v1953, 1.0
  %v1956 = vrcp.pop %v1954
  %v1957 = vmul.f32 1.0, %v1956
  %v1958 = vrcp.pop %v1955
  %v1959 = vmul.f32 1.0, %v1958
  %v1960 = vtanh.pop %v1947
  %v1961 = vmul.f32 %v1957, %v1862
  %1963 = vrot.lane.b32.xlu0 %v1960, 64
  %v1964 = vpop.permute.xlu0 %1963
  %v1966 = vmul.f32 %v1957, %v1964
  %1968 = vrot.lane.b32.xlu0 %v1966, 64
  %v1969 = vpop.permute.xlu0 %1968
  %v1971 = vadd.f32 %v1961, %v1969
  %v1972 = vtanh.pop %v1971
  %1974 = vrot.lane.b32.xlu0 %v1972, 64
  %v1975 = vpop.permute.xlu0 %1974
  %v1977 = vmul.f32 %v1959, %v1975
  %1978 = vst.msk [vmem:[%s849] sm:$0xff] %vm297, %v1977
  %v1980 = vsel %vm297, %v1977, 0
  %1982 = vmatprep.subr.mxu0 0.0
  %1983 = vmatpush1.msra.mxu0 0.0
  %1984 = vmatprep.subr.mxu0 0.0
  %1985 = vmatpush1.msra.mxu0 0.0
  %1986 = vmatprep.subr.mxu0 0.0
  %1987 = vmatpush1.msra.mxu0 0.0
  %1988 = vmatprep.subr.mxu0 0.0
  %1989 = vmatpush1.msra.mxu0 0.0
  %1990 = vmatprep.subr.mxu0 0.0
  %1991 = vmatpush1.msra.mxu0 0.0
  %1992 = vmatprep.subr.mxu0 0.0
  %1993 = vmatpush1.msra.mxu0 0.0
  %1994 = vmatprep.subr.mxu0 0.0
  %1995 = vmatpush1.msra.mxu0 0.0
  %1996 = vmatprep.subr.mxu0 0.0
  %1997 = vmatpush1.msra.mxu0 0.0
  %1998 = vmatprep.subr.mxu0 %v1425
  %1999 = vmatpush1.msra.mxu0 %v1424
  %2000 = vmatprep.subr.mxu0 %v1423
  %2001 = vmatpush1.msra.mxu0 %v1422
  %2002 = vmatprep.subr.mxu0 %v1421
  %2003 = vmatpush1.msra.mxu0 %v1420
  %2004 = vmatprep.subr.mxu0 %v1419
  %2005 = vmatpush1.msra.mxu0 %v1418
  %2006 = vmatprep.subr.mxu0 %v1417
  %2007 = vmatpush1.msra.mxu0 %v1416
  %2008 = vmatprep.subr.mxu0 %v1415
  %2009 = vmatpush1.msra.mxu0 %v1414
  %2010 = vmatprep.subr.mxu0 %v1413
  %2011 = vmatpush1.msra.mxu0 %v1412
  %2012 = vmatprep.subr.mxu0 %v1411
  %2013 = vmatpush1.msra.mxu0 %v1410
  %2014 = vmatprep.subr.mxu0 0.0
  %2015 = vmatpush2.msra.mxu0 0.0
  %2016 = vmatprep.subr.mxu0 0.0
  %2017 = vmatpush2.msra.mxu0 0.0
  %2018 = vmatprep.subr.mxu0 0.0
  %2019 = vmatpush2.msra.mxu0 0.0
  %2020 = vmatprep.subr.mxu0 0.0
  %2021 = vmatpush2.msra.mxu0 0.0
  %2022 = vmatprep.subr.mxu0 0.0
  %2023 = vmatpush2.msra.mxu0 0.0
  %2024 = vmatprep.subr.mxu0 0.0
  %2025 = vmatpush2.msra.mxu0 0.0
  %2026 = vmatprep.subr.mxu0 0.0
  %2027 = vmatpush2.msra.mxu0 0.0
  %2028 = vmatprep.subr.mxu0 0.0
  %2029 = vmatpush2.msra.mxu0 0.0
  %2030 = vmatprep.subr.mxu0 0.0
  %2031 = vmatpush2.msra.mxu0 0.0
  %2032 = vmatprep.subr.mxu0 0.0
  %2033 = vmatpush2.msra.mxu0 0.0
  %2034 = vmatprep.subr.mxu0 0.0
  %2035 = vmatpush2.msra.mxu0 0.0
  %2036 = vmatprep.subr.mxu0 0.0
  %2037 = vmatpush2.msra.mxu0 0.0
  %2038 = vmatprep.subr.mxu0 0.0
  %2039 = vmatpush2.msra.mxu0 0.0
  %2040 = vmatprep.subr.mxu0 0.0
  %2041 = vmatpush2.msra.mxu0 0.0
  %2042 = vmatprep.subr.mxu0 0.0
  %2043 = vmatpush2.msra.mxu0 0.0
  %2044 = vmatprep.subr.mxu0 0.0
  %2045 = vmatpush2.msra.mxu0 0.0
  %2046 = vmatprep.mubr.f32.mxu0 0.0
  %2047 = vmatmul.mubr.f32.gmra.mxu0 %v1980
  %v2048 = vpop.f32.mrf.mxu0
  %v2049 = vadd.f32 0.0, %v2048
  %v2050 = vpop.f32.mrf.mxu0
  %v2051 = vadd.f32 0.0, %v2050
  %2052 = vdwg.mxu0
  %v2053 = vld [vmem:[%s266] sm:$0xff]
  %v2054 = vld [vmem:[%s266 + $0x8] sm:$0xff]
  %v2055 = vadd.f32 %v2053, %v2049
  %v2056 = vadd.f32 %v2054, %v2051
  %v2057 = vxor.u32 %v2055, 2147483648
  %v2058 = vxor.u32 %v2056, 2147483648
  %v2059 = vmul.f32 %v2057, 1.442695
  %v2060 = vpow.pop %v2059
  %v2061 = vmul.f32 %v2058, 1.442695
  %v2062 = vpow.pop %v2061
  %v2063 = vadd.f32 %v2060, 1.0
  %v2064 = vadd.f32 %v2062, 1.0
  %v2065 = vrcp.pop %v2063
  %v2066 = vmul.f32 1.0, %v2065
  %v2067 = vrcp.pop %v2064
  %v2068 = vmul.f32 1.0, %v2067
  %v2069 = vtanh.pop %v2056
  %v2070 = vmul.f32 %v2066, %v1971
  %2072 = vrot.lane.b32.xlu0 %v2069, 64
  %v2073 = vpop.permute.xlu0 %2072
  %v2075 = vmul.f32 %v2066, %v2073
  %2077 = vrot.lane.b32.xlu0 %v2075, 64
  %v2078 = vpop.permute.xlu0 %2077
  %v2080 = vadd.f32 %v2070, %v2078
  %v2081 = vtanh.pop %v2080
  %2083 = vrot.lane.b32.xlu0 %v2081, 64
  %v2084 = vpop.permute.xlu0 %2083
  %v2086 = vmul.f32 %v2068, %v2084
  %2087 = vst.msk [vmem:[%s959] sm:$0xff] %vm297, %v2086
  %v2089 = vsel %vm297, %v2086, 0
  %2091 = vmatprep.subr.mxu0 0.0
  %2092 = vmatpush1.msra.mxu0 0.0
  %2093 = vmatprep.subr.mxu0 0.0
  %2094 = vmatpush1.msra.mxu0 0.0
  %2095 = vmatprep.subr.mxu0 0.0
  %2096 = vmatpush1.msra.mxu0 0.0
  %2097 = vmatprep.subr.mxu0 0.0
  %2098 = vmatpush1.msra.mxu0 0.0
  %2099 = vmatprep.subr.mxu0 0.0
  %2100 = vmatpush1.msra.mxu0 0.0
  %2101 = vmatprep.subr.mxu0 0.0
  %2102 = vmatpush1.msra.mxu0 0.0
  %2103 = vmatprep.subr.mxu0 0.0
  %2104 = vmatpush1.msra.mxu0 0.0
  %2105 = vmatprep.subr.mxu0 0.0
  %2106 = vmatpush1.msra.mxu0 0.0
  %2107 = vmatprep.subr.mxu0 %v1425
  %2108 = vmatpush1.msra.mxu0 %v1424
  %2109 = vmatprep.subr.mxu0 %v1423
  %2110 = vmatpush1.msra.mxu0 %v1422
  %2111 = vmatprep.subr.mxu0 %v1421
  %2112 = vmatpush1.msra.mxu0 %v1420
  %2113 = vmatprep.subr.mxu0 %v1419
  %2114 = vmatpush1.msra.mxu0 %v1418
  %2115 = vmatprep.subr.mxu0 %v1417
  %2116 = vmatpush1.msra.mxu0 %v1416
  %2117 = vmatprep.subr.mxu0 %v1415
  %2118 = vmatpush1.msra.mxu0 %v1414
  %2119 = vmatprep.subr.mxu0 %v1413
  %2120 = vmatpush1.msra.mxu0 %v1412
  %2121 = vmatprep.subr.mxu0 %v1411
  %2122 = vmatpush1.msra.mxu0 %v1410
  %2123 = vmatprep.subr.mxu0 0.0
  %2124 = vmatpush2.msra.mxu0 0.0
  %2125 = vmatprep.subr.mxu0 0.0
  %2126 = vmatpush2.msra.mxu0 0.0
  %2127 = vmatprep.subr.mxu0 0.0
  %2128 = vmatpush2.msra.mxu0 0.0
  %2129 = vmatprep.subr.mxu0 0.0
  %2130 = vmatpush2.msra.mxu0 0.0
  %2131 = vmatprep.subr.mxu0 0.0
  %2132 = vmatpush2.msra.mxu0 0.0
  %2133 = vmatprep.subr.mxu0 0.0
  %2134 = vmatpush2.msra.mxu0 0.0
  %2135 = vmatprep.subr.mxu0 0.0
  %2136 = vmatpush2.msra.mxu0 0.0
  %2137 = vmatprep.subr.mxu0 0.0
  %2138 = vmatpush2.msra.mxu0 0.0
  %2139 = vmatprep.subr.mxu0 0.0
  %2140 = vmatpush2.msra.mxu0 0.0
  %2141 = vmatprep.subr.mxu0 0.0
  %2142 = vmatpush2.msra.mxu0 0.0
  %2143 = vmatprep.subr.mxu0 0.0
  %2144 = vmatpush2.msra.mxu0 0.0
  %2145 = vmatprep.subr.mxu0 0.0
  %2146 = vmatpush2.msra.mxu0 0.0
  %2147 = vmatprep.subr.mxu0 0.0
  %2148 = vmatpush2.msra.mxu0 0.0
  %2149 = vmatprep.subr.mxu0 0.0
  %2150 = vmatpush2.msra.mxu0 0.0
  %2151 = vmatprep.subr.mxu0 0.0
  %2152 = vmatpush2.msra.mxu0 0.0
  %2153 = vmatprep.subr.mxu0 0.0
  %2154 = vmatpush2.msra.mxu0 0.0
  %2155 = vmatprep.mubr.f32.mxu0 0.0
  %2156 = vmatmul.mubr.f32.gmra.mxu0 %v2089
  %v2157 = vpop.f32.mrf.mxu0
  %v2158 = vadd.f32 0.0, %v2157
  %v2159 = vpop.f32.mrf.mxu0
  %v2160 = vadd.f32 0.0, %v2159
  %2161 = vdwg.mxu0
  %v2162 = vld [vmem:[%s271] sm:$0xff]
  %v2163 = vld [vmem:[%s271 + $0x8] sm:$0xff]
  %v2164 = vadd.f32 %v2162, %v2158
  %v2165 = vadd.f32 %v2163, %v2160
  %v2166 = vxor.u32 %v2164, 2147483648
  %v2167 = vxor.u32 %v2165, 2147483648
  %v2168 = vmul.f32 %v2166, 1.442695
  %v2169 = vpow.pop %v2168
  %v2170 = vmul.f32 %v2167, 1.442695
  %v2171 = vpow.pop %v2170
  %v2172 = vadd.f32 %v2169, 1.0
  %v2173 = vadd.f32 %v2171, 1.0
  %v2174 = vrcp.pop %v2172
  %v2175 = vmul.f32 1.0, %v2174
  %v2176 = vrcp.pop %v2173
  %v2177 = vmul.f32 1.0, %v2176
  %v2178 = vtanh.pop %v2165
  %v2179 = vmul.f32 %v2175, %v2080
  %2181 = vrot.lane.b32.xlu0 %v2178, 64
  %v2182 = vpop.permute.xlu0 %2181
  %v2184 = vmul.f32 %v2175, %v2182
  %2186 = vrot.lane.b32.xlu0 %v2184, 64
  %v2187 = vpop.permute.xlu0 %2186
  %v2189 = vadd.f32 %v2179, %v2187
  %v2190 = vtanh.pop %v2189
  %2192 = vrot.lane.b32.xlu0 %v2190, 64
  %v2193 = vpop.permute.xlu0 %2192
  %v2195 = vmul.f32 %v2177, %v2193
  %2196 = vst.msk [vmem:[%s1069] sm:$0xff] %vm297, %v2195
  %v2198 = vsel %vm297, %v2195, 0
  %2200 = vmatprep.subr.mxu0 0.0
  %2201 = vmatpush1.msra.mxu0 0.0
  %2202 = vmatprep.subr.mxu0 0.0
  %2203 = vmatpush1.msra.mxu0 0.0
  %2204 = vmatprep.subr.mxu0 0.0
  %2205 = vmatpush1.msra.mxu0 0.0
  %2206 = vmatprep.subr.mxu0 0.0
  %2207 = vmatpush1.msra.mxu0 0.0
  %2208 = vmatprep.subr.mxu0 0.0
  %2209 = vmatpush1.msra.mxu0 0.0
  %2210 = vmatprep.subr.mxu0 0.0
  %2211 = vmatpush1.msra.mxu0 0.0
  %2212 = vmatprep.subr.mxu0 0.0
  %2213 = vmatpush1.msra.mxu0 0.0
  %2214 = vmatprep.subr.mxu0 0.0
  %2215 = vmatpush1.msra.mxu0 0.0
  %2216 = vmatprep.subr.mxu0 %v1425
  %2217 = vmatpush1.msra.mxu0 %v1424
  %2218 = vmatprep.subr.mxu0 %v1423
  %2219 = vmatpush1.msra.mxu0 %v1422
  %2220 = vmatprep.subr.mxu0 %v1421
  %2221 = vmatpush1.msra.mxu0 %v1420
  %2222 = vmatprep.subr.mxu0 %v1419
  %2223 = vmatpush1.msra.mxu0 %v1418
  %2224 = vmatprep.subr.mxu0 %v1417
  %2225 = vmatpush1.msra.mxu0 %v1416
  %2226 = vmatprep.subr.mxu0 %v1415
  %2227 = vmatpush1.msra.mxu0 %v1414
  %2228 = vmatprep.subr.mxu0 %v1413
  %2229 = vmatpush1.msra.mxu0 %v1412
  %2230 = vmatprep.subr.mxu0 %v1411
  %2231 = vmatpush1.msra.mxu0 %v1410
  %2232 = vmatprep.subr.mxu0 0.0
  %2233 = vmatpush2.msra.mxu0 0.0
  %2234 = vmatprep.subr.mxu0 0.0
  %2235 = vmatpush2.msra.mxu0 0.0
  %2236 = vmatprep.subr.mxu0 0.0
  %2237 = vmatpush2.msra.mxu0 0.0
  %2238 = vmatprep.subr.mxu0 0.0
  %2239 = vmatpush2.msra.mxu0 0.0
  %2240 = vmatprep.subr.mxu0 0.0
  %2241 = vmatpush2.msra.mxu0 0.0
  %2242 = vmatprep.subr.mxu0 0.0
  %2243 = vmatpush2.msra.mxu0 0.0
  %2244 = vmatprep.subr.mxu0 0.0
  %2245 = vmatpush2.msra.mxu0 0.0
  %2246 = vmatprep.subr.mxu0 0.0
  %2247 = vmatpush2.msra.mxu0 0.0
  %2248 = vmatprep.subr.mxu0 0.0
  %2249 = vmatpush2.msra.mxu0 0.0
  %2250 = vmatprep.subr.mxu0 0.0
  %2251 = vmatpush2.msra.mxu0 0.0
  %2252 = vmatprep.subr.mxu0 0.0
  %2253 = vmatpush2.msra.mxu0 0.0
  %2254 = vmatprep.subr.mxu0 0.0
  %2255 = vmatpush2.msra.mxu0 0.0
  %2256 = vmatprep.subr.mxu0 0.0
  %2257 = vmatpush2.msra.mxu0 0.0
  %2258 = vmatprep.subr.mxu0 0.0
  %2259 = vmatpush2.msra.mxu0 0.0
  %2260 = vmatprep.subr.mxu0 0.0
  %2261 = vmatpush2.msra.mxu0 0.0
  %2262 = vmatprep.subr.mxu0 0.0
  %2263 = vmatpush2.msra.mxu0 0.0
  %2264 = vmatprep.mubr.f32.mxu0 0.0
  %2265 = vmatmul.mubr.f32.gmra.mxu0 %v2198
  %v2266 = vpop.f32.mrf.mxu0
  %v2267 = vadd.f32 0.0, %v2266
  %v2268 = vpop.f32.mrf.mxu0
  %v2269 = vadd.f32 0.0, %v2268
  %2270 = vdwg.mxu0
  %v2271 = vld [vmem:[%s276] sm:$0xff]
  %v2272 = vld [vmem:[%s276 + $0x8] sm:$0xff]
  %v2273 = vadd.f32 %v2271, %v2267
  %v2274 = vadd.f32 %v2272, %v2269
  %v2275 = vxor.u32 %v2273, 2147483648
  %v2276 = vxor.u32 %v2274, 2147483648
  %v2277 = vmul.f32 %v2275, 1.442695
  %v2278 = vpow.pop %v2277
  %v2279 = vmul.f32 %v2276, 1.442695
  %v2280 = vpow.pop %v2279
  %v2281 = vadd.f32 %v2278, 1.0
  %v2282 = vadd.f32 %v2280, 1.0
  %v2283 = vrcp.pop %v2281
  %v2284 = vmul.f32 1.0, %v2283
  %v2285 = vrcp.pop %v2282
  %v2286 = vmul.f32 1.0, %v2285
  %v2287 = vtanh.pop %v2274
  %v2288 = vmul.f32 %v2284, %v2189
  %2290 = vrot.lane.b32.xlu0 %v2287, 64
  %v2291 = vpop.permute.xlu0 %2290
  %v2293 = vmul.f32 %v2284, %v2291
  %2295 = vrot.lane.b32.xlu0 %v2293, 64
  %v2296 = vpop.permute.xlu0 %2295
  %v2298 = vadd.f32 %v2288, %v2296
  %v2299 = vtanh.pop %v2298
  %2301 = vrot.lane.b32.xlu0 %v2299, 64
  %v2302 = vpop.permute.xlu0 %2301
  %v2304 = vmul.f32 %v2286, %v2302
  %2305 = vst.msk [vmem:[%s1179] sm:$0xff] %vm297, %v2304
  %v2306 = vld [vmem:[%s1179] sm:$0xff]
  %v2307 = vld [vmem:[#allocation3] sm:$0xff]
  %v2308 = vsel %vm73, %v2306, %v2307
  %v2309 = vld [vmem:[%s9] sm:$0xff]
  %v2310 = vld [vmem:[%s9 + $0x8] sm:$0xff]
  %v2311 = vld [vmem:[%s9 + $0x10] sm:$0xff]
  %v2312 = vld [vmem:[%s9 + $0x18] sm:$0xff]
  %v2313 = vld [vmem:[%s9 + $0x20] sm:$0xff]
  %v2314 = vld [vmem:[%s9 + $0x28] sm:$0xff]
  %v2315 = vld [vmem:[%s9 + $0x30] sm:$0xff]
  %v2316 = vld [vmem:[%s9 + $0x38] sm:$0xff]
  %v2317 = vld [vmem:[%s10] sm:$0x1]
  %v2319 = vlaneseq
  %v2320 = vshrl.u32 %v2319, 7
  %v2321 = vsub.s32 0, %v2320
  %v2322 = vrot.slane %v2317, %v2321
  %v2325 = vsel %vm297, %v2308, 0
  %2327 = vmatprep.subr.mxu0 0.0
  %2328 = vmatpush1.msra.mxu0 0.0
  %2329 = vmatprep.subr.mxu0 0.0
  %2330 = vmatpush1.msra.mxu0 0.0
  %2331 = vmatprep.subr.mxu0 0.0
  %2332 = vmatpush1.msra.mxu0 0.0
  %2333 = vmatprep.subr.mxu0 0.0
  %2334 = vmatpush1.msra.mxu0 0.0
  %2335 = vmatprep.subr.mxu0 0.0
  %2336 = vmatpush1.msra.mxu0 0.0
  %2337 = vmatprep.subr.mxu0 0.0
  %2338 = vmatpush1.msra.mxu0 0.0
  %2339 = vmatprep.subr.mxu0 0.0
  %2340 = vmatpush1.msra.mxu0 0.0
  %2341 = vmatprep.subr.mxu0 0.0
  %2342 = vmatpush1.msra.mxu0 0.0
  %2343 = vmatprep.subr.mxu0 0.0
  %2344 = vmatpush1.msra.mxu0 %v2316
  %2345 = vmatprep.subr.mxu0 0.0
  %2346 = vmatpush1.msra.mxu0 %v2315
  %2347 = vmatprep.subr.mxu0 0.0
  %2348 = vmatpush1.msra.mxu0 %v2314
  %2349 = vmatprep.subr.mxu0 0.0
  %2350 = vmatpush1.msra.mxu0 %v2313
  %2351 = vmatprep.subr.mxu0 0.0
  %2352 = vmatpush1.msra.mxu0 %v2312
  %2353 = vmatprep.subr.mxu0 0.0
  %2354 = vmatpush1.msra.mxu0 %v2311
  %2355 = vmatprep.subr.mxu0 0.0
  %2356 = vmatpush1.msra.mxu0 %v2310
  %2357 = vmatprep.subr.mxu0 0.0
  %2358 = vmatpush1.msra.mxu0 %v2309
  %2359 = vmatprep.subr.mxu0 0.0
  %2360 = vmatpush2.msra.mxu0 0.0
  %2361 = vmatprep.subr.mxu0 0.0
  %2362 = vmatpush2.msra.mxu0 0.0
  %2363 = vmatprep.subr.mxu0 0.0
  %2364 = vmatpush2.msra.mxu0 0.0
  %2365 = vmatprep.subr.mxu0 0.0
  %2366 = vmatpush2.msra.mxu0 0.0
  %2367 = vmatprep.subr.mxu0 0.0
  %2368 = vmatpush2.msra.mxu0 0.0
  %2369 = vmatprep.subr.mxu0 0.0
  %2370 = vmatpush2.msra.mxu0 0.0
  %2371 = vmatprep.subr.mxu0 0.0
  %2372 = vmatpush2.msra.mxu0 0.0
  %2373 = vmatprep.subr.mxu0 0.0
  %2374 = vmatpush2.msra.mxu0 0.0
  %2375 = vmatprep.subr.mxu0 0.0
  %2376 = vmatpush2.msra.mxu0 0.0
  %2377 = vmatprep.subr.mxu0 0.0
  %2378 = vmatpush2.msra.mxu0 0.0
  %2379 = vmatprep.subr.mxu0 0.0
  %2380 = vmatpush2.msra.mxu0 0.0
  %2381 = vmatprep.subr.mxu0 0.0
  %2382 = vmatpush2.msra.mxu0 0.0
  %2383 = vmatprep.subr.mxu0 0.0
  %2384 = vmatpush2.msra.mxu0 0.0
  %2385 = vmatprep.subr.mxu0 0.0
  %2386 = vmatpush2.msra.mxu0 0.0
  %2387 = vmatprep.subr.mxu0 0.0
  %2388 = vmatpush2.msra.mxu0 0.0
  %2389 = vmatprep.subr.mxu0 0.0
  %2390 = vmatpush2.msra.mxu0 0.0
  %2391 = vmatprep.mubr.f32.mxu0 0.0
  %2392 = vmatmul.mubr.f32.gmra.mxu0 %v2325
  %v2393 = vpop.f32.mrf.mxu0
  %v2394 = vadd.f32 %v2322, %v2393
  %v2395 = vpop.f32.mrf.mxu0
  %2396 = vdwg.mxu0
  %v2397 = vmax.f32 %v2394, 0.0
  %v2398 = vld [vmem:[%s11] sm:$0xff]
  %v2399 = vld [vmem:[%s11 + $0x8] sm:$0xff]
  %v2400 = vld [vmem:[%s11 + $0x10] sm:$0xff]
  %v2401 = vld [vmem:[%s11 + $0x18] sm:$0xff]
  %v2402 = vld [vmem:[%s12] sm:$0x1]
  %v2404 = vlaneseq
  %v2405 = vshrl.u32 %v2404, 7
  %v2406 = vsub.s32 0, %v2405
  %v2407 = vrot.slane %v2402, %v2406
  %vm2409 = vcmask 261120
  %v2411 = vsel %vm2409, %v2397, 0
  %2413 = vmatprep.subr.mxu0 0.0
  %2414 = vmatpush1.msra.mxu0 0.0
  %2415 = vmatprep.subr.mxu0 0.0
  %2416 = vmatpush1.msra.mxu0 0.0
  %2417 = vmatprep.subr.mxu0 0.0
  %2418 = vmatpush1.msra.mxu0 0.0
  %2419 = vmatprep.subr.mxu0 0.0
  %2420 = vmatpush1.msra.mxu0 0.0
  %2421 = vmatprep.subr.mxu0 0.0
  %2422 = vmatpush1.msra.mxu0 0.0
  %2423 = vmatprep.subr.mxu0 0.0
  %2424 = vmatpush1.msra.mxu0 0.0
  %2425 = vmatprep.subr.mxu0 0.0
  %2426 = vmatpush1.msra.mxu0 0.0
  %2427 = vmatprep.subr.mxu0 0.0
  %2428 = vmatpush1.msra.mxu0 0.0
  %2429 = vmatprep.subr.mxu0 0.0
  %2430 = vmatpush1.msra.mxu0 0.0
  %2431 = vmatprep.subr.mxu0 0.0
  %2432 = vmatpush1.msra.mxu0 0.0
  %2433 = vmatprep.subr.mxu0 0.0
  %2434 = vmatpush1.msra.mxu0 0.0
  %2435 = vmatprep.subr.mxu0 0.0
  %2436 = vmatpush1.msra.mxu0 0.0
  %2437 = vmatprep.subr.mxu0 0.0
  %2438 = vmatpush1.msra.mxu0 %v2401
  %2439 = vmatprep.subr.mxu0 0.0
  %2440 = vmatpush1.msra.mxu0 %v2400
  %2441 = vmatprep.subr.mxu0 0.0
  %2442 = vmatpush1.msra.mxu0 %v2399
  %2443 = vmatprep.subr.mxu0 0.0
  %2444 = vmatpush1.msra.mxu0 %v2398
  %2445 = vmatprep.subr.mxu0 0.0
  %2446 = vmatpush2.msra.mxu0 0.0
  %2447 = vmatprep.subr.mxu0 0.0
  %2448 = vmatpush2.msra.mxu0 0.0
  %2449 = vmatprep.subr.mxu0 0.0
  %2450 = vmatpush2.msra.mxu0 0.0
  %2451 = vmatprep.subr.mxu0 0.0
  %2452 = vmatpush2.msra.mxu0 0.0
  %2453 = vmatprep.subr.mxu0 0.0
  %2454 = vmatpush2.msra.mxu0 0.0
  %2455 = vmatprep.subr.mxu0 0.0
  %2456 = vmatpush2.msra.mxu0 0.0
  %2457 = vmatprep.subr.mxu0 0.0
  %2458 = vmatpush2.msra.mxu0 0.0
  %2459 = vmatprep.subr.mxu0 0.0
  %2460 = vmatpush2.msra.mxu0 0.0
  %2461 = vmatprep.subr.mxu0 0.0
  %2462 = vmatpush2.msra.mxu0 0.0
  %2463 = vmatprep.subr.mxu0 0.0
  %2464 = vmatpush2.msra.mxu0 0.0
  %2465 = vmatprep.subr.mxu0 0.0
  %2466 = vmatpush2.msra.mxu0 0.0
  %2467 = vmatprep.subr.mxu0 0.0
  %2468 = vmatpush2.msra.mxu0 0.0
  %2469 = vmatprep.subr.mxu0 0.0
  %2470 = vmatpush2.msra.mxu0 0.0
  %2471 = vmatprep.subr.mxu0 0.0
  %2472 = vmatpush2.msra.mxu0 0.0
  %2473 = vmatprep.subr.mxu0 0.0
  %2474 = vmatpush2.msra.mxu0 0.0
  %2475 = vmatprep.subr.mxu0 0.0
  %2476 = vmatpush2.msra.mxu0 0.0
  %2477 = vmatprep.mubr.f32.mxu0 0.0
  %2478 = vmatmul.mubr.f32.gmra.mxu0 %v2411
  %v2479 = vpop.f32.mrf.mxu0
  %v2480 = vadd.f32 %v2407, %v2479
  %v2481 = vpop.f32.mrf.mxu0
  %2482 = vdwg.mxu0
  %vm2483 = vcmask 23552
  %2484 = vst.msk [vmem:[%s13] sm:$0xff] %vm2483, %v2480
  // Predicated region
  $region54: #{conv_lstm_linear_forward.1} parent=0 // pred_check
    _
  $region55: #{conv_lstm_linear_forward.1} parent=0 // pred_check_branch
    %2486 = sbr.rel (0) target = $region57
  $region56: #{conv_lstm_linear_forward.1} parent=0 // pred_region
    _
  $region57: #{conv_lstm_linear_forward.1} parent=0 // pred_fallthru
    _
  // Predicated region
  $region58: #{conv_lstm_linear_forward.1} parent=0 // pred_check
    _
  $region59: #{conv_lstm_linear_forward.1} parent=0 // pred_check_branch
    %2488 = sbr.rel (0) target = $region61
  $region60: #{conv_lstm_linear_forward.1} parent=0 // pred_region
    _
  $region61: #{conv_lstm_linear_forward.1} parent=0 // pred_fallthru
    _

</llo_original>
